<compile_context>
chip_gen: v6e
topology: v6e:2x2x1
jax: 0.10.0
libtpu: 0.0.40
codegen_flags: <defaults>
</compile_context>

<pallas_src>
import math
from functools import partial

import numpy as np
import jax
import jax.numpy as jnp
from jax import lax
from jax.experimental import pallas as pl
from jax.experimental.pallas import tpu as pltpu


# ---------------------------------------------------------------------------
# small in-kernel helpers
# ---------------------------------------------------------------------------
def _vmem():
    return pl.BlockSpec(memory_space=pltpu.MemorySpace.VMEM)


def _ln(x, g, b, eps=1e-5):
    mu = jnp.mean(x, axis=-1, keepdims=True)
    var = jnp.mean(jnp.square(x - mu), axis=-1, keepdims=True)
    return (x - mu) * lax.rsqrt(var + eps) * g + b


def _erf(x):
    # TODO(synk): lax.erf has no guaranteed Mosaic lowering; exact-GELU erf is
    # approximated with Abramowitz&Stegun 7.1.26 (max abs err ~1.5e-7 in f32).
    a1, a2, a3, a4, a5 = 0.254829592, -0.284496736, 1.421413741, -1.453152027, 1.061405429
    pc = 0.3275911
    sgn = jnp.where(x >= 0, 1.0, -1.0)
    ax = jnp.abs(x)
    t = 1.0 / (1.0 + pc * ax)
    poly = ((((a5 * t + a4) * t + a3) * t + a2) * t + a1) * t
    return sgn * (1.0 - poly * jnp.exp(-ax * ax))


def _gelu_exact(x):
    return 0.5 * x * (1.0 + _erf(x * (1.0 / math.sqrt(2.0))))


def _leaky(x, slope=0.1):
    return jnp.where(x > 0, x, slope * x)


# ---------------------------------------------------------------------------
# ONE fused kernel: GCN encoder -> pos-enc -> token assembly -> transformer
#                   -> node extraction -> u_mlp -> feature decoder -> stats head
# ---------------------------------------------------------------------------
def _fused_forward_kernel(*refs, n_blocks, shortcut_flags, n_layers, H, Dh):
    it = iter(refs[:-2])
    xrec_ref, stats_ref = refs[-2], refs[-1]

    # ---------------- GCN encoder (BN folded, dropout = identity) ----------------
    h = next(it)[...]                      # x (N, F)
    A = next(it)[...]                      # A_norm (N, N)
    for i in range(n_blocks):
        cw = next(it)[...]                 # conv_w (BN folded)
        cb = next(it)[...]                 # conv_b (BN folded), (1, Cout)
        if shortcut_flags[i]:
            sw = next(it)[...]
            sb = next(it)[...]
            residual = jnp.dot(h, sw, preferred_element_type=jnp.float32) + sb
        else:
            residual = h
        hw = jnp.dot(h, cw, preferred_element_type=jnp.float32)
        agg = jnp.dot(A, hw, preferred_element_type=jnp.float32) + cb
        h = _leaky(_leaky(agg) + residual)   # LeakyReLU(BN(conv)); LeakyReLU(x + residual)

    # F.normalize(p=2, dim=1)
    nrm = jnp.sqrt(jnp.sum(h * h, axis=1, keepdims=True))
    h = h / jnp.maximum(nrm, 1e-12)

    # ---------------- positional encoding ----------------
    spl = next(it)[...]                    # (N, max_nodes) shortest-path lengths
    le = next(it)[...]                     # (N, max_nodes) Laplacian eigvecs
    wsp_w = next(it)[...]; wsp_b = next(it)[...]
    le_w = next(it)[...];  le_b = next(it)[...]
    pos = jnp.concatenate(
        [jnp.dot(spl, wsp_w, preferred_element_type=jnp.float32) + wsp_b,
         jnp.dot(le, le_w, preferred_element_type=jnp.float32) + le_b], axis=-1)
    zpos = h + pos                         # (N, d)

    # ---------------- CLS / pad token assembly ----------------
    G = next(it)[...]                      # (B*T, N) scatter (per-graph placement + pad)
    cls_ind = next(it)[...]                # (B*T, 1) 1.0 at CLS rows
    cls_vec = next(it)[...]                # (1, d)
    tok = jnp.dot(G, zpos, preferred_element_type=jnp.float32) + cls_ind * cls_vec

    # ---------------- transformer encoder (post-norm, GELU) ----------------
    bias = next(it)[...]                   # (B*T, B*T) block-diag key-padding bias
    d = H * Dh
    scale = 1.0 / math.sqrt(Dh)
    for _ in range(n_layers):
        in_w = next(it)[...]; in_b = next(it)[...]
        out_w = next(it)[...]; out_b = next(it)[...]
        ln1_w = next(it)[...]; ln1_b = next(it)[...]
        ff1_w = next(it)[...]; ff1_b = next(it)[...]
        ff2_w = next(it)[...]; ff2_b = next(it)[...]
        ln2_w = next(it)[...]; ln2_b = next(it)[...]

        qkv = jnp.dot(tok, in_w, preferred_element_type=jnp.float32) + in_b
        q = qkv[:, 0:d]
        k = qkv[:, d:2 * d]
        v = qkv[:, 2 * d:3 * d]
        heads = []
        for hh in range(H):                # static unroll; tiny head dims
            qh = q[:, hh * Dh:(hh + 1) * Dh]
            kh = k[:, hh * Dh:(hh + 1) * Dh]
            vh = v[:, hh * Dh:(hh + 1) * Dh]
            s = lax.dot_general(qh, kh, (((1,), (1,)), ((), ())),
                                preferred_element_type=jnp.float32) * scale + bias
            s = s - jnp.max(s, axis=-1, keepdims=True)
            p = jnp.exp(s)
            p = p / jnp.sum(p, axis=-1, keepdims=True)
            heads.append(jnp.dot(p, vh, preferred_element_type=jnp.float32))
        attn = jnp.concatenate(heads, axis=-1)                 # (B*T, d)
        attn = jnp.dot(attn, out_w, preferred_element_type=jnp.float32) + out_b
        tok = _ln(tok + attn, ln1_w, ln1_b)
        ff = jnp.dot(tok, ff1_w, preferred_element_type=jnp.float32) + ff1_b
        ff = _gelu_exact(ff)
        ff = jnp.dot(ff, ff2_w, preferred_element_type=jnp.float32) + ff2_b
        tok = _ln(tok + ff, ln2_w, ln2_b)

    # TODO(synk): BertEncoder._process_outputs also evaluates `predicter` whose result is
    # discarded in the inference path; it is skipped here.

    # ---------------- tail: node extraction, u_mlp, decoder, pooling, stats ----------------
    Gt = next(it)[...]                     # (N, B*T) node-embedding extraction
    P = next(it)[...]                      # (B, N) mean-pool matrix
    u1w = next(it)[...]; u1b = next(it)[...]
    u2w = next(it)[...]; u2b = next(it)[...]
    f1w = next(it)[...]; f1b = next(it)[...]
    f2w = next(it)[...]; f2b = next(it)[...]
    stw = next(it)[...]; stb = next(it)[...]

    node = jnp.dot(Gt, tok, preferred_element_type=jnp.float32)             # (N, d)
    u = jnp.maximum(jnp.dot(node, u1w, preferred_element_type=jnp.float32) + u1b, 0.0)
    u = jnp.dot(u, u2w, preferred_element_type=jnp.float32) + u2b
    xr = _leaky(jnp.dot(u, f1w, preferred_element_type=jnp.float32) + f1b)
    xrec_ref[...] = jnp.dot(xr, f2w, preferred_element_type=jnp.float32) + f2b
    pooled = jnp.dot(P, u, preferred_element_type=jnp.float32)              # mean pool
    stats_ref[...] = jnp.dot(pooled, stw, preferred_element_type=jnp.float32) + stb


# ---------------------------------------------------------------------------
# Single-jit device forward: exactly ONE pallas_call
# ---------------------------------------------------------------------------
@partial(jax.jit, static_argnames=("nhead",))
def forward_device(prep, static, x, *, nhead):
    d = prep["cls_vec"].shape[1]
    H = nhead
    Dh = d // H
    num_features = prep["fc2_w"].shape[1]
    N = x.shape[0]
    B = static["P"].shape[0]

    inputs = [x, static["A_norm"]]
    flags = []
    for blk in prep["blocks"]:
        inputs += [blk["conv_w"], blk["conv_b"]]
        if "short_w" in blk:
            inputs += [blk["short_w"], blk["short_b"]]
            flags.append(True)
        else:
            flags.append(False)
    inputs += [static["spl_all"], static["le_all"],
               prep["wsp_w"], prep["wsp_b"], prep["le_w"], prep["le_b"],
               static["G"], static["cls_ind"], prep["cls_vec"],
               static["attn_bias"]]
    for lyr in prep["layers"]:
        inputs += [lyr["in_w"], lyr["in_b"], lyr["out_w"], lyr["out_b"],
                   lyr["ln1_w"], lyr["ln1_b"], lyr["ff1_w"], lyr["ff1_b"],
                   lyr["ff2_w"], lyr["ff2_b"], lyr["ln2_w"], lyr["ln2_b"]]
    inputs += [static["Gt"], static["P"],
               prep["u1_w"], prep["u1_b"], prep["u2_w"], prep["u2_b"],
               prep["fc1_w"], prep["fc1_b"], prep["fc2_w"], prep["fc2_b"],
               prep["st_w"], prep["st_b"]]

    kernel = partial(_fused_forward_kernel,
                     n_blocks=len(prep["blocks"]), shortcut_flags=tuple(flags),
                     n_layers=len(prep["layers"]), H=H, Dh=Dh)
    return pl.pallas_call(
        kernel,
        out_shape=(jax.ShapeDtypeStruct((N, num_features), jnp.float32),
                   jax.ShapeDtypeStruct((B, 5), jnp.float32)),
        in_specs=[_vmem() for _ in inputs],
        out_specs=(_vmem(), _vmem()),
    )(*inputs)


# ---------------------------------------------------------------------------
# Host-side (static) graph preprocessing — mirrors PyG / networkx / scipy calls
# ---------------------------------------------------------------------------
def dense_gcn_norm(edge_index, num_nodes):
    """Dense equivalent of ResidualBlock's manual norm followed by GCNConv's gcn_norm."""
    A = np.zeros((num_nodes, num_nodes), np.float32)
    A[edge_index[1], edge_index[0]] = 1.0                  # out[target] += x[source]
    A1 = A + np.eye(num_nodes, dtype=np.float32)           # add_self_loops(fill=1)
    d1 = A1.sum(axis=1)
    d1i = np.where(d1 > 0, d1 ** -0.5, 0.0)
    W1 = A1 * d1i[:, None] * d1i[None, :]                  # norm passed as edge_weight
    d2 = W1.sum(axis=1)                                    # gcn_norm weighted degree
    d2i = np.where(d2 > 0, d2 ** -0.5, 0.0)
    return (W1 * d2i[:, None] * d2i[None, :]).astype(np.float32)


def wsp_matrix(adj_local, num_nodes, max_nodes):
    """All-pairs shortest path lengths (unreachable -> max_nodes), padded to max_nodes."""
    dist = np.full((num_nodes, num_nodes), np.inf)
    np.fill_diagonal(dist, 0.0)
    dist[adj_local > 0] = 1.0
    for k in range(num_nodes):                             # Floyd–Warshall (tiny graphs)
        dist = np.minimum(dist, dist[:, k:k + 1] + dist[k:k + 1, :])
    spl = np.zeros((num_nodes, max_nodes), np.float32)
    for i in range(num_nodes):
        for j in range(min(num_nodes, max_nodes)):
            if i != j:
                spl[i, j] = dist[i, j] if np.isfinite(dist[i, j]) else float(max_nodes)
    return spl


def laplacian_eig(adj_local, num_nodes, max_nodes):
    """Eigenvectors of the sym-normalized Laplacian, padded to max_nodes columns."""
    deg = adj_local.sum(axis=1)
    di = np.where(deg > 0, deg ** -0.5, 0.0)
    L = np.eye(num_nodes, dtype=np.float64) - di[:, None] * adj_local * di[None, :]
    _, vecs = np.linalg.eigh(L)
    out = np.zeros((num_nodes, max_nodes), np.float32)
    out[:, :num_nodes] = vecs.astype(np.float32)
    return out


def host_preprocess(edge_index_np, batch_np, num_graphs, max_nodes):
    N = batch_np.shape[0]
    node_counts = [int((batch_np == i).sum()) for i in range(num_graphs)]
    starts = [0]
    for n in node_counts:
        starts.append(starts[-1] + n)

    A_norm = dense_gcn_norm(edge_index_np, N)

    A_full = np.zeros((N, N), np.float32)
    A_full[edge_index_np[1], edge_index_np[0]] = 1.0
    A_full = np.maximum(A_full, A_full.T)

    spl_all = np.zeros((N, max_nodes), np.float32)
    le_all = np.zeros((N, max_nodes), np.float32)
    for i in range(num_graphs):
        s, e = starts[i], starts[i + 1]
        A_loc = A_full[s:e, s:e]
        spl_all[s:e] = wsp_matrix(A_loc, node_counts[i], max_nodes)
        le_all[s:e] = laplacian_eig(A_loc, node_counts[i], max_nodes)

    max_nib = max(node_counts)
    T = max_nib + 1
    BT = num_graphs * T
    G = np.zeros((BT, N), np.float32)        # token assembly (per-graph placement + pad)
    cls_ind = np.zeros((BT, 1), np.float32)  # CLS row indicator
    P = np.zeros((num_graphs, N), np.float32)
    attn_bias = np.full((BT, BT), -1e9, np.float32)   # block-diag + key-padding bias
    for i in range(num_graphs):
        n = node_counts[i]
        cls_ind[i * T, 0] = 1.0
        for j in range(n):
            G[i * T + 1 + j, starts[i] + j] = 1.0
        P[i, starts[i]:starts[i + 1]] = 1.0 / n
        cols_ok = np.zeros(BT, bool)
        cols_ok[i * T:i * T + 1 + n] = True           # CLS + real nodes of graph i
        attn_bias[i * T:(i + 1) * T, cols_ok] = 0.0
    Gt = np.ascontiguousarray(G.T)           # node-embedding extraction (drop CLS + pad)

    to_j = lambda a: jnp.asarray(a, jnp.float32)
    return dict(A_norm=to_j(A_norm), spl_all=to_j(spl_all), le_all=to_j(le_all),
                G=to_j(G), cls_ind=to_j(cls_ind), Gt=to_j(Gt), P=to_j(P),
                attn_bias=to_j(attn_bias))


# ---------------------------------------------------------------------------
# Parameters (deterministic synthetic init — shapes follow the module __init__)
# ---------------------------------------------------------------------------
def init_params(key, num_features, hidden_dims, max_nodes, nhead, num_layers):
    keys = iter(jax.random.split(key, 256))

    def xavier(shape):
        fan_in, fan_out = shape
        a = math.sqrt(6.0 / (fan_in + fan_out))
        return jax.random.uniform(next(keys), shape, jnp.float32, -a, a)

    d = hidden_dims[-1]
    p = {}
    dims = [num_features] + list(hidden_dims)
    blocks = []
    for i in range(len(dims) - 1):
        cin, cout = dims[i], dims[i + 1]
        blk = {
            "conv_w": xavier((cin, cout)),
            "conv_b": jnp.zeros((cout,), jnp.float32),
            "bn_w": jnp.ones((cout,), jnp.float32),
            "bn_b": jnp.zeros((cout,), jnp.float32),
        }
        if cin != cout:
            blk["short_w"] = xavier((cin, cout))
            blk["short_b"] = jnp.zeros((cout,), jnp.float32)
        blocks.append(blk)
    p["blocks"] = blocks

    p["wsp_w"] = xavier((max_nodes, d // 2)); p["wsp_b"] = jnp.zeros((d // 2,), jnp.float32)
    p["le_w"] = xavier((max_nodes, d // 2));  p["le_b"] = jnp.zeros((d // 2,), jnp.float32)
    p["cls"] = 0.02 * jax.random.normal(next(keys), (1, 1, d), jnp.float32)

    layers = []
    for _ in range(num_layers):
        layers.append({
            "in_w": xavier((d, 3 * d)), "in_b": jnp.zeros((3 * d,), jnp.float32),
            "out_w": xavier((d, d)),    "out_b": jnp.zeros((d,), jnp.float32),
            "ln1_w": jnp.ones((d,), jnp.float32), "ln1_b": jnp.zeros((d,), jnp.float32),
            "ff1_w": xavier((d, 4 * d)), "ff1_b": jnp.zeros((4 * d,), jnp.float32),
            "ff2_w": xavier((4 * d, d)), "ff2_b": jnp.zeros((d,), jnp.float32),
            "ln2_w": jnp.ones((d,), jnp.float32), "ln2_b": jnp.zeros((d,), jnp.float32),
        })
    p["layers"] = layers

    p["u1_w"] = xavier((d, d)); p["u1_b"] = jnp.zeros((d,), jnp.float32)
    p["u2_w"] = xavier((d, d)); p["u2_b"] = jnp.zeros((d,), jnp.float32)
    p["fc1_w"] = xavier((d, d // 2)); p["fc1_b"] = jnp.zeros((d // 2,), jnp.float32)
    p["fc2_w"] = xavier((d // 2, num_features)); p["fc2_b"] = jnp.zeros((num_features,), jnp.float32)
    p["st_w"] = xavier((d, 5)); p["st_b"] = jnp.zeros((5,), jnp.float32)
    return p


def prepare_params(p):
    """Fold eval-mode BatchNorm (mean=0, var=1, eps=1e-5) into conv weights, reshape all
    1-D biases/affines to (1, C), cast everything to f32 once."""
    f32 = lambda a: jnp.asarray(a, jnp.float32)
    row = lambda a: f32(a).reshape(1, -1)
    bn_s = 1.0 / math.sqrt(1.0 + 1e-5)

    blocks = []
    for blk in p["blocks"]:
        scale = f32(blk["bn_w"]) * bn_s
        nb = {"conv_w": f32(blk["conv_w"]) * scale[None, :],
              "conv_b": (f32(blk["conv_b"]) * scale + f32(blk["bn_b"])).reshape(1, -1)}
        if "short_w" in blk:
            nb["short_w"] = f32(blk["short_w"])
            nb["short_b"] = row(blk["short_b"])
        blocks.append(nb)

    layers = []
    for lyr in p["layers"]:
        layers.append({k: (row(v) if v.ndim == 1 else f32(v)) for k, v in lyr.items()})

    return {
        "blocks": blocks, "layers": layers,
        "wsp_w": f32(p["wsp_w"]), "wsp_b": row(p["wsp_b"]),
        "le_w": f32(p["le_w"]), "le_b": row(p["le_b"]),
        "cls_vec": f32(p["cls"]).reshape(1, -1),
        "u1_w": f32(p["u1_w"]), "u1_b": row(p["u1_b"]),
        "u2_w": f32(p["u2_w"]), "u2_b": row(p["u2_b"]),
        "fc1_w": f32(p["fc1_w"]), "fc1_b": row(p["fc1_b"]),
        "fc2_w": f32(p["fc2_w"]), "fc2_b": row(p["fc2_b"]),
        "st_w": f32(p["st_w"]), "st_b": row(p["st_b"]),
    }


# ---------------------------------------------------------------------------
if __name__ == "__main__":
    num_features = 4
    hidden_dims = [16, 32]
    max_nodes = 16
    nhead = 4
    num_layers = 2
    num_graphs = 2

    # graph 0: 4-cycle over nodes 0..3 ; graph 1: path + chord over nodes 4..7
    und_edges = [(0, 1), (1, 2), (2, 3), (3, 0), (4, 5), (5, 6), (6, 7), (4, 6)]
    src = [a for a, b in und_edges] + [b for a, b in und_edges]
    dst = [b for a, b in und_edges] + [a for a, b in und_edges]
    edge_index = np.array([src, dst], dtype=np.int64)           # (2, 16)
    batch = np.array([0, 0, 0, 0, 1, 1, 1, 1], dtype=np.int64)   # (8,)

    key = jax.random.PRNGKey(0)
    kx, kp = jax.random.split(key)
    x = jax.random.normal(kx, (8, num_features), jnp.float32)

    params = init_params(kp, num_features, hidden_dims, max_nodes, nhead, num_layers)
    prep = prepare_params(params)
    static = host_preprocess(edge_index, batch, num_graphs, max_nodes)

    x_recon, stats_pred = forward_device(prep, static, x, nhead=nhead)
    jax.block_until_ready((x_recon, stats_pred))
    assert x_recon.shape == (8, num_features)
    assert stats_pred.shape == (num_graphs, 5)
    print("KERNEL_OK")
</pallas_src>

<mosaic_0001>
module attributes {stable_mosaic.version = 11 : i64} {
  func.func @_fused_forward_kernel(%arg0: memref<8x4xf32, #tpu.memory_space<vmem>>, %arg1: memref<8x8xf32, #tpu.memory_space<vmem>>, %arg2: memref<4x16xf32, #tpu.memory_space<vmem>>, %arg3: memref<1x16xf32, #tpu.memory_space<vmem>>, %arg4: memref<4x16xf32, #tpu.memory_space<vmem>>, %arg5: memref<1x16xf32, #tpu.memory_space<vmem>>, %arg6: memref<16x32xf32, #tpu.memory_space<vmem>>, %arg7: memref<1x32xf32, #tpu.memory_space<vmem>>, %arg8: memref<16x32xf32, #tpu.memory_space<vmem>>, %arg9: memref<1x32xf32, #tpu.memory_space<vmem>>, %arg10: memref<8x16xf32, #tpu.memory_space<vmem>>, %arg11: memref<8x16xf32, #tpu.memory_space<vmem>>, %arg12: memref<16x16xf32, #tpu.memory_space<vmem>>, %arg13: memref<1x16xf32, #tpu.memory_space<vmem>>, %arg14: memref<16x16xf32, #tpu.memory_space<vmem>>, %arg15: memref<1x16xf32, #tpu.memory_space<vmem>>, %arg16: memref<10x8xf32, #tpu.memory_space<vmem>>, %arg17: memref<10x1xf32, #tpu.memory_space<vmem>>, %arg18: memref<1x32xf32, #tpu.memory_space<vmem>>, %arg19: memref<10x10xf32, #tpu.memory_space<vmem>>, %arg20: memref<32x96xf32, #tpu.memory_space<vmem>>, %arg21: memref<1x96xf32, #tpu.memory_space<vmem>>, %arg22: memref<32x32xf32, #tpu.memory_space<vmem>>, %arg23: memref<1x32xf32, #tpu.memory_space<vmem>>, %arg24: memref<1x32xf32, #tpu.memory_space<vmem>>, %arg25: memref<1x32xf32, #tpu.memory_space<vmem>>, %arg26: memref<32x128xf32, #tpu.memory_space<vmem>>, %arg27: memref<1x128xf32, #tpu.memory_space<vmem>>, %arg28: memref<128x32xf32, #tpu.memory_space<vmem>>, %arg29: memref<1x32xf32, #tpu.memory_space<vmem>>, %arg30: memref<1x32xf32, #tpu.memory_space<vmem>>, %arg31: memref<1x32xf32, #tpu.memory_space<vmem>>, %arg32: memref<32x96xf32, #tpu.memory_space<vmem>>, %arg33: memref<1x96xf32, #tpu.memory_space<vmem>>, %arg34: memref<32x32xf32, #tpu.memory_space<vmem>>, %arg35: memref<1x32xf32, #tpu.memory_space<vmem>>, %arg36: memref<1x32xf32, #tpu.memory_space<vmem>>, %arg37: memref<1x32xf32, #tpu.memory_space<vmem>>, %arg38: memref<32x128xf32, #tpu.memory_space<vmem>>, %arg39: memref<1x128xf32, #tpu.memory_space<vmem>>, %arg40: memref<128x32xf32, #tpu.memory_space<vmem>>, %arg41: memref<1x32xf32, #tpu.memory_space<vmem>>, %arg42: memref<1x32xf32, #tpu.memory_space<vmem>>, %arg43: memref<1x32xf32, #tpu.memory_space<vmem>>, %arg44: memref<8x10xf32, #tpu.memory_space<vmem>>, %arg45: memref<2x8xf32, #tpu.memory_space<vmem>>, %arg46: memref<32x32xf32, #tpu.memory_space<vmem>>, %arg47: memref<1x32xf32, #tpu.memory_space<vmem>>, %arg48: memref<32x32xf32, #tpu.memory_space<vmem>>, %arg49: memref<1x32xf32, #tpu.memory_space<vmem>>, %arg50: memref<32x16xf32, #tpu.memory_space<vmem>>, %arg51: memref<1x16xf32, #tpu.memory_space<vmem>>, %arg52: memref<16x4xf32, #tpu.memory_space<vmem>>, %arg53: memref<1x4xf32, #tpu.memory_space<vmem>>, %arg54: memref<32x5xf32, #tpu.memory_space<vmem>>, %arg55: memref<1x5xf32, #tpu.memory_space<vmem>>, %arg56: memref<8x4xf32, #tpu.memory_space<vmem>>, %arg57: memref<2x5xf32, #tpu.memory_space<vmem>>) attributes {dimension_semantics = [], scalar_prefetch = 0 : i64, scratch_operands = 0 : i64, tpu.core_type = #tpu.core_type<tc>} {
    %c0 = arith.constant 0 : index
    %c0_0 = arith.constant 0 : index
    %0 = vector.load %arg0[%c0, %c0_0] : memref<8x4xf32, #tpu.memory_space<vmem>>, vector<8x4xf32>
    %c0_1 = arith.constant 0 : index
    %c0_2 = arith.constant 0 : index
    %1 = vector.load %arg1[%c0_1, %c0_2] : memref<8x8xf32, #tpu.memory_space<vmem>>, vector<8x8xf32>
    %c0_3 = arith.constant 0 : index
    %c0_4 = arith.constant 0 : index
    %2 = vector.load %arg2[%c0_3, %c0_4] : memref<4x16xf32, #tpu.memory_space<vmem>>, vector<4x16xf32>
    %c0_5 = arith.constant 0 : index
    %c0_6 = arith.constant 0 : index
    %3 = vector.load %arg3[%c0_5, %c0_6] : memref<1x16xf32, #tpu.memory_space<vmem>>, vector<1x16xf32>
    %c0_7 = arith.constant 0 : index
    %c0_8 = arith.constant 0 : index
    %4 = vector.load %arg4[%c0_7, %c0_8] : memref<4x16xf32, #tpu.memory_space<vmem>>, vector<4x16xf32>
    %c0_9 = arith.constant 0 : index
    %c0_10 = arith.constant 0 : index
    %5 = vector.load %arg5[%c0_9, %c0_10] : memref<1x16xf32, #tpu.memory_space<vmem>>, vector<1x16xf32>
    %cst = arith.constant dense<0.000000e+00> : vector<8x16xf32>
    %6 = tpu.matmul %0, %4, %cst {dimension_numbers = #tpu.dot_dimension_numbers<[1], [0], [0], [1], [0, 0, 1, 1], [], []>} : vector<8x4xf32>, vector<4x16xf32>, vector<8x16xf32> -> vector<8x16xf32>
    %7 = vector.broadcast %5 : vector<1x16xf32> to vector<8x16xf32>
    %8 = arith.addf %6, %7 : vector<8x16xf32>
    %cst_11 = arith.constant dense<0.000000e+00> : vector<8x16xf32>
    %9 = tpu.matmul %0, %2, %cst_11 {dimension_numbers = #tpu.dot_dimension_numbers<[1], [0], [0], [1], [0, 0, 1, 1], [], []>} : vector<8x4xf32>, vector<4x16xf32>, vector<8x16xf32> -> vector<8x16xf32>
    %cst_12 = arith.constant dense<0.000000e+00> : vector<8x16xf32>
    %10 = tpu.matmul %1, %9, %cst_12 {dimension_numbers = #tpu.dot_dimension_numbers<[1], [0], [0], [1], [0, 0, 1, 1], [], []>} : vector<8x8xf32>, vector<8x16xf32>, vector<8x16xf32> -> vector<8x16xf32>
    %11 = vector.broadcast %3 : vector<1x16xf32> to vector<8x16xf32>
    %12 = arith.addf %10, %11 : vector<8x16xf32>
    %cst_13 = arith.constant 0.000000e+00 : f32
    %13 = vector.broadcast %cst_13 : f32 to vector<8x16xf32>
    %14 = arith.cmpf ogt, %12, %13 : vector<8x16xf32>
    %cst_14 = arith.constant 1.000000e-01 : f32
    %15 = vector.broadcast %cst_14 : f32 to vector<8x16xf32>
    %16 = arith.mulf %15, %12 : vector<8x16xf32>
    %17 = arith.select %14, %12, %16 : vector<8x16xi1>, vector<8x16xf32>
    %18 = arith.addf %17, %8 : vector<8x16xf32>
    %cst_15 = arith.constant 0.000000e+00 : f32
    %19 = vector.broadcast %cst_15 : f32 to vector<8x16xf32>
    %20 = arith.cmpf ogt, %18, %19 : vector<8x16xf32>
    %cst_16 = arith.constant 1.000000e-01 : f32
    %21 = vector.broadcast %cst_16 : f32 to vector<8x16xf32>
    %22 = arith.mulf %21, %18 : vector<8x16xf32>
    %23 = arith.select %20, %18, %22 : vector<8x16xi1>, vector<8x16xf32>
    %c0_17 = arith.constant 0 : index
    %c0_18 = arith.constant 0 : index
    %24 = vector.load %arg6[%c0_17, %c0_18] : memref<16x32xf32, #tpu.memory_space<vmem>>, vector<16x32xf32>
    %c0_19 = arith.constant 0 : index
    %c0_20 = arith.constant 0 : index
    %25 = vector.load %arg7[%c0_19, %c0_20] : memref<1x32xf32, #tpu.memory_space<vmem>>, vector<1x32xf32>
    %c0_21 = arith.constant 0 : index
    %c0_22 = arith.constant 0 : index
    %26 = vector.load %arg8[%c0_21, %c0_22] : memref<16x32xf32, #tpu.memory_space<vmem>>, vector<16x32xf32>
    %c0_23 = arith.constant 0 : index
    %c0_24 = arith.constant 0 : index
    %27 = vector.load %arg9[%c0_23, %c0_24] : memref<1x32xf32, #tpu.memory_space<vmem>>, vector<1x32xf32>
    %cst_25 = arith.constant dense<0.000000e+00> : vector<8x32xf32>
    %28 = tpu.matmul %23, %26, %cst_25 {dimension_numbers = #tpu.dot_dimension_numbers<[1], [0], [0], [1], [0, 0, 1, 1], [], []>} : vector<8x16xf32>, vector<16x32xf32>, vector<8x32xf32> -> vector<8x32xf32>
    %29 = vector.broadcast %27 : vector<1x32xf32> to vector<8x32xf32>
    %30 = arith.addf %28, %29 : vector<8x32xf32>
    %cst_26 = arith.constant dense<0.000000e+00> : vector<8x32xf32>
    %31 = tpu.matmul %23, %24, %cst_26 {dimension_numbers = #tpu.dot_dimension_numbers<[1], [0], [0], [1], [0, 0, 1, 1], [], []>} : vector<8x16xf32>, vector<16x32xf32>, vector<8x32xf32> -> vector<8x32xf32>
    %cst_27 = arith.constant dense<0.000000e+00> : vector<8x32xf32>
    %32 = tpu.matmul %1, %31, %cst_27 {dimension_numbers = #tpu.dot_dimension_numbers<[1], [0], [0], [1], [0, 0, 1, 1], [], []>} : vector<8x8xf32>, vector<8x32xf32>, vector<8x32xf32> -> vector<8x32xf32>
    %33 = vector.broadcast %25 : vector<1x32xf32> to vector<8x32xf32>
    %34 = arith.addf %32, %33 : vector<8x32xf32>
    %cst_28 = arith.constant 0.000000e+00 : f32
    %35 = vector.broadcast %cst_28 : f32 to vector<8x32xf32>
    %36 = arith.cmpf ogt, %34, %35 : vector<8x32xf32>
    %cst_29 = arith.constant 1.000000e-01 : f32
    %37 = vector.broadcast %cst_29 : f32 to vector<8x32xf32>
    %38 = arith.mulf %37, %34 : vector<8x32xf32>
    %39 = arith.select %36, %34, %38 : vector<8x32xi1>, vector<8x32xf32>
    %40 = arith.addf %39, %30 : vector<8x32xf32>
    %cst_30 = arith.constant 0.000000e+00 : f32
    %41 = vector.broadcast %cst_30 : f32 to vector<8x32xf32>
    %42 = arith.cmpf ogt, %40, %41 : vector<8x32xf32>
    %cst_31 = arith.constant 1.000000e-01 : f32
    %43 = vector.broadcast %cst_31 : f32 to vector<8x32xf32>
    %44 = arith.mulf %43, %40 : vector<8x32xf32>
    %45 = arith.select %42, %40, %44 : vector<8x32xi1>, vector<8x32xf32>
    %46 = arith.mulf %45, %45 : vector<8x32xf32>
    %cst_32 = arith.constant dense<0.000000e+00> : vector<8xf32>
    %47 = vector.multi_reduction <add>, %46, %cst_32 [1] : vector<8x32xf32> to vector<8xf32>
    %48 = vector.shape_cast %47 : vector<8xf32> to vector<8x1xf32>
    %49 = math.sqrt %48 : vector<8x1xf32>
    %cst_33 = arith.constant 9.99999996E-13 : f32
    %50 = vector.broadcast %cst_33 : f32 to vector<8x1xf32>
    %51 = arith.maximumf %49, %50 : vector<8x1xf32>
    %52 = vector.broadcast %51 : vector<8x1xf32> to vector<8x32xf32>
    %53 = arith.divf %45, %52 : vector<8x32xf32>
    %c0_34 = arith.constant 0 : index
    %c0_35 = arith.constant 0 : index
    %54 = vector.load %arg10[%c0_34, %c0_35] : memref<8x16xf32, #tpu.memory_space<vmem>>, vector<8x16xf32>
    %c0_36 = arith.constant 0 : index
    %c0_37 = arith.constant 0 : index
    %55 = vector.load %arg11[%c0_36, %c0_37] : memref<8x16xf32, #tpu.memory_space<vmem>>, vector<8x16xf32>
    %c0_38 = arith.constant 0 : index
    %c0_39 = arith.constant 0 : index
    %56 = vector.load %arg12[%c0_38, %c0_39] : memref<16x16xf32, #tpu.memory_space<vmem>>, vector<16x16xf32>
    %c0_40 = arith.constant 0 : index
    %c0_41 = arith.constant 0 : index
    %57 = vector.load %arg13[%c0_40, %c0_41] : memref<1x16xf32, #tpu.memory_space<vmem>>, vector<1x16xf32>
    %c0_42 = arith.constant 0 : index
    %c0_43 = arith.constant 0 : index
    %58 = vector.load %arg14[%c0_42, %c0_43] : memref<16x16xf32, #tpu.memory_space<vmem>>, vector<16x16xf32>
    %c0_44 = arith.constant 0 : index
    %c0_45 = arith.constant 0 : index
    %59 = vector.load %arg15[%c0_44, %c0_45] : memref<1x16xf32, #tpu.memory_space<vmem>>, vector<1x16xf32>
    %cst_46 = arith.constant dense<0.000000e+00> : vector<8x16xf32>
    %60 = tpu.matmul %54, %56, %cst_46 {dimension_numbers = #tpu.dot_dimension_numbers<[1], [0], [0], [1], [0, 0, 1, 1], [], []>} : vector<8x16xf32>, vector<16x16xf32>, vector<8x16xf32> -> vector<8x16xf32>
    %61 = vector.broadcast %57 : vector<1x16xf32> to vector<8x16xf32>
    %62 = arith.addf %60, %61 : vector<8x16xf32>
    %cst_47 = arith.constant dense<0.000000e+00> : vector<8x16xf32>
    %63 = tpu.matmul %55, %58, %cst_47 {dimension_numbers = #tpu.dot_dimension_numbers<[1], [0], [0], [1], [0, 0, 1, 1], [], []>} : vector<8x16xf32>, vector<16x16xf32>, vector<8x16xf32> -> vector<8x16xf32>
    %64 = vector.broadcast %59 : vector<1x16xf32> to vector<8x16xf32>
    %65 = arith.addf %63, %64 : vector<8x16xf32>
    %66 = tpu.concatenate %62, %65 in 1 : vector<8x16xf32>, vector<8x16xf32> -> vector<8x32xf32>
    %67 = arith.addf %53, %66 : vector<8x32xf32>
    %c0_48 = arith.constant 0 : index
    %c0_49 = arith.constant 0 : index
    %68 = vector.load %arg16[%c0_48, %c0_49] : memref<10x8xf32, #tpu.memory_space<vmem>>, vector<10x8xf32>
    %c0_50 = arith.constant 0 : index
    %c0_51 = arith.constant 0 : index
    %69 = vector.load %arg17[%c0_50, %c0_51] : memref<10x1xf32, #tpu.memory_space<vmem>>, vector<10x1xf32>
    %c0_52 = arith.constant 0 : index
    %c0_53 = arith.constant 0 : index
    %70 = vector.load %arg18[%c0_52, %c0_53] : memref<1x32xf32, #tpu.memory_space<vmem>>, vector<1x32xf32>
    %cst_54 = arith.constant dense<0.000000e+00> : vector<10x32xf32>
    %71 = tpu.matmul %68, %67, %cst_54 {dimension_numbers = #tpu.dot_dimension_numbers<[1], [0], [0], [1], [0, 0, 1, 1], [], []>} : vector<10x8xf32>, vector<8x32xf32>, vector<10x32xf32> -> vector<10x32xf32>
    %72 = vector.broadcast %69 : vector<10x1xf32> to vector<10x32xf32>
    %73 = vector.broadcast %70 : vector<1x32xf32> to vector<10x32xf32>
    %74 = arith.mulf %72, %73 : vector<10x32xf32>
    %75 = arith.addf %71, %74 : vector<10x32xf32>
    %c0_55 = arith.constant 0 : index
    %c0_56 = arith.constant 0 : index
    %76 = vector.load %arg19[%c0_55, %c0_56] : memref<10x10xf32, #tpu.memory_space<vmem>>, vector<10x10xf32>
    %c0_57 = arith.constant 0 : index
    %c0_58 = arith.constant 0 : index
    %77 = vector.load %arg20[%c0_57, %c0_58] : memref<32x96xf32, #tpu.memory_space<vmem>>, vector<32x96xf32>
    %c0_59 = arith.constant 0 : index
    %c0_60 = arith.constant 0 : index
    %78 = vector.load %arg21[%c0_59, %c0_60] : memref<1x96xf32, #tpu.memory_space<vmem>>, vector<1x96xf32>
    %c0_61 = arith.constant 0 : index
    %c0_62 = arith.constant 0 : index
    %79 = vector.load %arg22[%c0_61, %c0_62] : memref<32x32xf32, #tpu.memory_space<vmem>>, vector<32x32xf32>
    %c0_63 = arith.constant 0 : index
    %c0_64 = arith.constant 0 : index
    %80 = vector.load %arg23[%c0_63, %c0_64] : memref<1x32xf32, #tpu.memory_space<vmem>>, vector<1x32xf32>
    %c0_65 = arith.constant 0 : index
    %c0_66 = arith.constant 0 : index
    %81 = vector.load %arg24[%c0_65, %c0_66] : memref<1x32xf32, #tpu.memory_space<vmem>>, vector<1x32xf32>
    %c0_67 = arith.constant 0 : index
    %c0_68 = arith.constant 0 : index
    %82 = vector.load %arg25[%c0_67, %c0_68] : memref<1x32xf32, #tpu.memory_space<vmem>>, vector<1x32xf32>
    %c0_69 = arith.constant 0 : index
    %c0_70 = arith.constant 0 : index
    %83 = vector.load %arg26[%c0_69, %c0_70] : memref<32x128xf32, #tpu.memory_space<vmem>>, vector<32x128xf32>
    %c0_71 = arith.constant 0 : index
    %c0_72 = arith.constant 0 : index
    %84 = vector.load %arg27[%c0_71, %c0_72] : memref<1x128xf32, #tpu.memory_space<vmem>>, vector<1x128xf32>
    %c0_73 = arith.constant 0 : index
    %c0_74 = arith.constant 0 : index
    %85 = vector.load %arg28[%c0_73, %c0_74] : memref<128x32xf32, #tpu.memory_space<vmem>>, vector<128x32xf32>
    %c0_75 = arith.constant 0 : index
    %c0_76 = arith.constant 0 : index
    %86 = vector.load %arg29[%c0_75, %c0_76] : memref<1x32xf32, #tpu.memory_space<vmem>>, vector<1x32xf32>
    %c0_77 = arith.constant 0 : index
    %c0_78 = arith.constant 0 : index
    %87 = vector.load %arg30[%c0_77, %c0_78] : memref<1x32xf32, #tpu.memory_space<vmem>>, vector<1x32xf32>
    %c0_79 = arith.constant 0 : index
    %c0_80 = arith.constant 0 : index
    %88 = vector.load %arg31[%c0_79, %c0_80] : memref<1x32xf32, #tpu.memory_space<vmem>>, vector<1x32xf32>
    %cst_81 = arith.constant dense<0.000000e+00> : vector<10x96xf32>
    %89 = tpu.matmul %75, %77, %cst_81 {dimension_numbers = #tpu.dot_dimension_numbers<[1], [0], [0], [1], [0, 0, 1, 1], [], []>} : vector<10x32xf32>, vector<32x96xf32>, vector<10x96xf32> -> vector<10x96xf32>
    %90 = vector.broadcast %78 : vector<1x96xf32> to vector<10x96xf32>
    %91 = arith.addf %89, %90 : vector<10x96xf32>
    %92 = vector.extract_strided_slice %91 {offsets = [0, 0], sizes = [10, 32], strides = [1, 1]} : vector<10x96xf32> to vector<10x32xf32>
    %93 = vector.extract_strided_slice %91 {offsets = [0, 32], sizes = [10, 32], strides = [1, 1]} : vector<10x96xf32> to vector<10x32xf32>
    %94 = vector.extract_strided_slice %91 {offsets = [0, 64], sizes = [10, 32], strides = [1, 1]} : vector<10x96xf32> to vector<10x32xf32>
    %95 = vector.extract_strided_slice %92 {offsets = [0, 0], sizes = [10, 8], strides = [1, 1]} : vector<10x32xf32> to vector<10x8xf32>
    %96 = vector.extract_strided_slice %93 {offsets = [0, 0], sizes = [10, 8], strides = [1, 1]} : vector<10x32xf32> to vector<10x8xf32>
    %97 = vector.extract_strided_slice %94 {offsets = [0, 0], sizes = [10, 8], strides = [1, 1]} : vector<10x32xf32> to vector<10x8xf32>
    %cst_82 = arith.constant dense<0.000000e+00> : vector<10x10xf32>
    %98 = tpu.matmul %95, %96, %cst_82 {dimension_numbers = #tpu.dot_dimension_numbers<[1], [1], [0], [0], [0, 0, 1, 0], [], []>} : vector<10x8xf32>, vector<10x8xf32>, vector<10x10xf32> -> vector<10x10xf32>
    %cst_83 = arith.constant 0.353553385 : f32
    %99 = vector.broadcast %cst_83 : f32 to vector<10x10xf32>
    %100 = arith.mulf %98, %99 : vector<10x10xf32>
    %101 = arith.addf %100, %76 : vector<10x10xf32>
    %cst_84 = arith.constant dense<0xFF800000> : vector<10xf32>
    %102 = vector.multi_reduction <maximumf>, %101, %cst_84 [1] : vector<10x10xf32> to vector<10xf32>
    %103 = vector.shape_cast %102 : vector<10xf32> to vector<10x1xf32>
    %104 = vector.broadcast %103 : vector<10x1xf32> to vector<10x10xf32>
    %105 = arith.subf %101, %104 : vector<10x10xf32>
    %106 = math.exp %105 : vector<10x10xf32>
    %cst_85 = arith.constant dense<0.000000e+00> : vector<10xf32>
    %107 = vector.multi_reduction <add>, %106, %cst_85 [1] : vector<10x10xf32> to vector<10xf32>
    %108 = vector.shape_cast %107 : vector<10xf32> to vector<10x1xf32>
    %109 = vector.broadcast %108 : vector<10x1xf32> to vector<10x10xf32>
    %110 = arith.divf %106, %109 : vector<10x10xf32>
    %cst_86 = arith.constant dense<0.000000e+00> : vector<10x8xf32>
    %111 = tpu.matmul %110, %97, %cst_86 {dimension_numbers = #tpu.dot_dimension_numbers<[1], [0], [0], [1], [0, 0, 1, 1], [], []>} : vector<10x10xf32>, vector<10x8xf32>, vector<10x8xf32> -> vector<10x8xf32>
    %112 = vector.extract_strided_slice %92 {offsets = [0, 8], sizes = [10, 8], strides = [1, 1]} : vector<10x32xf32> to vector<10x8xf32>
    %113 = vector.extract_strided_slice %93 {offsets = [0, 8], sizes = [10, 8], strides = [1, 1]} : vector<10x32xf32> to vector<10x8xf32>
    %114 = vector.extract_strided_slice %94 {offsets = [0, 8], sizes = [10, 8], strides = [1, 1]} : vector<10x32xf32> to vector<10x8xf32>
    %cst_87 = arith.constant dense<0.000000e+00> : vector<10x10xf32>
    %115 = tpu.matmul %112, %113, %cst_87 {dimension_numbers = #tpu.dot_dimension_numbers<[1], [1], [0], [0], [0, 0, 1, 0], [], []>} : vector<10x8xf32>, vector<10x8xf32>, vector<10x10xf32> -> vector<10x10xf32>
    %cst_88 = arith.constant 0.353553385 : f32
    %116 = vector.broadcast %cst_88 : f32 to vector<10x10xf32>
    %117 = arith.mulf %115, %116 : vector<10x10xf32>
    %118 = arith.addf %117, %76 : vector<10x10xf32>
    %cst_89 = arith.constant dense<0xFF800000> : vector<10xf32>
    %119 = vector.multi_reduction <maximumf>, %118, %cst_89 [1] : vector<10x10xf32> to vector<10xf32>
    %120 = vector.shape_cast %119 : vector<10xf32> to vector<10x1xf32>
    %121 = vector.broadcast %120 : vector<10x1xf32> to vector<10x10xf32>
    %122 = arith.subf %118, %121 : vector<10x10xf32>
    %123 = math.exp %122 : vector<10x10xf32>
    %cst_90 = arith.constant dense<0.000000e+00> : vector<10xf32>
    %124 = vector.multi_reduction <add>, %123, %cst_90 [1] : vector<10x10xf32> to vector<10xf32>
    %125 = vector.shape_cast %124 : vector<10xf32> to vector<10x1xf32>
    %126 = vector.broadcast %125 : vector<10x1xf32> to vector<10x10xf32>
    %127 = arith.divf %123, %126 : vector<10x10xf32>
    %cst_91 = arith.constant dense<0.000000e+00> : vector<10x8xf32>
    %128 = tpu.matmul %127, %114, %cst_91 {dimension_numbers = #tpu.dot_dimension_numbers<[1], [0], [0], [1], [0, 0, 1, 1], [], []>} : vector<10x10xf32>, vector<10x8xf32>, vector<10x8xf32> -> vector<10x8xf32>
    %129 = vector.extract_strided_slice %92 {offsets = [0, 16], sizes = [10, 8], strides = [1, 1]} : vector<10x32xf32> to vector<10x8xf32>
    %130 = vector.extract_strided_slice %93 {offsets = [0, 16], sizes = [10, 8], strides = [1, 1]} : vector<10x32xf32> to vector<10x8xf32>
    %131 = vector.extract_strided_slice %94 {offsets = [0, 16], sizes = [10, 8], strides = [1, 1]} : vector<10x32xf32> to vector<10x8xf32>
    %cst_92 = arith.constant dense<0.000000e+00> : vector<10x10xf32>
    %132 = tpu.matmul %129, %130, %cst_92 {dimension_numbers = #tpu.dot_dimension_numbers<[1], [1], [0], [0], [0, 0, 1, 0], [], []>} : vector<10x8xf32>, vector<10x8xf32>, vector<10x10xf32> -> vector<10x10xf32>
    %cst_93 = arith.constant 0.353553385 : f32
    %133 = vector.broadcast %cst_93 : f32 to vector<10x10xf32>
    %134 = arith.mulf %132, %133 : vector<10x10xf32>
    %135 = arith.addf %134, %76 : vector<10x10xf32>
    %cst_94 = arith.constant dense<0xFF800000> : vector<10xf32>
    %136 = vector.multi_reduction <maximumf>, %135, %cst_94 [1] : vector<10x10xf32> to vector<10xf32>
    %137 = vector.shape_cast %136 : vector<10xf32> to vector<10x1xf32>
    %138 = vector.broadcast %137 : vector<10x1xf32> to vector<10x10xf32>
    %139 = arith.subf %135, %138 : vector<10x10xf32>
    %140 = math.exp %139 : vector<10x10xf32>
    %cst_95 = arith.constant dense<0.000000e+00> : vector<10xf32>
    %141 = vector.multi_reduction <add>, %140, %cst_95 [1] : vector<10x10xf32> to vector<10xf32>
    %142 = vector.shape_cast %141 : vector<10xf32> to vector<10x1xf32>
    %143 = vector.broadcast %142 : vector<10x1xf32> to vector<10x10xf32>
    %144 = arith.divf %140, %143 : vector<10x10xf32>
    %cst_96 = arith.constant dense<0.000000e+00> : vector<10x8xf32>
    %145 = tpu.matmul %144, %131, %cst_96 {dimension_numbers = #tpu.dot_dimension_numbers<[1], [0], [0], [1], [0, 0, 1, 1], [], []>} : vector<10x10xf32>, vector<10x8xf32>, vector<10x8xf32> -> vector<10x8xf32>
    %146 = vector.extract_strided_slice %92 {offsets = [0, 24], sizes = [10, 8], strides = [1, 1]} : vector<10x32xf32> to vector<10x8xf32>
    %147 = vector.extract_strided_slice %93 {offsets = [0, 24], sizes = [10, 8], strides = [1, 1]} : vector<10x32xf32> to vector<10x8xf32>
    %148 = vector.extract_strided_slice %94 {offsets = [0, 24], sizes = [10, 8], strides = [1, 1]} : vector<10x32xf32> to vector<10x8xf32>
    %cst_97 = arith.constant dense<0.000000e+00> : vector<10x10xf32>
    %149 = tpu.matmul %146, %147, %cst_97 {dimension_numbers = #tpu.dot_dimension_numbers<[1], [1], [0], [0], [0, 0, 1, 0], [], []>} : vector<10x8xf32>, vector<10x8xf32>, vector<10x10xf32> -> vector<10x10xf32>
    %cst_98 = arith.constant 0.353553385 : f32
    %150 = vector.broadcast %cst_98 : f32 to vector<10x10xf32>
    %151 = arith.mulf %149, %150 : vector<10x10xf32>
    %152 = arith.addf %151, %76 : vector<10x10xf32>
    %cst_99 = arith.constant dense<0xFF800000> : vector<10xf32>
    %153 = vector.multi_reduction <maximumf>, %152, %cst_99 [1] : vector<10x10xf32> to vector<10xf32>
    %154 = vector.shape_cast %153 : vector<10xf32> to vector<10x1xf32>
    %155 = vector.broadcast %154 : vector<10x1xf32> to vector<10x10xf32>
    %156 = arith.subf %152, %155 : vector<10x10xf32>
    %157 = math.exp %156 : vector<10x10xf32>
    %cst_100 = arith.constant dense<0.000000e+00> : vector<10xf32>
    %158 = vector.multi_reduction <add>, %157, %cst_100 [1] : vector<10x10xf32> to vector<10xf32>
    %159 = vector.shape_cast %158 : vector<10xf32> to vector<10x1xf32>
    %160 = vector.broadcast %159 : vector<10x1xf32> to vector<10x10xf32>
    %161 = arith.divf %157, %160 : vector<10x10xf32>
    %cst_101 = arith.constant dense<0.000000e+00> : vector<10x8xf32>
    %162 = tpu.matmul %161, %148, %cst_101 {dimension_numbers = #tpu.dot_dimension_numbers<[1], [0], [0], [1], [0, 0, 1, 1], [], []>} : vector<10x10xf32>, vector<10x8xf32>, vector<10x8xf32> -> vector<10x8xf32>
    %163 = tpu.concatenate %111, %128, %145, %162 in 1 : vector<10x8xf32>, vector<10x8xf32>, vector<10x8xf32>, vector<10x8xf32> -> vector<10x32xf32>
    %cst_102 = arith.constant dense<0.000000e+00> : vector<10x32xf32>
    %164 = tpu.matmul %163, %79, %cst_102 {dimension_numbers = #tpu.dot_dimension_numbers<[1], [0], [0], [1], [0, 0, 1, 1], [], []>} : vector<10x32xf32>, vector<32x32xf32>, vector<10x32xf32> -> vector<10x32xf32>
    %165 = vector.broadcast %80 : vector<1x32xf32> to vector<10x32xf32>
    %166 = arith.addf %164, %165 : vector<10x32xf32>
    %167 = arith.addf %75, %166 : vector<10x32xf32>
    %cst_103 = arith.constant dense<0.000000e+00> : vector<10xf32>
    %168 = vector.multi_reduction <add>, %167, %cst_103 [1] : vector<10x32xf32> to vector<10xf32>
    %169 = vector.shape_cast %168 : vector<10xf32> to vector<10x1xf32>
    %cst_104 = arith.constant 3.200000e+01 : f32
    %170 = vector.broadcast %cst_104 : f32 to vector<10x1xf32>
    %171 = arith.divf %169, %170 : vector<10x1xf32>
    %172 = vector.broadcast %171 : vector<10x1xf32> to vector<10x32xf32>
    %173 = arith.subf %167, %172 : vector<10x32xf32>
    %174 = arith.mulf %173, %173 : vector<10x32xf32>
    %cst_105 = arith.constant dense<0.000000e+00> : vector<10xf32>
    %175 = vector.multi_reduction <add>, %174, %cst_105 [1] : vector<10x32xf32> to vector<10xf32>
    %176 = vector.shape_cast %175 : vector<10xf32> to vector<10x1xf32>
    %cst_106 = arith.constant 3.200000e+01 : f32
    %177 = vector.broadcast %cst_106 : f32 to vector<10x1xf32>
    %178 = arith.divf %176, %177 : vector<10x1xf32>
    %179 = vector.broadcast %171 : vector<10x1xf32> to vector<10x32xf32>
    %180 = arith.subf %167, %179 : vector<10x32xf32>
    %cst_107 = arith.constant 9.99999974E-6 : f32
    %181 = vector.broadcast %cst_107 : f32 to vector<10x1xf32>
    %182 = arith.addf %178, %181 : vector<10x1xf32>
    %183 = math.rsqrt %182 : vector<10x1xf32>
    %184 = vector.broadcast %183 : vector<10x1xf32> to vector<10x32xf32>
    %185 = arith.mulf %180, %184 : vector<10x32xf32>
    %186 = vector.broadcast %81 : vector<1x32xf32> to vector<10x32xf32>
    %187 = arith.mulf %185, %186 : vector<10x32xf32>
    %188 = vector.broadcast %82 : vector<1x32xf32> to vector<10x32xf32>
    %189 = arith.addf %187, %188 : vector<10x32xf32>
    %cst_108 = arith.constant dense<0.000000e+00> : vector<10x128xf32>
    %190 = tpu.matmul %189, %83, %cst_108 {dimension_numbers = #tpu.dot_dimension_numbers<[1], [0], [0], [1], [0, 0, 1, 1], [], []>} : vector<10x32xf32>, vector<32x128xf32>, vector<10x128xf32> -> vector<10x128xf32>
    %191 = vector.broadcast %84 : vector<1x128xf32> to vector<10x128xf32>
    %192 = arith.addf %190, %191 : vector<10x128xf32>
    %cst_109 = arith.constant 5.000000e-01 : f32
    %193 = vector.broadcast %cst_109 : f32 to vector<10x128xf32>
    %194 = arith.mulf %193, %192 : vector<10x128xf32>
    %cst_110 = arith.constant 0.707106769 : f32
    %195 = vector.broadcast %cst_110 : f32 to vector<10x128xf32>
    %196 = arith.mulf %192, %195 : vector<10x128xf32>
    %cst_111 = arith.constant 0.000000e+00 : f32
    %197 = vector.broadcast %cst_111 : f32 to vector<10x128xf32>
    %198 = arith.cmpf oge, %196, %197 : vector<10x128xf32>
    %cst_112 = arith.constant 1.000000e+00 : f32
    %cst_113 = arith.constant -1.000000e+00 : f32
    %199 = vector.broadcast %cst_112 : f32 to vector<10x128xf32>
    %200 = vector.broadcast %cst_113 : f32 to vector<10x128xf32>
    %201 = arith.select %198, %199, %200 : vector<10x128xi1>, vector<10x128xf32>
    %202 = math.absf %196 : vector<10x128xf32>
    %cst_114 = arith.constant 0.327591091 : f32
    %203 = vector.broadcast %cst_114 : f32 to vector<10x128xf32>
    %204 = arith.mulf %203, %202 : vector<10x128xf32>
    %cst_115 = arith.constant 1.000000e+00 : f32
    %205 = vector.broadcast %cst_115 : f32 to vector<10x128xf32>
    %206 = arith.addf %205, %204 : vector<10x128xf32>
    %cst_116 = arith.constant 1.000000e+00 : f32
    %207 = vector.broadcast %cst_116 : f32 to vector<10x128xf32>
    %208 = arith.divf %207, %206 : vector<10x128xf32>
    %cst_117 = arith.constant 1.06140542 : f32
    %209 = vector.broadcast %cst_117 : f32 to vector<10x128xf32>
    %210 = arith.mulf %209, %208 : vector<10x128xf32>
    %cst_118 = arith.constant -1.45315206 : f32
    %211 = vector.broadcast %cst_118 : f32 to vector<10x128xf32>
    %212 = arith.addf %210, %211 : vector<10x128xf32>
    %213 = arith.mulf %212, %208 : vector<10x128xf32>
    %cst_119 = arith.constant 1.42141378 : f32
    %214 = vector.broadcast %cst_119 : f32 to vector<10x128xf32>
    %215 = arith.addf %213, %214 : vector<10x128xf32>
    %216 = arith.mulf %215, %208 : vector<10x128xf32>
    %cst_120 = arith.constant -0.284496725 : f32
    %217 = vector.broadcast %cst_120 : f32 to vector<10x128xf32>
    %218 = arith.addf %216, %217 : vector<10x128xf32>
    %219 = arith.mulf %218, %208 : vector<10x128xf32>
    %cst_121 = arith.constant 0.254829586 : f32
    %220 = vector.broadcast %cst_121 : f32 to vector<10x128xf32>
    %221 = arith.addf %219, %220 : vector<10x128xf32>
    %222 = arith.mulf %221, %208 : vector<10x128xf32>
    %cst_122 = arith.constant 0.000000e+00 : f32
    %223 = vector.broadcast %cst_122 : f32 to vector<10x128xf32>
    %224 = arith.subf %223, %202 : vector<10x128xf32>
    %225 = arith.mulf %224, %202 : vector<10x128xf32>
    %226 = math.exp %225 : vector<10x128xf32>
    %227 = arith.mulf %222, %226 : vector<10x128xf32>
    %cst_123 = arith.constant 1.000000e+00 : f32
    %228 = vector.broadcast %cst_123 : f32 to vector<10x128xf32>
    %229 = arith.subf %228, %227 : vector<10x128xf32>
    %230 = arith.mulf %201, %229 : vector<10x128xf32>
    %cst_124 = arith.constant 1.000000e+00 : f32
    %231 = vector.broadcast %cst_124 : f32 to vector<10x128xf32>
    %232 = arith.addf %231, %230 : vector<10x128xf32>
    %233 = arith.mulf %194, %232 : vector<10x128xf32>
    %cst_125 = arith.constant dense<0.000000e+00> : vector<10x32xf32>
    %234 = tpu.matmul %233, %85, %cst_125 {dimension_numbers = #tpu.dot_dimension_numbers<[1], [0], [0], [1], [0, 0, 1, 1], [], []>} : vector<10x128xf32>, vector<128x32xf32>, vector<10x32xf32> -> vector<10x32xf32>
    %235 = vector.broadcast %86 : vector<1x32xf32> to vector<10x32xf32>
    %236 = arith.addf %234, %235 : vector<10x32xf32>
    %237 = arith.addf %189, %236 : vector<10x32xf32>
    %cst_126 = arith.constant dense<0.000000e+00> : vector<10xf32>
    %238 = vector.multi_reduction <add>, %237, %cst_126 [1] : vector<10x32xf32> to vector<10xf32>
    %239 = vector.shape_cast %238 : vector<10xf32> to vector<10x1xf32>
    %cst_127 = arith.constant 3.200000e+01 : f32
    %240 = vector.broadcast %cst_127 : f32 to vector<10x1xf32>
    %241 = arith.divf %239, %240 : vector<10x1xf32>
    %242 = vector.broadcast %241 : vector<10x1xf32> to vector<10x32xf32>
    %243 = arith.subf %237, %242 : vector<10x32xf32>
    %244 = arith.mulf %243, %243 : vector<10x32xf32>
    %cst_128 = arith.constant dense<0.000000e+00> : vector<10xf32>
    %245 = vector.multi_reduction <add>, %244, %cst_128 [1] : vector<10x32xf32> to vector<10xf32>
    %246 = vector.shape_cast %245 : vector<10xf32> to vector<10x1xf32>
    %cst_129 = arith.constant 3.200000e+01 : f32
    %247 = vector.broadcast %cst_129 : f32 to vector<10x1xf32>
    %248 = arith.divf %246, %247 : vector<10x1xf32>
    %249 = vector.broadcast %241 : vector<10x1xf32> to vector<10x32xf32>
    %250 = arith.subf %237, %249 : vector<10x32xf32>
    %cst_130 = arith.constant 9.99999974E-6 : f32
    %251 = vector.broadcast %cst_130 : f32 to vector<10x1xf32>
    %252 = arith.addf %248, %251 : vector<10x1xf32>
    %253 = math.rsqrt %252 : vector<10x1xf32>
    %254 = vector.broadcast %253 : vector<10x1xf32> to vector<10x32xf32>
    %255 = arith.mulf %250, %254 : vector<10x32xf32>
    %256 = vector.broadcast %87 : vector<1x32xf32> to vector<10x32xf32>
    %257 = arith.mulf %255, %256 : vector<10x32xf32>
    %258 = vector.broadcast %88 : vector<1x32xf32> to vector<10x32xf32>
    %259 = arith.addf %257, %258 : vector<10x32xf32>
    %c0_131 = arith.constant 0 : index
    %c0_132 = arith.constant 0 : index
    %260 = vector.load %arg32[%c0_131, %c0_132] : memref<32x96xf32, #tpu.memory_space<vmem>>, vector<32x96xf32>
    %c0_133 = arith.constant 0 : index
    %c0_134 = arith.constant 0 : index
    %261 = vector.load %arg33[%c0_133, %c0_134] : memref<1x96xf32, #tpu.memory_space<vmem>>, vector<1x96xf32>
    %c0_135 = arith.constant 0 : index
    %c0_136 = arith.constant 0 : index
    %262 = vector.load %arg34[%c0_135, %c0_136] : memref<32x32xf32, #tpu.memory_space<vmem>>, vector<32x32xf32>
    %c0_137 = arith.constant 0 : index
    %c0_138 = arith.constant 0 : index
    %263 = vector.load %arg35[%c0_137, %c0_138] : memref<1x32xf32, #tpu.memory_space<vmem>>, vector<1x32xf32>
    %c0_139 = arith.constant 0 : index
    %c0_140 = arith.constant 0 : index
    %264 = vector.load %arg36[%c0_139, %c0_140] : memref<1x32xf32, #tpu.memory_space<vmem>>, vector<1x32xf32>
    %c0_141 = arith.constant 0 : index
    %c0_142 = arith.constant 0 : index
    %265 = vector.load %arg37[%c0_141, %c0_142] : memref<1x32xf32, #tpu.memory_space<vmem>>, vector<1x32xf32>
    %c0_143 = arith.constant 0 : index
    %c0_144 = arith.constant 0 : index
    %266 = vector.load %arg38[%c0_143, %c0_144] : memref<32x128xf32, #tpu.memory_space<vmem>>, vector<32x128xf32>
    %c0_145 = arith.constant 0 : index
    %c0_146 = arith.constant 0 : index
    %267 = vector.load %arg39[%c0_145, %c0_146] : memref<1x128xf32, #tpu.memory_space<vmem>>, vector<1x128xf32>
    %c0_147 = arith.constant 0 : index
    %c0_148 = arith.constant 0 : index
    %268 = vector.load %arg40[%c0_147, %c0_148] : memref<128x32xf32, #tpu.memory_space<vmem>>, vector<128x32xf32>
    %c0_149 = arith.constant 0 : index
    %c0_150 = arith.constant 0 : index
    %269 = vector.load %arg41[%c0_149, %c0_150] : memref<1x32xf32, #tpu.memory_space<vmem>>, vector<1x32xf32>
    %c0_151 = arith.constant 0 : index
    %c0_152 = arith.constant 0 : index
    %270 = vector.load %arg42[%c0_151, %c0_152] : memref<1x32xf32, #tpu.memory_space<vmem>>, vector<1x32xf32>
    %c0_153 = arith.constant 0 : index
    %c0_154 = arith.constant 0 : index
    %271 = vector.load %arg43[%c0_153, %c0_154] : memref<1x32xf32, #tpu.memory_space<vmem>>, vector<1x32xf32>
    %cst_155 = arith.constant dense<0.000000e+00> : vector<10x96xf32>
    %272 = tpu.matmul %259, %260, %cst_155 {dimension_numbers = #tpu.dot_dimension_numbers<[1], [0], [0], [1], [0, 0, 1, 1], [], []>} : vector<10x32xf32>, vector<32x96xf32>, vector<10x96xf32> -> vector<10x96xf32>
    %273 = vector.broadcast %261 : vector<1x96xf32> to vector<10x96xf32>
    %274 = arith.addf %272, %273 : vector<10x96xf32>
    %275 = vector.extract_strided_slice %274 {offsets = [0, 0], sizes = [10, 32], strides = [1, 1]} : vector<10x96xf32> to vector<10x32xf32>
    %276 = vector.extract_strided_slice %274 {offsets = [0, 32], sizes = [10, 32], strides = [1, 1]} : vector<10x96xf32> to vector<10x32xf32>
    %277 = vector.extract_strided_slice %274 {offsets = [0, 64], sizes = [10, 32], strides = [1, 1]} : vector<10x96xf32> to vector<10x32xf32>
    %278 = vector.extract_strided_slice %275 {offsets = [0, 0], sizes = [10, 8], strides = [1, 1]} : vector<10x32xf32> to vector<10x8xf32>
    %279 = vector.extract_strided_slice %276 {offsets = [0, 0], sizes = [10, 8], strides = [1, 1]} : vector<10x32xf32> to vector<10x8xf32>
    %280 = vector.extract_strided_slice %277 {offsets = [0, 0], sizes = [10, 8], strides = [1, 1]} : vector<10x32xf32> to vector<10x8xf32>
    %cst_156 = arith.constant dense<0.000000e+00> : vector<10x10xf32>
    %281 = tpu.matmul %278, %279, %cst_156 {dimension_numbers = #tpu.dot_dimension_numbers<[1], [1], [0], [0], [0, 0, 1, 0], [], []>} : vector<10x8xf32>, vector<10x8xf32>, vector<10x10xf32> -> vector<10x10xf32>
    %cst_157 = arith.constant 0.353553385 : f32
    %282 = vector.broadcast %cst_157 : f32 to vector<10x10xf32>
    %283 = arith.mulf %281, %282 : vector<10x10xf32>
    %284 = arith.addf %283, %76 : vector<10x10xf32>
    %cst_158 = arith.constant dense<0xFF800000> : vector<10xf32>
    %285 = vector.multi_reduction <maximumf>, %284, %cst_158 [1] : vector<10x10xf32> to vector<10xf32>
    %286 = vector.shape_cast %285 : vector<10xf32> to vector<10x1xf32>
    %287 = vector.broadcast %286 : vector<10x1xf32> to vector<10x10xf32>
    %288 = arith.subf %284, %287 : vector<10x10xf32>
    %289 = math.exp %288 : vector<10x10xf32>
    %cst_159 = arith.constant dense<0.000000e+00> : vector<10xf32>
    %290 = vector.multi_reduction <add>, %289, %cst_159 [1] : vector<10x10xf32> to vector<10xf32>
    %291 = vector.shape_cast %290 : vector<10xf32> to vector<10x1xf32>
    %292 = vector.broadcast %291 : vector<10x1xf32> to vector<10x10xf32>
    %293 = arith.divf %289, %292 : vector<10x10xf32>
    %cst_160 = arith.constant dense<0.000000e+00> : vector<10x8xf32>
    %294 = tpu.matmul %293, %280, %cst_160 {dimension_numbers = #tpu.dot_dimension_numbers<[1], [0], [0], [1], [0, 0, 1, 1], [], []>} : vector<10x10xf32>, vector<10x8xf32>, vector<10x8xf32> -> vector<10x8xf32>
    %295 = vector.extract_strided_slice %275 {offsets = [0, 8], sizes = [10, 8], strides = [1, 1]} : vector<10x32xf32> to vector<10x8xf32>
    %296 = vector.extract_strided_slice %276 {offsets = [0, 8], sizes = [10, 8], strides = [1, 1]} : vector<10x32xf32> to vector<10x8xf32>
    %297 = vector.extract_strided_slice %277 {offsets = [0, 8], sizes = [10, 8], strides = [1, 1]} : vector<10x32xf32> to vector<10x8xf32>
    %cst_161 = arith.constant dense<0.000000e+00> : vector<10x10xf32>
    %298 = tpu.matmul %295, %296, %cst_161 {dimension_numbers = #tpu.dot_dimension_numbers<[1], [1], [0], [0], [0, 0, 1, 0], [], []>} : vector<10x8xf32>, vector<10x8xf32>, vector<10x10xf32> -> vector<10x10xf32>
    %cst_162 = arith.constant 0.353553385 : f32
    %299 = vector.broadcast %cst_162 : f32 to vector<10x10xf32>
    %300 = arith.mulf %298, %299 : vector<10x10xf32>
    %301 = arith.addf %300, %76 : vector<10x10xf32>
    %cst_163 = arith.constant dense<0xFF800000> : vector<10xf32>
    %302 = vector.multi_reduction <maximumf>, %301, %cst_163 [1] : vector<10x10xf32> to vector<10xf32>
    %303 = vector.shape_cast %302 : vector<10xf32> to vector<10x1xf32>
    %304 = vector.broadcast %303 : vector<10x1xf32> to vector<10x10xf32>
    %305 = arith.subf %301, %304 : vector<10x10xf32>
    %306 = math.exp %305 : vector<10x10xf32>
    %cst_164 = arith.constant dense<0.000000e+00> : vector<10xf32>
    %307 = vector.multi_reduction <add>, %306, %cst_164 [1] : vector<10x10xf32> to vector<10xf32>
    %308 = vector.shape_cast %307 : vector<10xf32> to vector<10x1xf32>
    %309 = vector.broadcast %308 : vector<10x1xf32> to vector<10x10xf32>
    %310 = arith.divf %306, %309 : vector<10x10xf32>
    %cst_165 = arith.constant dense<0.000000e+00> : vector<10x8xf32>
    %311 = tpu.matmul %310, %297, %cst_165 {dimension_numbers = #tpu.dot_dimension_numbers<[1], [0], [0], [1], [0, 0, 1, 1], [], []>} : vector<10x10xf32>, vector<10x8xf32>, vector<10x8xf32> -> vector<10x8xf32>
    %312 = vector.extract_strided_slice %275 {offsets = [0, 16], sizes = [10, 8], strides = [1, 1]} : vector<10x32xf32> to vector<10x8xf32>
    %313 = vector.extract_strided_slice %276 {offsets = [0, 16], sizes = [10, 8], strides = [1, 1]} : vector<10x32xf32> to vector<10x8xf32>
    %314 = vector.extract_strided_slice %277 {offsets = [0, 16], sizes = [10, 8], strides = [1, 1]} : vector<10x32xf32> to vector<10x8xf32>
    %cst_166 = arith.constant dense<0.000000e+00> : vector<10x10xf32>
    %315 = tpu.matmul %312, %313, %cst_166 {dimension_numbers = #tpu.dot_dimension_numbers<[1], [1], [0], [0], [0, 0, 1, 0], [], []>} : vector<10x8xf32>, vector<10x8xf32>, vector<10x10xf32> -> vector<10x10xf32>
    %cst_167 = arith.constant 0.353553385 : f32
    %316 = vector.broadcast %cst_167 : f32 to vector<10x10xf32>
    %317 = arith.mulf %315, %316 : vector<10x10xf32>
    %318 = arith.addf %317, %76 : vector<10x10xf32>
    %cst_168 = arith.constant dense<0xFF800000> : vector<10xf32>
    %319 = vector.multi_reduction <maximumf>, %318, %cst_168 [1] : vector<10x10xf32> to vector<10xf32>
    %320 = vector.shape_cast %319 : vector<10xf32> to vector<10x1xf32>
    %321 = vector.broadcast %320 : vector<10x1xf32> to vector<10x10xf32>
    %322 = arith.subf %318, %321 : vector<10x10xf32>
    %323 = math.exp %322 : vector<10x10xf32>
    %cst_169 = arith.constant dense<0.000000e+00> : vector<10xf32>
    %324 = vector.multi_reduction <add>, %323, %cst_169 [1] : vector<10x10xf32> to vector<10xf32>
    %325 = vector.shape_cast %324 : vector<10xf32> to vector<10x1xf32>
    %326 = vector.broadcast %325 : vector<10x1xf32> to vector<10x10xf32>
    %327 = arith.divf %323, %326 : vector<10x10xf32>
    %cst_170 = arith.constant dense<0.000000e+00> : vector<10x8xf32>
    %328 = tpu.matmul %327, %314, %cst_170 {dimension_numbers = #tpu.dot_dimension_numbers<[1], [0], [0], [1], [0, 0, 1, 1], [], []>} : vector<10x10xf32>, vector<10x8xf32>, vector<10x8xf32> -> vector<10x8xf32>
    %329 = vector.extract_strided_slice %275 {offsets = [0, 24], sizes = [10, 8], strides = [1, 1]} : vector<10x32xf32> to vector<10x8xf32>
    %330 = vector.extract_strided_slice %276 {offsets = [0, 24], sizes = [10, 8], strides = [1, 1]} : vector<10x32xf32> to vector<10x8xf32>
    %331 = vector.extract_strided_slice %277 {offsets = [0, 24], sizes = [10, 8], strides = [1, 1]} : vector<10x32xf32> to vector<10x8xf32>
    %cst_171 = arith.constant dense<0.000000e+00> : vector<10x10xf32>
    %332 = tpu.matmul %329, %330, %cst_171 {dimension_numbers = #tpu.dot_dimension_numbers<[1], [1], [0], [0], [0, 0, 1, 0], [], []>} : vector<10x8xf32>, vector<10x8xf32>, vector<10x10xf32> -> vector<10x10xf32>
    %cst_172 = arith.constant 0.353553385 : f32
    %333 = vector.broadcast %cst_172 : f32 to vector<10x10xf32>
    %334 = arith.mulf %332, %333 : vector<10x10xf32>
    %335 = arith.addf %334, %76 : vector<10x10xf32>
    %cst_173 = arith.constant dense<0xFF800000> : vector<10xf32>
    %336 = vector.multi_reduction <maximumf>, %335, %cst_173 [1] : vector<10x10xf32> to vector<10xf32>
    %337 = vector.shape_cast %336 : vector<10xf32> to vector<10x1xf32>
    %338 = vector.broadcast %337 : vector<10x1xf32> to vector<10x10xf32>
    %339 = arith.subf %335, %338 : vector<10x10xf32>
    %340 = math.exp %339 : vector<10x10xf32>
    %cst_174 = arith.constant dense<0.000000e+00> : vector<10xf32>
    %341 = vector.multi_reduction <add>, %340, %cst_174 [1] : vector<10x10xf32> to vector<10xf32>
    %342 = vector.shape_cast %341 : vector<10xf32> to vector<10x1xf32>
    %343 = vector.broadcast %342 : vector<10x1xf32> to vector<10x10xf32>
    %344 = arith.divf %340, %343 : vector<10x10xf32>
    %cst_175 = arith.constant dense<0.000000e+00> : vector<10x8xf32>
    %345 = tpu.matmul %344, %331, %cst_175 {dimension_numbers = #tpu.dot_dimension_numbers<[1], [0], [0], [1], [0, 0, 1, 1], [], []>} : vector<10x10xf32>, vector<10x8xf32>, vector<10x8xf32> -> vector<10x8xf32>
    %346 = tpu.concatenate %294, %311, %328, %345 in 1 : vector<10x8xf32>, vector<10x8xf32>, vector<10x8xf32>, vector<10x8xf32> -> vector<10x32xf32>
    %cst_176 = arith.constant dense<0.000000e+00> : vector<10x32xf32>
    %347 = tpu.matmul %346, %262, %cst_176 {dimension_numbers = #tpu.dot_dimension_numbers<[1], [0], [0], [1], [0, 0, 1, 1], [], []>} : vector<10x32xf32>, vector<32x32xf32>, vector<10x32xf32> -> vector<10x32xf32>
    %348 = vector.broadcast %263 : vector<1x32xf32> to vector<10x32xf32>
    %349 = arith.addf %347, %348 : vector<10x32xf32>
    %350 = arith.addf %259, %349 : vector<10x32xf32>
    %cst_177 = arith.constant dense<0.000000e+00> : vector<10xf32>
    %351 = vector.multi_reduction <add>, %350, %cst_177 [1] : vector<10x32xf32> to vector<10xf32>
    %352 = vector.shape_cast %351 : vector<10xf32> to vector<10x1xf32>
    %cst_178 = arith.constant 3.200000e+01 : f32
    %353 = vector.broadcast %cst_178 : f32 to vector<10x1xf32>
    %354 = arith.divf %352, %353 : vector<10x1xf32>
    %355 = vector.broadcast %354 : vector<10x1xf32> to vector<10x32xf32>
    %356 = arith.subf %350, %355 : vector<10x32xf32>
    %357 = arith.mulf %356, %356 : vector<10x32xf32>
    %cst_179 = arith.constant dense<0.000000e+00> : vector<10xf32>
    %358 = vector.multi_reduction <add>, %357, %cst_179 [1] : vector<10x32xf32> to vector<10xf32>
    %359 = vector.shape_cast %358 : vector<10xf32> to vector<10x1xf32>
    %cst_180 = arith.constant 3.200000e+01 : f32
    %360 = vector.broadcast %cst_180 : f32 to vector<10x1xf32>
    %361 = arith.divf %359, %360 : vector<10x1xf32>
    %362 = vector.broadcast %354 : vector<10x1xf32> to vector<10x32xf32>
    %363 = arith.subf %350, %362 : vector<10x32xf32>
    %cst_181 = arith.constant 9.99999974E-6 : f32
    %364 = vector.broadcast %cst_181 : f32 to vector<10x1xf32>
    %365 = arith.addf %361, %364 : vector<10x1xf32>
    %366 = math.rsqrt %365 : vector<10x1xf32>
    %367 = vector.broadcast %366 : vector<10x1xf32> to vector<10x32xf32>
    %368 = arith.mulf %363, %367 : vector<10x32xf32>
    %369 = vector.broadcast %264 : vector<1x32xf32> to vector<10x32xf32>
    %370 = arith.mulf %368, %369 : vector<10x32xf32>
    %371 = vector.broadcast %265 : vector<1x32xf32> to vector<10x32xf32>
    %372 = arith.addf %370, %371 : vector<10x32xf32>
    %cst_182 = arith.constant dense<0.000000e+00> : vector<10x128xf32>
    %373 = tpu.matmul %372, %266, %cst_182 {dimension_numbers = #tpu.dot_dimension_numbers<[1], [0], [0], [1], [0, 0, 1, 1], [], []>} : vector<10x32xf32>, vector<32x128xf32>, vector<10x128xf32> -> vector<10x128xf32>
    %374 = vector.broadcast %267 : vector<1x128xf32> to vector<10x128xf32>
    %375 = arith.addf %373, %374 : vector<10x128xf32>
    %cst_183 = arith.constant 5.000000e-01 : f32
    %376 = vector.broadcast %cst_183 : f32 to vector<10x128xf32>
    %377 = arith.mulf %376, %375 : vector<10x128xf32>
    %cst_184 = arith.constant 0.707106769 : f32
    %378 = vector.broadcast %cst_184 : f32 to vector<10x128xf32>
    %379 = arith.mulf %375, %378 : vector<10x128xf32>
    %cst_185 = arith.constant 0.000000e+00 : f32
    %380 = vector.broadcast %cst_185 : f32 to vector<10x128xf32>
    %381 = arith.cmpf oge, %379, %380 : vector<10x128xf32>
    %cst_186 = arith.constant 1.000000e+00 : f32
    %cst_187 = arith.constant -1.000000e+00 : f32
    %382 = vector.broadcast %cst_186 : f32 to vector<10x128xf32>
    %383 = vector.broadcast %cst_187 : f32 to vector<10x128xf32>
    %384 = arith.select %381, %382, %383 : vector<10x128xi1>, vector<10x128xf32>
    %385 = math.absf %379 : vector<10x128xf32>
    %cst_188 = arith.constant 0.327591091 : f32
    %386 = vector.broadcast %cst_188 : f32 to vector<10x128xf32>
    %387 = arith.mulf %386, %385 : vector<10x128xf32>
    %cst_189 = arith.constant 1.000000e+00 : f32
    %388 = vector.broadcast %cst_189 : f32 to vector<10x128xf32>
    %389 = arith.addf %388, %387 : vector<10x128xf32>
    %cst_190 = arith.constant 1.000000e+00 : f32
    %390 = vector.broadcast %cst_190 : f32 to vector<10x128xf32>
    %391 = arith.divf %390, %389 : vector<10x128xf32>
    %cst_191 = arith.constant 1.06140542 : f32
    %392 = vector.broadcast %cst_191 : f32 to vector<10x128xf32>
    %393 = arith.mulf %392, %391 : vector<10x128xf32>
    %cst_192 = arith.constant -1.45315206 : f32
    %394 = vector.broadcast %cst_192 : f32 to vector<10x128xf32>
    %395 = arith.addf %393, %394 : vector<10x128xf32>
    %396 = arith.mulf %395, %391 : vector<10x128xf32>
    %cst_193 = arith.constant 1.42141378 : f32
    %397 = vector.broadcast %cst_193 : f32 to vector<10x128xf32>
    %398 = arith.addf %396, %397 : vector<10x128xf32>
    %399 = arith.mulf %398, %391 : vector<10x128xf32>
    %cst_194 = arith.constant -0.284496725 : f32
    %400 = vector.broadcast %cst_194 : f32 to vector<10x128xf32>
    %401 = arith.addf %399, %400 : vector<10x128xf32>
    %402 = arith.mulf %401, %391 : vector<10x128xf32>
    %cst_195 = arith.constant 0.254829586 : f32
    %403 = vector.broadcast %cst_195 : f32 to vector<10x128xf32>
    %404 = arith.addf %402, %403 : vector<10x128xf32>
    %405 = arith.mulf %404, %391 : vector<10x128xf32>
    %cst_196 = arith.constant 0.000000e+00 : f32
    %406 = vector.broadcast %cst_196 : f32 to vector<10x128xf32>
    %407 = arith.subf %406, %385 : vector<10x128xf32>
    %408 = arith.mulf %407, %385 : vector<10x128xf32>
    %409 = math.exp %408 : vector<10x128xf32>
    %410 = arith.mulf %405, %409 : vector<10x128xf32>
    %cst_197 = arith.constant 1.000000e+00 : f32
    %411 = vector.broadcast %cst_197 : f32 to vector<10x128xf32>
    %412 = arith.subf %411, %410 : vector<10x128xf32>
    %413 = arith.mulf %384, %412 : vector<10x128xf32>
    %cst_198 = arith.constant 1.000000e+00 : f32
    %414 = vector.broadcast %cst_198 : f32 to vector<10x128xf32>
    %415 = arith.addf %414, %413 : vector<10x128xf32>
    %416 = arith.mulf %377, %415 : vector<10x128xf32>
    %cst_199 = arith.constant dense<0.000000e+00> : vector<10x32xf32>
    %417 = tpu.matmul %416, %268, %cst_199 {dimension_numbers = #tpu.dot_dimension_numbers<[1], [0], [0], [1], [0, 0, 1, 1], [], []>} : vector<10x128xf32>, vector<128x32xf32>, vector<10x32xf32> -> vector<10x32xf32>
    %418 = vector.broadcast %269 : vector<1x32xf32> to vector<10x32xf32>
    %419 = arith.addf %417, %418 : vector<10x32xf32>
    %420 = arith.addf %372, %419 : vector<10x32xf32>
    %cst_200 = arith.constant dense<0.000000e+00> : vector<10xf32>
    %421 = vector.multi_reduction <add>, %420, %cst_200 [1] : vector<10x32xf32> to vector<10xf32>
    %422 = vector.shape_cast %421 : vector<10xf32> to vector<10x1xf32>
    %cst_201 = arith.constant 3.200000e+01 : f32
    %423 = vector.broadcast %cst_201 : f32 to vector<10x1xf32>
    %424 = arith.divf %422, %423 : vector<10x1xf32>
    %425 = vector.broadcast %424 : vector<10x1xf32> to vector<10x32xf32>
    %426 = arith.subf %420, %425 : vector<10x32xf32>
    %427 = arith.mulf %426, %426 : vector<10x32xf32>
    %cst_202 = arith.constant dense<0.000000e+00> : vector<10xf32>
    %428 = vector.multi_reduction <add>, %427, %cst_202 [1] : vector<10x32xf32> to vector<10xf32>
    %429 = vector.shape_cast %428 : vector<10xf32> to vector<10x1xf32>
    %cst_203 = arith.constant 3.200000e+01 : f32
    %430 = vector.broadcast %cst_203 : f32 to vector<10x1xf32>
    %431 = arith.divf %429, %430 : vector<10x1xf32>
    %432 = vector.broadcast %424 : vector<10x1xf32> to vector<10x32xf32>
    %433 = arith.subf %420, %432 : vector<10x32xf32>
    %cst_204 = arith.constant 9.99999974E-6 : f32
    %434 = vector.broadcast %cst_204 : f32 to vector<10x1xf32>
    %435 = arith.addf %431, %434 : vector<10x1xf32>
    %436 = math.rsqrt %435 : vector<10x1xf32>
    %437 = vector.broadcast %436 : vector<10x1xf32> to vector<10x32xf32>
    %438 = arith.mulf %433, %437 : vector<10x32xf32>
    %439 = vector.broadcast %270 : vector<1x32xf32> to vector<10x32xf32>
    %440 = arith.mulf %438, %439 : vector<10x32xf32>
    %441 = vector.broadcast %271 : vector<1x32xf32> to vector<10x32xf32>
    %442 = arith.addf %440, %441 : vector<10x32xf32>
    %c0_205 = arith.constant 0 : index
    %c0_206 = arith.constant 0 : index
    %443 = vector.load %arg44[%c0_205, %c0_206] : memref<8x10xf32, #tpu.memory_space<vmem>>, vector<8x10xf32>
    %c0_207 = arith.constant 0 : index
    %c0_208 = arith.constant 0 : index
    %444 = vector.load %arg45[%c0_207, %c0_208] : memref<2x8xf32, #tpu.memory_space<vmem>>, vector<2x8xf32>
    %c0_209 = arith.constant 0 : index
    %c0_210 = arith.constant 0 : index
    %445 = vector.load %arg46[%c0_209, %c0_210] : memref<32x32xf32, #tpu.memory_space<vmem>>, vector<32x32xf32>
    %c0_211 = arith.constant 0 : index
    %c0_212 = arith.constant 0 : index
    %446 = vector.load %arg47[%c0_211, %c0_212] : memref<1x32xf32, #tpu.memory_space<vmem>>, vector<1x32xf32>
    %c0_213 = arith.constant 0 : index
    %c0_214 = arith.constant 0 : index
    %447 = vector.load %arg48[%c0_213, %c0_214] : memref<32x32xf32, #tpu.memory_space<vmem>>, vector<32x32xf32>
    %c0_215 = arith.constant 0 : index
    %c0_216 = arith.constant 0 : index
    %448 = vector.load %arg49[%c0_215, %c0_216] : memref<1x32xf32, #tpu.memory_space<vmem>>, vector<1x32xf32>
    %c0_217 = arith.constant 0 : index
    %c0_218 = arith.constant 0 : index
    %449 = vector.load %arg50[%c0_217, %c0_218] : memref<32x16xf32, #tpu.memory_space<vmem>>, vector<32x16xf32>
    %c0_219 = arith.constant 0 : index
    %c0_220 = arith.constant 0 : index
    %450 = vector.load %arg51[%c0_219, %c0_220] : memref<1x16xf32, #tpu.memory_space<vmem>>, vector<1x16xf32>
    %c0_221 = arith.constant 0 : index
    %c0_222 = arith.constant 0 : index
    %451 = vector.load %arg52[%c0_221, %c0_222] : memref<16x4xf32, #tpu.memory_space<vmem>>, vector<16x4xf32>
    %c0_223 = arith.constant 0 : index
    %c0_224 = arith.constant 0 : index
    %452 = vector.load %arg53[%c0_223, %c0_224] : memref<1x4xf32, #tpu.memory_space<vmem>>, vector<1x4xf32>
    %c0_225 = arith.constant 0 : index
    %c0_226 = arith.constant 0 : index
    %453 = vector.load %arg54[%c0_225, %c0_226] : memref<32x5xf32, #tpu.memory_space<vmem>>, vector<32x5xf32>
    %c0_227 = arith.constant 0 : index
    %c0_228 = arith.constant 0 : index
    %454 = vector.load %arg55[%c0_227, %c0_228] : memref<1x5xf32, #tpu.memory_space<vmem>>, vector<1x5xf32>
    %cst_229 = arith.constant dense<0.000000e+00> : vector<8x32xf32>
    %455 = tpu.matmul %443, %442, %cst_229 {dimension_numbers = #tpu.dot_dimension_numbers<[1], [0], [0], [1], [0, 0, 1, 1], [], []>} : vector<8x10xf32>, vector<10x32xf32>, vector<8x32xf32> -> vector<8x32xf32>
    %cst_230 = arith.constant dense<0.000000e+00> : vector<8x32xf32>
    %456 = tpu.matmul %455, %445, %cst_230 {dimension_numbers = #tpu.dot_dimension_numbers<[1], [0], [0], [1], [0, 0, 1, 1], [], []>} : vector<8x32xf32>, vector<32x32xf32>, vector<8x32xf32> -> vector<8x32xf32>
    %457 = vector.broadcast %446 : vector<1x32xf32> to vector<8x32xf32>
    %458 = arith.addf %456, %457 : vector<8x32xf32>
    %cst_231 = arith.constant 0.000000e+00 : f32
    %459 = vector.broadcast %cst_231 : f32 to vector<8x32xf32>
    %460 = arith.maximumf %458, %459 : vector<8x32xf32>
    %cst_232 = arith.constant dense<0.000000e+00> : vector<8x32xf32>
    %461 = tpu.matmul %460, %447, %cst_232 {dimension_numbers = #tpu.dot_dimension_numbers<[1], [0], [0], [1], [0, 0, 1, 1], [], []>} : vector<8x32xf32>, vector<32x32xf32>, vector<8x32xf32> -> vector<8x32xf32>
    %462 = vector.broadcast %448 : vector<1x32xf32> to vector<8x32xf32>
    %463 = arith.addf %461, %462 : vector<8x32xf32>
    %cst_233 = arith.constant dense<0.000000e+00> : vector<8x16xf32>
    %464 = tpu.matmul %463, %449, %cst_233 {dimension_numbers = #tpu.dot_dimension_numbers<[1], [0], [0], [1], [0, 0, 1, 1], [], []>} : vector<8x32xf32>, vector<32x16xf32>, vector<8x16xf32> -> vector<8x16xf32>
    %465 = vector.broadcast %450 : vector<1x16xf32> to vector<8x16xf32>
    %466 = arith.addf %464, %465 : vector<8x16xf32>
    %cst_234 = arith.constant 0.000000e+00 : f32
    %467 = vector.broadcast %cst_234 : f32 to vector<8x16xf32>
    %468 = arith.cmpf ogt, %466, %467 : vector<8x16xf32>
    %cst_235 = arith.constant 1.000000e-01 : f32
    %469 = vector.broadcast %cst_235 : f32 to vector<8x16xf32>
    %470 = arith.mulf %469, %466 : vector<8x16xf32>
    %471 = arith.select %468, %466, %470 : vector<8x16xi1>, vector<8x16xf32>
    %cst_236 = arith.constant dense<0.000000e+00> : vector<8x4xf32>
    %472 = tpu.matmul %471, %451, %cst_236 {dimension_numbers = #tpu.dot_dimension_numbers<[1], [0], [0], [1], [0, 0, 1, 1], [], []>} : vector<8x16xf32>, vector<16x4xf32>, vector<8x4xf32> -> vector<8x4xf32>
    %473 = vector.broadcast %452 : vector<1x4xf32> to vector<8x4xf32>
    %474 = arith.addf %472, %473 : vector<8x4xf32>
    %c0_237 = arith.constant 0 : index
    %c0_238 = arith.constant 0 : index
    %475 = vector.load %arg56[%c0_237, %c0_238] : memref<8x4xf32, #tpu.memory_space<vmem>>, vector<8x4xf32>
    tpu.vector_store %arg56[%c0_237, %c0_238], %474 {strides = array<i32>} : memref<8x4xf32, #tpu.memory_space<vmem>>, vector<8x4xf32>,
    %cst_239 = arith.constant dense<0.000000e+00> : vector<2x32xf32>
    %476 = tpu.matmul %444, %463, %cst_239 {dimension_numbers = #tpu.dot_dimension_numbers<[1], [0], [0], [1], [0, 0, 1, 1], [], []>} : vector<2x8xf32>, vector<8x32xf32>, vector<2x32xf32> -> vector<2x32xf32>
    %cst_240 = arith.constant dense<0.000000e+00> : vector<2x5xf32>
    %477 = tpu.matmul %476, %453, %cst_240 {dimension_numbers = #tpu.dot_dimension_numbers<[1], [0], [0], [1], [0, 0, 1, 1], [], []>} : vector<2x32xf32>, vector<32x5xf32>, vector<2x5xf32> -> vector<2x5xf32>
    %478 = vector.broadcast %454 : vector<1x5xf32> to vector<2x5xf32>
    %479 = arith.addf %477, %478 : vector<2x5xf32>
    %c0_241 = arith.constant 0 : index
    %c0_242 = arith.constant 0 : index
    %480 = vector.load %arg57[%c0_241, %c0_242] : memref<2x5xf32, #tpu.memory_space<vmem>>, vector<2x5xf32>
    tpu.vector_store %arg57[%c0_241, %c0_242], %479 {strides = array<i32>} : memref<2x5xf32, #tpu.memory_space<vmem>>, vector<2x5xf32>,
    return
  }
}

</mosaic_0001>

<llo_original>
// kernel: forward_device.1
$region0: #{forward_device.1}
  #allocation0 [shape = 'u32[]', space=smem, size = 0x4, offset = 0x4, fixed_abs, tag = 'smem constant byte address 0x4 - core index']
  #allocation1 [shape = 'u32[144,128]{1,0:T(1,128)}', space=vmem, size = 0x12000, scoped, tag = 'internal scratch']
  %s0 = inlined_call_operand.smem [shape: u32[58], index: -1, kind: input, shape index: {}]
  %s1 = sld [smem:[%s0]]
  %s2 = scalar_lea.smem %s0, 1
  %s3 = sld [smem:[%s2]]
  %s4 = scalar_lea.smem %s0, 2
  %s5 = sld [smem:[%s4]]
  %s6 = scalar_lea.smem %s0, 3
  %s7 = sld [smem:[%s6]]
  %s8 = scalar_lea.smem %s0, 4
  %s9 = sld [smem:[%s8]]
  %s10 = scalar_lea.smem %s0, 5
  %s11 = sld [smem:[%s10]]
  %s12 = scalar_lea.smem %s0, 6
  %s13 = sld [smem:[%s12]]
  %s14 = scalar_lea.smem %s0, 7
  %s15 = sld [smem:[%s14]]
  %s16 = scalar_lea.smem %s0, 8
  %s17 = sld [smem:[%s16]]
  %s18 = scalar_lea.smem %s0, 9
  %s19 = sld [smem:[%s18]]
  %s20 = scalar_lea.smem %s0, 10
  %s21 = sld [smem:[%s20]]
  %s22 = scalar_lea.smem %s0, 11
  %s23 = sld [smem:[%s22]]
  %s24 = scalar_lea.smem %s0, 12
  %s25 = sld [smem:[%s24]]
  %s26 = scalar_lea.smem %s0, 13
  %s27 = sld [smem:[%s26]]
  %s28 = scalar_lea.smem %s0, 14
  %s29 = sld [smem:[%s28]]
  %s30 = scalar_lea.smem %s0, 15
  %s31 = sld [smem:[%s30]]
  %s32 = scalar_lea.smem %s0, 16
  %s33 = sld [smem:[%s32]]
  %s34 = scalar_lea.smem %s0, 17
  %s35 = sld [smem:[%s34]]
  %s36 = scalar_lea.smem %s0, 18
  %s37 = sld [smem:[%s36]]
  %s38 = scalar_lea.smem %s0, 19
  %s39 = sld [smem:[%s38]]
  %s40 = scalar_lea.smem %s0, 20
  %s41 = sld [smem:[%s40]]
  %s42 = scalar_lea.smem %s0, 21
  %s43 = sld [smem:[%s42]]
  %s44 = scalar_lea.smem %s0, 22
  %s45 = sld [smem:[%s44]]
  %s46 = scalar_lea.smem %s0, 23
  %s47 = sld [smem:[%s46]]
  %s48 = scalar_lea.smem %s0, 24
  %s49 = sld [smem:[%s48]]
  %s50 = scalar_lea.smem %s0, 25
  %s51 = sld [smem:[%s50]]
  %s52 = scalar_lea.smem %s0, 26
  %s53 = sld [smem:[%s52]]
  %s54 = scalar_lea.smem %s0, 27
  %s55 = sld [smem:[%s54]]
  %s56 = scalar_lea.smem %s0, 28
  %s57 = sld [smem:[%s56]]
  %s58 = scalar_lea.smem %s0, 29
  %s59 = sld [smem:[%s58]]
  %s60 = scalar_lea.smem %s0, 30
  %s61 = sld [smem:[%s60]]
  %s62 = scalar_lea.smem %s0, 31
  %s63 = sld [smem:[%s62]]
  %s64 = scalar_lea.smem %s0, 32
  %s65 = sld [smem:[%s64]]
  %s66 = scalar_lea.smem %s0, 33
  %s67 = sld [smem:[%s66]]
  %s68 = scalar_lea.smem %s0, 34
  %s69 = sld [smem:[%s68]]
  %s70 = scalar_lea.smem %s0, 35
  %s71 = sld [smem:[%s70]]
  %s72 = scalar_lea.smem %s0, 36
  %s73 = sld [smem:[%s72]]
  %s74 = scalar_lea.smem %s0, 37
  %s75 = sld [smem:[%s74]]
  %s76 = scalar_lea.smem %s0, 38
  %s77 = sld [smem:[%s76]]
  %s78 = scalar_lea.smem %s0, 39
  %s79 = sld [smem:[%s78]]
  %s80 = scalar_lea.smem %s0, 40
  %s81 = sld [smem:[%s80]]
  %s82 = scalar_lea.smem %s0, 41
  %s83 = sld [smem:[%s82]]
  %s84 = scalar_lea.smem %s0, 42
  %s85 = sld [smem:[%s84]]
  %s86 = scalar_lea.smem %s0, 43
  %s87 = sld [smem:[%s86]]
  %s88 = scalar_lea.smem %s0, 44
  %s89 = sld [smem:[%s88]]
  %s90 = scalar_lea.smem %s0, 45
  %s91 = sld [smem:[%s90]]
  %s92 = scalar_lea.smem %s0, 46
  %s93 = sld [smem:[%s92]]
  %s94 = scalar_lea.smem %s0, 47
  %s95 = sld [smem:[%s94]]
  %s96 = scalar_lea.smem %s0, 48
  %s97 = sld [smem:[%s96]]
  %s98 = scalar_lea.smem %s0, 49
  %s99 = sld [smem:[%s98]]
  %s100 = scalar_lea.smem %s0, 50
  %s101 = sld [smem:[%s100]]
  %s102 = scalar_lea.smem %s0, 51
  %s103 = sld [smem:[%s102]]
  %s104 = scalar_lea.smem %s0, 52
  %s105 = sld [smem:[%s104]]
  %s106 = scalar_lea.smem %s0, 53
  %s107 = sld [smem:[%s106]]
  %s108 = scalar_lea.smem %s0, 54
  %s109 = sld [smem:[%s108]]
  %s110 = scalar_lea.smem %s0, 55
  %s111 = sld [smem:[%s110]]
  %s112 = scalar_lea.smem %s0, 56
  %s113 = sld [smem:[%s112]]
  %s114 = scalar_lea.smem %s0, 57
  %s115 = sld [smem:[%s114]]
  %116 = xla_tuple %s113, %s115
  %s117 = sld [smem:[#allocation0]]
  $region302: #{forward_device.1} parent=0
    _
  %s119 = ssub.s32 1, %s117
  %s120 = scalar_select 0, %s119, %s117
  $region1: #{forward_device.1} parent=0
    #allocation2 [shape = 'u8[512]{0}', space=vmem, size = 0x400, scoped, tag = 'input window, operand 30, single buffered']
    #allocation3 [shape = 's32[1]{0}', space=sflag, size = 0x4, scoped, tag = 'scoped memory for forward_device.1']
    #allocation4 [shape = 's32[1]{0}', space=sflag, size = 0x4, scoped, tag = 'scoped memory for forward_device.1']
    #allocation5 [shape = 'u8[512]{0}', space=vmem, size = 0x400, scoped, tag = 'input window, operand 31, single buffered']
    #allocation6 [shape = 's32[1]{0}', space=sflag, size = 0x4, scoped, tag = 'scoped memory for forward_device.1']
    #allocation7 [shape = 'u8[512]{0}', space=vmem, size = 0x400, scoped, tag = 'input window, operand 33, single buffered']
    #allocation8 [shape = 'u8[512]{0}', space=vmem, size = 0x400, scoped, tag = 'input window, operand 35, single buffered']
    #allocation9 [shape = 's32[1]{0}', space=sflag, size = 0x4, scoped, tag = 'scoped memory for forward_device.1']
    #allocation10 [shape = 'u8[512]{0}', space=vmem, size = 0x400, scoped, tag = 'input window, operand 36, single buffered']
    #allocation11 [shape = 'u8[512]{0}', space=vmem, size = 0x400, scoped, tag = 'input window, operand 37, single buffered']
    #allocation12 [shape = 's32[1]{0}', space=sflag, size = 0x4, scoped, tag = 'scoped memory for forward_device.1']
    #allocation13 [shape = 'u8[512]{0}', space=vmem, size = 0x400, scoped, tag = 'input window, operand 39, single buffered']
    #allocation14 [shape = 'u8[512]{0}', space=vmem, size = 0x400, scoped, tag = 'input window, operand 41, single buffered']
    #allocation15 [shape = 's32[1]{0}', space=sflag, size = 0x4, scoped, tag = 'scoped memory for forward_device.1']
    #allocation16 [shape = 'u8[512]{0}', space=vmem, size = 0x400, scoped, tag = 'input window, operand 42, single buffered']
    #allocation17 [shape = 'u8[512]{0}', space=vmem, size = 0x400, scoped, tag = 'input window, operand 43, single buffered']
    #allocation18 [shape = 's32[1]{0}', space=sflag, size = 0x4, scoped, tag = 'scoped memory for forward_device.1']
    #allocation19 [shape = 'u8[512]{0}', space=vmem, size = 0x400, scoped, tag = 'input window, operand 47, single buffered']
    #allocation20 [shape = 'u8[512]{0}', space=vmem, size = 0x400, scoped, tag = 'input window, operand 49, single buffered']
    #allocation21 [shape = 's32[1]{0}', space=sflag, size = 0x4, scoped, tag = 'scoped memory for forward_device.1']
    #allocation22 [shape = 'u8[512]{0}', space=vmem, size = 0x400, scoped, tag = 'input window, operand 51, single buffered']
    #allocation23 [shape = 'u8[512]{0}', space=vmem, size = 0x400, scoped, tag = 'input window, operand 53, single buffered']
    #allocation24 [shape = 's32[1]{0}', space=sflag, size = 0x4, scoped, tag = 'scoped memory for forward_device.1']
    #allocation25 [shape = 'u8[512]{0}', space=vmem, size = 0x400, scoped, tag = 'input window, operand 55, single buffered']
    #allocation26 [shape = 'u8[1024]{0}', space=vmem, size = 0x400, scoped, tag = 'output window, operand 1, single buffered']
    %121 = vsyncpa [#allocation3], 0
    %122 = vsyncpa [#allocation6], 0
    %123 = vsyncpa [#allocation9], 0
    %124 = vsyncpa [#allocation12], 0
    %125 = vsyncpa [#allocation15], 0
    %126 = vsyncpa [#allocation18], 0
    %127 = vsyncpa [#allocation21], 0
    %128 = vsyncpa [#allocation24], 0
    %129 = vsyncpa [#allocation4], 0
    // Predicated region
    $region2: #{forward_device.1} parent=1 // pred_check
      _
    $region3: #{forward_device.1} parent=1 // pred_check_branch
      %131 = sbr.rel (0) target = $region5
    $region4: #{forward_device.1} parent=1 // pred_region
      _
    $region5: #{forward_device.1} parent=1 // pred_fallthru
      _
    // Predicated region
    $region6: #{forward_device.1} parent=1 // pred_check
      _
    $region7: #{forward_device.1} parent=1 // pred_check_branch
      %133 = sbr.rel (0) target = $region9
    $region8: #{forward_device.1} parent=1 // pred_region
      _
    $region9: #{forward_device.1} parent=1 // pred_fallthru
      _
    // Predicated region
    $region10: #{forward_device.1} parent=1 // pred_check
      _
    $region11: #{forward_device.1} parent=1 // pred_check_branch
      %135 = sbr.rel (0) target = $region13
    $region12: #{forward_device.1} parent=1 // pred_region
      _
    $region13: #{forward_device.1} parent=1 // pred_fallthru
      _
    // Predicated region
    $region14: #{forward_device.1} parent=1 // pred_check
      _
    $region15: #{forward_device.1} parent=1 // pred_check_branch
      %137 = sbr.rel (0) target = $region17
    $region16: #{forward_device.1} parent=1 // pred_region
      _
    $region17: #{forward_device.1} parent=1 // pred_fallthru
      _
    // Predicated region
    $region18: #{forward_device.1} parent=1 // pred_check
      _
    $region19: #{forward_device.1} parent=1 // pred_check_branch
      %139 = sbr.rel (0) target = $region21
    $region20: #{forward_device.1} parent=1 // pred_region
      _
    $region21: #{forward_device.1} parent=1 // pred_fallthru
      _
    // Predicated region
    $region22: #{forward_device.1} parent=1 // pred_check
      _
    $region23: #{forward_device.1} parent=1 // pred_check_branch
      %141 = sbr.rel (0) target = $region25
    $region24: #{forward_device.1} parent=1 // pred_region
      _
    $region25: #{forward_device.1} parent=1 // pred_fallthru
      _
    // Predicated region
    $region26: #{forward_device.1} parent=1 // pred_check
      _
    $region27: #{forward_device.1} parent=1 // pred_check_branch
      %143 = sbr.rel (0) target = $region29
    $region28: #{forward_device.1} parent=1 // pred_region
      _
    $region29: #{forward_device.1} parent=1 // pred_fallthru
      _
    // Predicated region
    $region30: #{forward_device.1} parent=1 // pred_check
      _
    $region31: #{forward_device.1} parent=1 // pred_check_branch
      %145 = sbr.rel (0) target = $region33
    $region32: #{forward_device.1} parent=1 // pred_region
      _
    $region33: #{forward_device.1} parent=1 // pred_fallthru
      _
    // Predicated region
    $region34: #{forward_device.1} parent=1 // pred_check
      _
    $region35: #{forward_device.1} parent=1 // pred_check_branch
      %147 = sbr.rel (0) target = $region37
    $region36: #{forward_device.1} parent=1 // pred_region
      _
    $region37: #{forward_device.1} parent=1 // pred_fallthru
      _
    // Predicated region
    $region38: #{forward_device.1} parent=1 // pred_check
      _
    $region39: #{forward_device.1} parent=1 // pred_check_branch
      %149 = sbr.rel (0) target = $region41
    $region40: #{forward_device.1} parent=1 // pred_region
      _
    $region41: #{forward_device.1} parent=1 // pred_fallthru
      _
    // Predicated region
    $region42: #{forward_device.1} parent=1 // pred_check
      _
    $region43: #{forward_device.1} parent=1 // pred_check_branch
      %151 = sbr.rel (0) target = $region45
    $region44: #{forward_device.1} parent=1 // pred_region
      _
    $region45: #{forward_device.1} parent=1 // pred_fallthru
      _
    // Predicated region
    $region46: #{forward_device.1} parent=1 // pred_check
      _
    $region47: #{forward_device.1} parent=1 // pred_check_branch
      %153 = sbr.rel (0) target = $region49
    $region48: #{forward_device.1} parent=1 // pred_region
      _
    $region49: #{forward_device.1} parent=1 // pred_fallthru
      _
    // Predicated region
    $region50: #{forward_device.1} parent=1 // pred_check
      _
    $region51: #{forward_device.1} parent=1 // pred_check_branch
      %155 = sbr.rel (0) target = $region53
    $region52: #{forward_device.1} parent=1 // pred_region
      _
    $region53: #{forward_device.1} parent=1 // pred_fallthru
      _
    // Predicated region
    $region54: #{forward_device.1} parent=1 // pred_check
      _
    $region55: #{forward_device.1} parent=1 // pred_check_branch
      %157 = sbr.rel (0) target = $region57
    $region56: #{forward_device.1} parent=1 // pred_region
      _
    $region57: #{forward_device.1} parent=1 // pred_fallthru
      _
    // Predicated region
    $region58: #{forward_device.1} parent=1 // pred_check
      _
    $region59: #{forward_device.1} parent=1 // pred_check_branch
      %159 = sbr.rel (0) target = $region61
    $region60: #{forward_device.1} parent=1 // pred_region
      _
    $region61: #{forward_device.1} parent=1 // pred_fallthru
      _
    // Predicated region
    $region62: #{forward_device.1} parent=1 // pred_check
      _
    $region63: #{forward_device.1} parent=1 // pred_check_branch
      %161 = sbr.rel (0) target = $region65
    $region64: #{forward_device.1} parent=1 // pred_region
      _
    $region65: #{forward_device.1} parent=1 // pred_fallthru
      _
    // Predicated region
    $region66: #{forward_device.1} parent=1 // pred_check
      _
    $region67: #{forward_device.1} parent=1 // pred_check_branch
      %163 = sbr.rel (0) target = $region69
    $region68: #{forward_device.1} parent=1 // pred_region
      _
    $region69: #{forward_device.1} parent=1 // pred_fallthru
      _
    // Predicated region
    $region70: #{forward_device.1} parent=1 // pred_check
      _
    $region71: #{forward_device.1} parent=1 // pred_check_branch
      %165 = sbr.rel (0) target = $region73
    $region72: #{forward_device.1} parent=1 // pred_region
      _
    $region73: #{forward_device.1} parent=1 // pred_fallthru
      _
    // Predicated region
    $region74: #{forward_device.1} parent=1 // pred_check
      _
    $region75: #{forward_device.1} parent=1 // pred_check_branch
      %167 = sbr.rel (0) target = $region77
    $region76: #{forward_device.1} parent=1 // pred_region
      _
    $region77: #{forward_device.1} parent=1 // pred_fallthru
      _
    // Predicated region
    $region78: #{forward_device.1} parent=1 // pred_check
      _
    $region79: #{forward_device.1} parent=1 // pred_check_branch
      %169 = sbr.rel (0) target = $region81
    $region80: #{forward_device.1} parent=1 // pred_region
      _
    $region81: #{forward_device.1} parent=1 // pred_fallthru
      _
    // Predicated region
    $region82: #{forward_device.1} parent=1 // pred_check
      _
    $region83: #{forward_device.1} parent=1 // pred_check_branch
      %171 = sbr.rel (0) target = $region85
    $region84: #{forward_device.1} parent=1 // pred_region
      _
    $region85: #{forward_device.1} parent=1 // pred_fallthru
      _
    // Predicated region
    $region86: #{forward_device.1} parent=1 // pred_check
      _
    $region87: #{forward_device.1} parent=1 // pred_check_branch
      %173 = sbr.rel (0) target = $region89
    $region88: #{forward_device.1} parent=1 // pred_region
      _
    $region89: #{forward_device.1} parent=1 // pred_fallthru
      _
    // Predicated region
    $region90: #{forward_device.1} parent=1 // pred_check
      _
    $region91: #{forward_device.1} parent=1 // pred_check_branch
      %175 = sbr.rel (0) target = $region93
    $region92: #{forward_device.1} parent=1 // pred_region
      _
    $region93: #{forward_device.1} parent=1 // pred_fallthru
      _
    // Predicated region
    $region94: #{forward_device.1} parent=1 // pred_check
      _
    $region95: #{forward_device.1} parent=1 // pred_check_branch
      %177 = sbr.rel (0) target = $region97
    $region96: #{forward_device.1} parent=1 // pred_region
      _
    $region97: #{forward_device.1} parent=1 // pred_fallthru
      _
    // Predicated region
    $region98: #{forward_device.1} parent=1 // pred_check
      _
    $region99: #{forward_device.1} parent=1 // pred_check_branch
      %179 = sbr.rel (0) target = $region101
    $region100: #{forward_device.1} parent=1 // pred_region
      _
    $region101: #{forward_device.1} parent=1 // pred_fallthru
      _
    // Predicated region
    $region102: #{forward_device.1} parent=1 // pred_check
      _
    $region103: #{forward_device.1} parent=1 // pred_check_branch
      %181 = sbr.rel (0) target = $region105
    $region104: #{forward_device.1} parent=1 // pred_region
      _
    $region105: #{forward_device.1} parent=1 // pred_fallthru
      _
    // Predicated region
    $region106: #{forward_device.1} parent=1 // pred_check
      _
    $region107: #{forward_device.1} parent=1 // pred_check_branch
      %183 = sbr.rel (0) target = $region109
    $region108: #{forward_device.1} parent=1 // pred_region
      _
    $region109: #{forward_device.1} parent=1 // pred_fallthru
      _
    // Predicated region
    $region110: #{forward_device.1} parent=1 // pred_check
      _
    $region111: #{forward_device.1} parent=1 // pred_check_branch
      %185 = sbr.rel (0) target = $region113
    $region112: #{forward_device.1} parent=1 // pred_region
      _
    $region113: #{forward_device.1} parent=1 // pred_fallthru
      _
    // Predicated region
    $region114: #{forward_device.1} parent=1 // pred_check
      _
    $region115: #{forward_device.1} parent=1 // pred_check_branch
      %187 = sbr.rel (0) target = $region117
    $region116: #{forward_device.1} parent=1 // pred_region
      _
    $region117: #{forward_device.1} parent=1 // pred_fallthru
      _
    // Predicated region
    $region118: #{forward_device.1} parent=1 // pred_check
      _
    $region119: #{forward_device.1} parent=1 // pred_check_branch
      %189 = sbr.rel (0) target = $region121
    $region120: #{forward_device.1} parent=1 // pred_region
      _
    $region121: #{forward_device.1} parent=1 // pred_fallthru
      _
    // Predicated region
    $region122: #{forward_device.1} parent=1 // pred_check
      _
    $region123: #{forward_device.1} parent=1 // pred_check_branch
      %191 = sbr.rel (0) target = $region125
    $region124: #{forward_device.1} parent=1 // pred_region
      %s193 = ssub.s32 16, 16
      %194 = vsyncadd [#allocation3], %s193
      %s196 = sshll.u32 [#allocation2], 4
      %s197 = int_to_ptr.vmem [resolvable:$true] %s196
      %199 = dma.hbm_to_vmem [thread:$0]  %s61, 16, %s197, [#allocation3]
    $region125: #{forward_device.1} parent=1 // pred_fallthru
      _
    // Predicated region
    $region126: #{forward_device.1} parent=1 // pred_check
      _
    $region127: #{forward_device.1} parent=1 // pred_check_branch
      %201 = sbr.rel (0) target = $region129
    $region128: #{forward_device.1} parent=1 // pred_region
      %s203 = ssub.s32 16, 16
      %204 = vsyncadd [#allocation6], %s203
      %s206 = sshll.u32 [#allocation5], 4
      %s207 = int_to_ptr.vmem [resolvable:$true] %s206
      %209 = dma.hbm_to_vmem [thread:$0]  %s63, 16, %s207, [#allocation6]
    $region129: #{forward_device.1} parent=1 // pred_fallthru
      _
    // Predicated region
    $region130: #{forward_device.1} parent=1 // pred_check
      _
    $region131: #{forward_device.1} parent=1 // pred_check_branch
      %211 = sbr.rel (0) target = $region133
    $region132: #{forward_device.1} parent=1 // pred_region
      _
    $region133: #{forward_device.1} parent=1 // pred_fallthru
      _
    // Predicated region
    $region134: #{forward_device.1} parent=1 // pred_check
      _
    $region135: #{forward_device.1} parent=1 // pred_check_branch
      %213 = sbr.rel (0) target = $region137
    $region136: #{forward_device.1} parent=1 // pred_region
      %s215 = ssub.s32 16, 16
      %216 = vsyncadd [#allocation6], %s215
      %s218 = sshll.u32 [#allocation7], 4
      %s219 = int_to_ptr.vmem [resolvable:$true] %s218
      %221 = dma.hbm_to_vmem [thread:$0]  %s67, 16, %s219, [#allocation6]
    $region137: #{forward_device.1} parent=1 // pred_fallthru
      _
    // Predicated region
    $region138: #{forward_device.1} parent=1 // pred_check
      _
    $region139: #{forward_device.1} parent=1 // pred_check_branch
      %223 = sbr.rel (0) target = $region141
    $region140: #{forward_device.1} parent=1 // pred_region
      _
    $region141: #{forward_device.1} parent=1 // pred_fallthru
      _
    // Predicated region
    $region142: #{forward_device.1} parent=1 // pred_check
      _
    $region143: #{forward_device.1} parent=1 // pred_check_branch
      %225 = sbr.rel (0) target = $region145
    $region144: #{forward_device.1} parent=1 // pred_region
      %s227 = ssub.s32 16, 16
      %228 = vsyncadd [#allocation9], %s227
      %s230 = sshll.u32 [#allocation8], 4
      %s231 = int_to_ptr.vmem [resolvable:$true] %s230
      %233 = dma.hbm_to_vmem [thread:$0]  %s71, 16, %s231, [#allocation9]
    $region145: #{forward_device.1} parent=1 // pred_fallthru
      _
    // Predicated region
    $region146: #{forward_device.1} parent=1 // pred_check
      _
    $region147: #{forward_device.1} parent=1 // pred_check_branch
      %235 = sbr.rel (0) target = $region149
    $region148: #{forward_device.1} parent=1 // pred_region
      %s237 = ssub.s32 16, 16
      %238 = vsyncadd [#allocation9], %s237
      %s240 = sshll.u32 [#allocation10], 4
      %s241 = int_to_ptr.vmem [resolvable:$true] %s240
      %243 = dma.hbm_to_vmem [thread:$0]  %s73, 16, %s241, [#allocation9]
    $region149: #{forward_device.1} parent=1 // pred_fallthru
      _
    // Predicated region
    $region150: #{forward_device.1} parent=1 // pred_check
      _
    $region151: #{forward_device.1} parent=1 // pred_check_branch
      %245 = sbr.rel (0) target = $region153
    $region152: #{forward_device.1} parent=1 // pred_region
      %s247 = ssub.s32 16, 16
      %248 = vsyncadd [#allocation12], %s247
      %s250 = sshll.u32 [#allocation11], 4
      %s251 = int_to_ptr.vmem [resolvable:$true] %s250
      %253 = dma.hbm_to_vmem [thread:$0]  %s75, 16, %s251, [#allocation12]
    $region153: #{forward_device.1} parent=1 // pred_fallthru
      _
    // Predicated region
    $region154: #{forward_device.1} parent=1 // pred_check
      _
    $region155: #{forward_device.1} parent=1 // pred_check_branch
      %255 = sbr.rel (0) target = $region157
    $region156: #{forward_device.1} parent=1 // pred_region
      _
    $region157: #{forward_device.1} parent=1 // pred_fallthru
      _
    // Predicated region
    $region158: #{forward_device.1} parent=1 // pred_check
      _
    $region159: #{forward_device.1} parent=1 // pred_check_branch
      %257 = sbr.rel (0) target = $region161
    $region160: #{forward_device.1} parent=1 // pred_region
      %s259 = ssub.s32 16, 16
      %260 = vsyncadd [#allocation12], %s259
      %s262 = sshll.u32 [#allocation13], 4
      %s263 = int_to_ptr.vmem [resolvable:$true] %s262
      %265 = dma.hbm_to_vmem [thread:$0]  %s79, 16, %s263, [#allocation12]
    $region161: #{forward_device.1} parent=1 // pred_fallthru
      _
    // Predicated region
    $region162: #{forward_device.1} parent=1 // pred_check
      _
    $region163: #{forward_device.1} parent=1 // pred_check_branch
      %267 = sbr.rel (0) target = $region165
    $region164: #{forward_device.1} parent=1 // pred_region
      _
    $region165: #{forward_device.1} parent=1 // pred_fallthru
      _
    // Predicated region
    $region166: #{forward_device.1} parent=1 // pred_check
      _
    $region167: #{forward_device.1} parent=1 // pred_check_branch
      %269 = sbr.rel (0) target = $region169
    $region168: #{forward_device.1} parent=1 // pred_region
      %s271 = ssub.s32 16, 16
      %272 = vsyncadd [#allocation15], %s271
      %s274 = sshll.u32 [#allocation14], 4
      %s275 = int_to_ptr.vmem [resolvable:$true] %s274
      %277 = dma.hbm_to_vmem [thread:$0]  %s83, 16, %s275, [#allocation15]
    $region169: #{forward_device.1} parent=1 // pred_fallthru
      _
    // Predicated region
    $region170: #{forward_device.1} parent=1 // pred_check
      _
    $region171: #{forward_device.1} parent=1 // pred_check_branch
      %279 = sbr.rel (0) target = $region173
    $region172: #{forward_device.1} parent=1 // pred_region
      %s281 = ssub.s32 16, 16
      %282 = vsyncadd [#allocation15], %s281
      %s284 = sshll.u32 [#allocation16], 4
      %s285 = int_to_ptr.vmem [resolvable:$true] %s284
      %287 = dma.hbm_to_vmem [thread:$0]  %s85, 16, %s285, [#allocation15]
    $region173: #{forward_device.1} parent=1 // pred_fallthru
      _
    // Predicated region
    $region174: #{forward_device.1} parent=1 // pred_check
      _
    $region175: #{forward_device.1} parent=1 // pred_check_branch
      %289 = sbr.rel (0) target = $region177
    $region176: #{forward_device.1} parent=1 // pred_region
      %s291 = ssub.s32 16, 16
      %292 = vsyncadd [#allocation18], %s291
      %s294 = sshll.u32 [#allocation17], 4
      %s295 = int_to_ptr.vmem [resolvable:$true] %s294
      %297 = dma.hbm_to_vmem [thread:$0]  %s87, 16, %s295, [#allocation18]
    $region177: #{forward_device.1} parent=1 // pred_fallthru
      _
    // Predicated region
    $region178: #{forward_device.1} parent=1 // pred_check
      _
    $region179: #{forward_device.1} parent=1 // pred_check_branch
      %299 = sbr.rel (0) target = $region181
    $region180: #{forward_device.1} parent=1 // pred_region
      _
    $region181: #{forward_device.1} parent=1 // pred_fallthru
      _
    // Predicated region
    $region182: #{forward_device.1} parent=1 // pred_check
      _
    $region183: #{forward_device.1} parent=1 // pred_check_branch
      %301 = sbr.rel (0) target = $region185
    $region184: #{forward_device.1} parent=1 // pred_region
      _
    $region185: #{forward_device.1} parent=1 // pred_fallthru
      _
    // Predicated region
    $region186: #{forward_device.1} parent=1 // pred_check
      _
    $region187: #{forward_device.1} parent=1 // pred_check_branch
      %303 = sbr.rel (0) target = $region189
    $region188: #{forward_device.1} parent=1 // pred_region
      _
    $region189: #{forward_device.1} parent=1 // pred_fallthru
      _
    // Predicated region
    $region190: #{forward_device.1} parent=1 // pred_check
      _
    $region191: #{forward_device.1} parent=1 // pred_check_branch
      %305 = sbr.rel (0) target = $region193
    $region192: #{forward_device.1} parent=1 // pred_region
      %s307 = ssub.s32 16, 16
      %308 = vsyncadd [#allocation18], %s307
      %s310 = sshll.u32 [#allocation19], 4
      %s311 = int_to_ptr.vmem [resolvable:$true] %s310
      %313 = dma.hbm_to_vmem [thread:$0]  %s95, 16, %s311, [#allocation18]
    $region193: #{forward_device.1} parent=1 // pred_fallthru
      _
    // Predicated region
    $region194: #{forward_device.1} parent=1 // pred_check
      _
    $region195: #{forward_device.1} parent=1 // pred_check_branch
      %315 = sbr.rel (0) target = $region197
    $region196: #{forward_device.1} parent=1 // pred_region
      _
    $region197: #{forward_device.1} parent=1 // pred_fallthru
      _
    // Predicated region
    $region198: #{forward_device.1} parent=1 // pred_check
      _
    $region199: #{forward_device.1} parent=1 // pred_check_branch
      %317 = sbr.rel (0) target = $region201
    $region200: #{forward_device.1} parent=1 // pred_region
      %s319 = ssub.s32 16, 16
      %320 = vsyncadd [#allocation21], %s319
      %s322 = sshll.u32 [#allocation20], 4
      %s323 = int_to_ptr.vmem [resolvable:$true] %s322
      %325 = dma.hbm_to_vmem [thread:$0]  %s99, 16, %s323, [#allocation21]
    $region201: #{forward_device.1} parent=1 // pred_fallthru
      _
    // Predicated region
    $region202: #{forward_device.1} parent=1 // pred_check
      _
    $region203: #{forward_device.1} parent=1 // pred_check_branch
      %327 = sbr.rel (0) target = $region205
    $region204: #{forward_device.1} parent=1 // pred_region
      _
    $region205: #{forward_device.1} parent=1 // pred_fallthru
      _
    // Predicated region
    $region206: #{forward_device.1} parent=1 // pred_check
      _
    $region207: #{forward_device.1} parent=1 // pred_check_branch
      %329 = sbr.rel (0) target = $region209
    $region208: #{forward_device.1} parent=1 // pred_region
      %s331 = ssub.s32 16, 16
      %332 = vsyncadd [#allocation21], %s331
      %s334 = sshll.u32 [#allocation22], 4
      %s335 = int_to_ptr.vmem [resolvable:$true] %s334
      %337 = dma.hbm_to_vmem [thread:$0]  %s103, 16, %s335, [#allocation21]
    $region209: #{forward_device.1} parent=1 // pred_fallthru
      _
    // Predicated region
    $region210: #{forward_device.1} parent=1 // pred_check
      _
    $region211: #{forward_device.1} parent=1 // pred_check_branch
      %339 = sbr.rel (0) target = $region213
    $region212: #{forward_device.1} parent=1 // pred_region
      _
    $region213: #{forward_device.1} parent=1 // pred_fallthru
      _
    // Predicated region
    $region214: #{forward_device.1} parent=1 // pred_check
      _
    $region215: #{forward_device.1} parent=1 // pred_check_branch
      %341 = sbr.rel (0) target = $region217
    $region216: #{forward_device.1} parent=1 // pred_region
      %s343 = ssub.s32 16, 16
      %344 = vsyncadd [#allocation24], %s343
      %s346 = sshll.u32 [#allocation23], 4
      %s347 = int_to_ptr.vmem [resolvable:$true] %s346
      %349 = dma.hbm_to_vmem [thread:$0]  %s107, 16, %s347, [#allocation24]
    $region217: #{forward_device.1} parent=1 // pred_fallthru
      _
    // Predicated region
    $region218: #{forward_device.1} parent=1 // pred_check
      _
    $region219: #{forward_device.1} parent=1 // pred_check_branch
      %351 = sbr.rel (0) target = $region221
    $region220: #{forward_device.1} parent=1 // pred_region
      _
    $region221: #{forward_device.1} parent=1 // pred_fallthru
      _
    // Predicated region
    $region222: #{forward_device.1} parent=1 // pred_check
      _
    $region223: #{forward_device.1} parent=1 // pred_check_branch
      %353 = sbr.rel (0) target = $region225
    $region224: #{forward_device.1} parent=1 // pred_region
      %s355 = ssub.s32 16, 16
      %356 = vsyncadd [#allocation24], %s355
      %s358 = sshll.u32 [#allocation25], 4
      %s359 = int_to_ptr.vmem [resolvable:$true] %s358
      %361 = dma.hbm_to_vmem [thread:$0]  %s111, 16, %s359, [#allocation24]
    $region225: #{forward_device.1} parent=1 // pred_fallthru
      _
    // Predicated region
    $region226: #{forward_device.1} parent=1 // pred_check
      _
    $region227: #{forward_device.1} parent=1 // pred_check_branch
      %363 = sbr.rel (0) target = $region229
    $region228: #{forward_device.1} parent=1 // pred_region
      %364 = dma.done [#allocation3], 16
    $region229: #{forward_device.1} parent=1 // pred_fallthru
      _
    // Predicated region
    $region230: #{forward_device.1} parent=1 // pred_check
      _
    $region231: #{forward_device.1} parent=1 // pred_check_branch
      %366 = sbr.rel (0) target = $region233
    $region232: #{forward_device.1} parent=1 // pred_region
      %367 = dma.done [#allocation6], 16
    $region233: #{forward_device.1} parent=1 // pred_fallthru
      _
    // Predicated region
    $region234: #{forward_device.1} parent=1 // pred_check
      _
    $region235: #{forward_device.1} parent=1 // pred_check_branch
      %369 = sbr.rel (0) target = $region237
    $region236: #{forward_device.1} parent=1 // pred_region
      %370 = dma.done [#allocation6], 16
    $region237: #{forward_device.1} parent=1 // pred_fallthru
      _
    // Predicated region
    $region238: #{forward_device.1} parent=1 // pred_check
      _
    $region239: #{forward_device.1} parent=1 // pred_check_branch
      %372 = sbr.rel (0) target = $region241
    $region240: #{forward_device.1} parent=1 // pred_region
      %373 = dma.done [#allocation9], 16
    $region241: #{forward_device.1} parent=1 // pred_fallthru
      _
    // Predicated region
    $region242: #{forward_device.1} parent=1 // pred_check
      _
    $region243: #{forward_device.1} parent=1 // pred_check_branch
      %375 = sbr.rel (0) target = $region245
    $region244: #{forward_device.1} parent=1 // pred_region
      %376 = dma.done [#allocation9], 16
    $region245: #{forward_device.1} parent=1 // pred_fallthru
      _
    // Predicated region
    $region246: #{forward_device.1} parent=1 // pred_check
      _
    $region247: #{forward_device.1} parent=1 // pred_check_branch
      %378 = sbr.rel (0) target = $region249
    $region248: #{forward_device.1} parent=1 // pred_region
      %379 = dma.done [#allocation12], 16
    $region249: #{forward_device.1} parent=1 // pred_fallthru
      _
    // Predicated region
    $region250: #{forward_device.1} parent=1 // pred_check
      _
    $region251: #{forward_device.1} parent=1 // pred_check_branch
      %381 = sbr.rel (0) target = $region253
    $region252: #{forward_device.1} parent=1 // pred_region
      %382 = dma.done [#allocation12], 16
    $region253: #{forward_device.1} parent=1 // pred_fallthru
      _
    // Predicated region
    $region254: #{forward_device.1} parent=1 // pred_check
      _
    $region255: #{forward_device.1} parent=1 // pred_check_branch
      %384 = sbr.rel (0) target = $region257
    $region256: #{forward_device.1} parent=1 // pred_region
      %385 = dma.done [#allocation15], 16
    $region257: #{forward_device.1} parent=1 // pred_fallthru
      _
    // Predicated region
    $region258: #{forward_device.1} parent=1 // pred_check
      _
    $region259: #{forward_device.1} parent=1 // pred_check_branch
      %387 = sbr.rel (0) target = $region261
    $region260: #{forward_device.1} parent=1 // pred_region
      %388 = dma.done [#allocation15], 16
    $region261: #{forward_device.1} parent=1 // pred_fallthru
      _
    // Predicated region
    $region262: #{forward_device.1} parent=1 // pred_check
      _
    $region263: #{forward_device.1} parent=1 // pred_check_branch
      %390 = sbr.rel (0) target = $region265
    $region264: #{forward_device.1} parent=1 // pred_region
      %391 = dma.done [#allocation18], 16
    $region265: #{forward_device.1} parent=1 // pred_fallthru
      _
    // Predicated region
    $region266: #{forward_device.1} parent=1 // pred_check
      _
    $region267: #{forward_device.1} parent=1 // pred_check_branch
      %393 = sbr.rel (0) target = $region269
    $region268: #{forward_device.1} parent=1 // pred_region
      %394 = dma.done [#allocation18], 16
    $region269: #{forward_device.1} parent=1 // pred_fallthru
      _
    // Predicated region
    $region270: #{forward_device.1} parent=1 // pred_check
      _
    $region271: #{forward_device.1} parent=1 // pred_check_branch
      %396 = sbr.rel (0) target = $region273
    $region272: #{forward_device.1} parent=1 // pred_region
      %397 = dma.done [#allocation21], 16
    $region273: #{forward_device.1} parent=1 // pred_fallthru
      _
    // Predicated region
    $region274: #{forward_device.1} parent=1 // pred_check
      _
    $region275: #{forward_device.1} parent=1 // pred_check_branch
      %399 = sbr.rel (0) target = $region277
    $region276: #{forward_device.1} parent=1 // pred_region
      %400 = dma.done [#allocation21], 16
    $region277: #{forward_device.1} parent=1 // pred_fallthru
      _
    // Predicated region
    $region278: #{forward_device.1} parent=1 // pred_check
      _
    $region279: #{forward_device.1} parent=1 // pred_check_branch
      %402 = sbr.rel (0) target = $region281
    $region280: #{forward_device.1} parent=1 // pred_region
      %403 = dma.done [#allocation24], 16
    $region281: #{forward_device.1} parent=1 // pred_fallthru
      _
    // Predicated region
    $region282: #{forward_device.1} parent=1 // pred_check
      _
    $region283: #{forward_device.1} parent=1 // pred_check_branch
      %405 = sbr.rel (0) target = $region285
    $region284: #{forward_device.1} parent=1 // pred_region
      %406 = dma.done [#allocation24], 16
    $region285: #{forward_device.1} parent=1 // pred_fallthru
      _
    %v407 = vld [vmem:[%s1] sm:$0xff]
    %v408 = vld [vmem:[%s3] sm:$0xff]
    %v409 = vld [vmem:[%s5] sm:$0xf]
    %v410 = vld [vmem:[%s7] sm:$0x1]
    %v411 = vld [vmem:[%s9] sm:$0xf]
    %v412 = vld [vmem:[%s11] sm:$0x1]
    %v414 = vlaneseq
    %v415 = vshrl.u32 %v414, 7
    %v416 = vsub.s32 0, %v415
    %v417 = vrot.slane %v412, %v416
    %vm419 = vcmask 31744
    %v421 = vsel %vm419, %v407, 0
    %vm423 = vcmask 1043456
    %v425 = vsel %vm423, %v411, 0
    %427 = vmatprep.subr.mxu0 0.0
    %428 = vmatpush1.msra.mxu0 0.0
    %429 = vmatprep.subr.mxu0 0.0
    %430 = vmatpush1.msra.mxu0 0.0
    %431 = vmatprep.subr.mxu0 0.0
    %432 = vmatpush1.msra.mxu0 0.0
    %433 = vmatprep.subr.mxu0 0.0
    %434 = vmatpush1.msra.mxu0 0.0
    %435 = vmatprep.subr.mxu0 0.0
    %436 = vmatpush1.msra.mxu0 0.0
    %437 = vmatprep.subr.mxu0 0.0
    %438 = vmatpush1.msra.mxu0 0.0
    %439 = vmatprep.subr.mxu0 0.0
    %440 = vmatpush1.msra.mxu0 0.0
    %441 = vmatprep.subr.mxu0 0.0
    %442 = vmatpush1.msra.mxu0 0.0
    %443 = vmatprep.subr.mxu0 0.0
    %444 = vmatpush1.msra.mxu0 0.0
    %445 = vmatprep.subr.mxu0 0.0
    %446 = vmatpush1.msra.mxu0 0.0
    %447 = vmatprep.subr.mxu0 0.0
    %448 = vmatpush1.msra.mxu0 0.0
    %449 = vmatprep.subr.mxu0 0.0
    %450 = vmatpush1.msra.mxu0 0.0
    %451 = vmatprep.subr.mxu0 0.0
    %452 = vmatpush1.msra.mxu0 0.0
    %453 = vmatprep.subr.mxu0 0.0
    %454 = vmatpush1.msra.mxu0 0.0
    %455 = vmatprep.subr.mxu0 0.0
    %456 = vmatpush1.msra.mxu0 0.0
    %457 = vmatprep.subr.mxu0 0.0
    %458 = vmatpush1.msra.mxu0 %v425
    %459 = vmatprep.subr.mxu0 0.0
    %460 = vmatpush2.msra.mxu0 0.0
    %461 = vmatprep.subr.mxu0 0.0
    %462 = vmatpush2.msra.mxu0 0.0
    %463 = vmatprep.subr.mxu0 0.0
    %464 = vmatpush2.msra.mxu0 0.0
    %465 = vmatprep.subr.mxu0 0.0
    %466 = vmatpush2.msra.mxu0 0.0
    %467 = vmatprep.subr.mxu0 0.0
    %468 = vmatpush2.msra.mxu0 0.0
    %469 = vmatprep.subr.mxu0 0.0
    %470 = vmatpush2.msra.mxu0 0.0
    %471 = vmatprep.subr.mxu0 0.0
    %472 = vmatpush2.msra.mxu0 0.0
    %473 = vmatprep.subr.mxu0 0.0
    %474 = vmatpush2.msra.mxu0 0.0
    %475 = vmatprep.subr.mxu0 0.0
    %476 = vmatpush2.msra.mxu0 0.0
    %477 = vmatprep.subr.mxu0 0.0
    %478 = vmatpush2.msra.mxu0 0.0
    %479 = vmatprep.subr.mxu0 0.0
    %480 = vmatpush2.msra.mxu0 0.0
    %481 = vmatprep.subr.mxu0 0.0
    %482 = vmatpush2.msra.mxu0 0.0
    %483 = vmatprep.subr.mxu0 0.0
    %484 = vmatpush2.msra.mxu0 0.0
    %485 = vmatprep.subr.mxu0 0.0
    %486 = vmatpush2.msra.mxu0 0.0
    %487 = vmatprep.subr.mxu0 0.0
    %488 = vmatpush2.msra.mxu0 0.0
    %489 = vmatprep.subr.mxu0 0.0
    %490 = vmatpush2.msra.mxu0 0.0
    %491 = vmatprep.mubr.f32.mxu0 0.0
    %492 = vmatmul.mubr.f32.gmra.mxu0 %v421
    %v493 = vpop.f32.mrf.mxu0
    %v494 = vadd.f32 %v417, %v493
    %v495 = vpop.f32.mrf.mxu0
    %496 = vdwg.mxu0
    %v498 = vsel %vm423, %v409, 0
    %500 = vmatprep.subr.mxu0 0.0
    %501 = vmatpush1.msra.mxu0 0.0
    %502 = vmatprep.subr.mxu0 0.0
    %503 = vmatpush1.msra.mxu0 0.0
    %504 = vmatprep.subr.mxu0 0.0
    %505 = vmatpush1.msra.mxu0 0.0
    %506 = vmatprep.subr.mxu0 0.0
    %507 = vmatpush1.msra.mxu0 0.0
    %508 = vmatprep.subr.mxu0 0.0
    %509 = vmatpush1.msra.mxu0 0.0
    %510 = vmatprep.subr.mxu0 0.0
    %511 = vmatpush1.msra.mxu0 0.0
    %512 = vmatprep.subr.mxu0 0.0
    %513 = vmatpush1.msra.mxu0 0.0
    %514 = vmatprep.subr.mxu0 0.0
    %515 = vmatpush1.msra.mxu0 0.0
    %516 = vmatprep.subr.mxu0 0.0
    %517 = vmatpush1.msra.mxu0 0.0
    %518 = vmatprep.subr.mxu0 0.0
    %519 = vmatpush1.msra.mxu0 0.0
    %520 = vmatprep.subr.mxu0 0.0
    %521 = vmatpush1.msra.mxu0 0.0
    %522 = vmatprep.subr.mxu0 0.0
    %523 = vmatpush1.msra.mxu0 0.0
    %524 = vmatprep.subr.mxu0 0.0
    %525 = vmatpush1.msra.mxu0 0.0
    %526 = vmatprep.subr.mxu0 0.0
    %527 = vmatpush1.msra.mxu0 0.0
    %528 = vmatprep.subr.mxu0 0.0
    %529 = vmatpush1.msra.mxu0 0.0
    %530 = vmatprep.subr.mxu0 0.0
    %531 = vmatpush1.msra.mxu0 %v498
    %532 = vmatprep.subr.mxu0 0.0
    %533 = vmatpush2.msra.mxu0 0.0
    %534 = vmatprep.subr.mxu0 0.0
    %535 = vmatpush2.msra.mxu0 0.0
    %536 = vmatprep.subr.mxu0 0.0
    %537 = vmatpush2.msra.mxu0 0.0
    %538 = vmatprep.subr.mxu0 0.0
    %539 = vmatpush2.msra.mxu0 0.0
    %540 = vmatprep.subr.mxu0 0.0
    %541 = vmatpush2.msra.mxu0 0.0
    %542 = vmatprep.subr.mxu0 0.0
    %543 = vmatpush2.msra.mxu0 0.0
    %544 = vmatprep.subr.mxu0 0.0
    %545 = vmatpush2.msra.mxu0 0.0
    %546 = vmatprep.subr.mxu0 0.0
    %547 = vmatpush2.msra.mxu0 0.0
    %548 = vmatprep.subr.mxu0 0.0
    %549 = vmatpush2.msra.mxu0 0.0
    %550 = vmatprep.subr.mxu0 0.0
    %551 = vmatpush2.msra.mxu0 0.0
    %552 = vmatprep.subr.mxu0 0.0
    %553 = vmatpush2.msra.mxu0 0.0
    %554 = vmatprep.subr.mxu0 0.0
    %555 = vmatpush2.msra.mxu0 0.0
    %556 = vmatprep.subr.mxu0 0.0
    %557 = vmatpush2.msra.mxu0 0.0
    %558 = vmatprep.subr.mxu0 0.0
    %559 = vmatpush2.msra.mxu0 0.0
    %560 = vmatprep.subr.mxu0 0.0
    %561 = vmatpush2.msra.mxu0 0.0
    %562 = vmatprep.subr.mxu0 0.0
    %563 = vmatpush2.msra.mxu0 0.0
    %564 = vmatprep.mubr.f32.mxu0 0.0
    %565 = vmatmul.mubr.f32.gmra.mxu0 %v421
    %v566 = vpop.f32.mrf.mxu0
    %v567 = vadd.f32 0.0, %v566
    %v568 = vpop.f32.mrf.mxu0
    %569 = vdwg.mxu0
    %v571 = vlaneseq
    %v572 = vshrl.u32 %v571, 7
    %v573 = vsub.s32 0, %v572
    %v574 = vrot.slane %v410, %v573
    %vm576 = vcmask 64512
    %v578 = vsel %vm576, %v408, 0
    %580 = vmatprep.subr.mxu0 0.0
    %581 = vmatpush1.msra.mxu0 0.0
    %582 = vmatprep.subr.mxu0 0.0
    %583 = vmatpush1.msra.mxu0 0.0
    %584 = vmatprep.subr.mxu0 0.0
    %585 = vmatpush1.msra.mxu0 0.0
    %586 = vmatprep.subr.mxu0 0.0
    %587 = vmatpush1.msra.mxu0 0.0
    %588 = vmatprep.subr.mxu0 0.0
    %589 = vmatpush1.msra.mxu0 0.0
    %590 = vmatprep.subr.mxu0 0.0
    %591 = vmatpush1.msra.mxu0 0.0
    %592 = vmatprep.subr.mxu0 0.0
    %593 = vmatpush1.msra.mxu0 0.0
    %594 = vmatprep.subr.mxu0 0.0
    %595 = vmatpush1.msra.mxu0 0.0
    %596 = vmatprep.subr.mxu0 0.0
    %597 = vmatpush1.msra.mxu0 0.0
    %598 = vmatprep.subr.mxu0 0.0
    %599 = vmatpush1.msra.mxu0 0.0
    %600 = vmatprep.subr.mxu0 0.0
    %601 = vmatpush1.msra.mxu0 0.0
    %602 = vmatprep.subr.mxu0 0.0
    %603 = vmatpush1.msra.mxu0 0.0
    %604 = vmatprep.subr.mxu0 0.0
    %605 = vmatpush1.msra.mxu0 0.0
    %606 = vmatprep.subr.mxu0 0.0
    %607 = vmatpush1.msra.mxu0 0.0
    %608 = vmatprep.subr.mxu0 0.0
    %609 = vmatpush1.msra.mxu0 0.0
    %610 = vmatprep.subr.mxu0 0.0
    %611 = vmatpush1.msra.mxu0 %v567
    %612 = vmatprep.subr.mxu0 0.0
    %613 = vmatpush2.msra.mxu0 0.0
    %614 = vmatprep.subr.mxu0 0.0
    %615 = vmatpush2.msra.mxu0 0.0
    %616 = vmatprep.subr.mxu0 0.0
    %617 = vmatpush2.msra.mxu0 0.0
    %618 = vmatprep.subr.mxu0 0.0
    %619 = vmatpush2.msra.mxu0 0.0
    %620 = vmatprep.subr.mxu0 0.0
    %621 = vmatpush2.msra.mxu0 0.0
    %622 = vmatprep.subr.mxu0 0.0
    %623 = vmatpush2.msra.mxu0 0.0
    %624 = vmatprep.subr.mxu0 0.0
    %625 = vmatpush2.msra.mxu0 0.0
    %626 = vmatprep.subr.mxu0 0.0
    %627 = vmatpush2.msra.mxu0 0.0
    %628 = vmatprep.subr.mxu0 0.0
    %629 = vmatpush2.msra.mxu0 0.0
    %630 = vmatprep.subr.mxu0 0.0
    %631 = vmatpush2.msra.mxu0 0.0
    %632 = vmatprep.subr.mxu0 0.0
    %633 = vmatpush2.msra.mxu0 0.0
    %634 = vmatprep.subr.mxu0 0.0
    %635 = vmatpush2.msra.mxu0 0.0
    %636 = vmatprep.subr.mxu0 0.0
    %637 = vmatpush2.msra.mxu0 0.0
    %638 = vmatprep.subr.mxu0 0.0
    %639 = vmatpush2.msra.mxu0 0.0
    %640 = vmatprep.subr.mxu0 0.0
    %641 = vmatpush2.msra.mxu0 0.0
    %642 = vmatprep.subr.mxu0 0.0
    %643 = vmatpush2.msra.mxu0 0.0
    %644 = vmatprep.mubr.f32.mxu0 0.0
    %645 = vmatmul.mubr.f32.gmra.mxu0 %v578
    %v646 = vpop.f32.mrf.mxu0
    %v647 = vadd.f32 %v574, %v646
    %v648 = vpop.f32.mrf.mxu0
    %649 = vdwg.mxu0
    %vm650 = vcmp.gt.f32.partialorder %v647, 0.0
    %v651 = vmul.f32 %v647, 0.1
    %v652 = vsel %vm650, %v647, %v651
    %v653 = vadd.f32 %v652, %v494
    %vm654 = vcmp.gt.f32.partialorder %v653, 0.0
    %v655 = vmul.f32 %v653, 0.1
    %v656 = vsel %vm654, %v653, %v655
    %v657 = vld [vmem:[%s13] sm:$0xff]
    %v658 = vld [vmem:[%s13 + $0x8] sm:$0xff]
    %v659 = vld [vmem:[%s15] sm:$0x1]
    %v660 = vld [vmem:[%s17] sm:$0xff]
    %v661 = vld [vmem:[%s17 + $0x8] sm:$0xff]
    %v662 = vld [vmem:[%s19] sm:$0x1]
    %v664 = vlaneseq
    %v665 = vshrl.u32 %v664, 7
    %v666 = vsub.s32 0, %v665
    %v667 = vrot.slane %v662, %v666
    %vm669 = vcmask 130048
    %v671 = vsel %vm669, %v656, 0
    %673 = vmatprep.subr.mxu0 0.0
    %674 = vmatpush1.msra.mxu0 0.0
    %675 = vmatprep.subr.mxu0 0.0
    %676 = vmatpush1.msra.mxu0 0.0
    %677 = vmatprep.subr.mxu0 0.0
    %678 = vmatpush1.msra.mxu0 0.0
    %679 = vmatprep.subr.mxu0 0.0
    %680 = vmatpush1.msra.mxu0 0.0
    %681 = vmatprep.subr.mxu0 0.0
    %682 = vmatpush1.msra.mxu0 0.0
    %683 = vmatprep.subr.mxu0 0.0
    %684 = vmatpush1.msra.mxu0 0.0
    %685 = vmatprep.subr.mxu0 0.0
    %686 = vmatpush1.msra.mxu0 0.0
    %687 = vmatprep.subr.mxu0 0.0
    %688 = vmatpush1.msra.mxu0 0.0
    %689 = vmatprep.subr.mxu0 0.0
    %690 = vmatpush1.msra.mxu0 0.0
    %691 = vmatprep.subr.mxu0 0.0
    %692 = vmatpush1.msra.mxu0 0.0
    %693 = vmatprep.subr.mxu0 0.0
    %694 = vmatpush1.msra.mxu0 0.0
    %695 = vmatprep.subr.mxu0 0.0
    %696 = vmatpush1.msra.mxu0 0.0
    %697 = vmatprep.subr.mxu0 0.0
    %698 = vmatpush1.msra.mxu0 0.0
    %699 = vmatprep.subr.mxu0 0.0
    %700 = vmatpush1.msra.mxu0 0.0
    %701 = vmatprep.subr.mxu0 0.0
    %702 = vmatpush1.msra.mxu0 %v661
    %703 = vmatprep.subr.mxu0 0.0
    %704 = vmatpush1.msra.mxu0 %v660
    %705 = vmatprep.subr.mxu0 0.0
    %706 = vmatpush2.msra.mxu0 0.0
    %707 = vmatprep.subr.mxu0 0.0
    %708 = vmatpush2.msra.mxu0 0.0
    %709 = vmatprep.subr.mxu0 0.0
    %710 = vmatpush2.msra.mxu0 0.0
    %711 = vmatprep.subr.mxu0 0.0
    %712 = vmatpush2.msra.mxu0 0.0
    %713 = vmatprep.subr.mxu0 0.0
    %714 = vmatpush2.msra.mxu0 0.0
    %715 = vmatprep.subr.mxu0 0.0
    %716 = vmatpush2.msra.mxu0 0.0
    %717 = vmatprep.subr.mxu0 0.0
    %718 = vmatpush2.msra.mxu0 0.0
    %719 = vmatprep.subr.mxu0 0.0
    %720 = vmatpush2.msra.mxu0 0.0
    %721 = vmatprep.subr.mxu0 0.0
    %722 = vmatpush2.msra.mxu0 0.0
    %723 = vmatprep.subr.mxu0 0.0
    %724 = vmatpush2.msra.mxu0 0.0
    %725 = vmatprep.subr.mxu0 0.0
    %726 = vmatpush2.msra.mxu0 0.0
    %727 = vmatprep.subr.mxu0 0.0
    %728 = vmatpush2.msra.mxu0 0.0
    %729 = vmatprep.subr.mxu0 0.0
    %730 = vmatpush2.msra.mxu0 0.0
    %731 = vmatprep.subr.mxu0 0.0
    %732 = vmatpush2.msra.mxu0 0.0
    %733 = vmatprep.subr.mxu0 0.0
    %734 = vmatpush2.msra.mxu0 0.0
    %735 = vmatprep.subr.mxu0 0.0
    %736 = vmatpush2.msra.mxu0 0.0
    %737 = vmatprep.mubr.f32.mxu0 0.0
    %738 = vmatmul.mubr.f32.gmra.mxu0 %v671
    %v739 = vpop.f32.mrf.mxu0
    %v740 = vadd.f32 %v667, %v739
    %v741 = vpop.f32.mrf.mxu0
    %742 = vdwg.mxu0
    %743 = vmatprep.subr.mxu0 0.0
    %744 = vmatpush1.msra.mxu0 0.0
    %745 = vmatprep.subr.mxu0 0.0
    %746 = vmatpush1.msra.mxu0 0.0
    %747 = vmatprep.subr.mxu0 0.0
    %748 = vmatpush1.msra.mxu0 0.0
    %749 = vmatprep.subr.mxu0 0.0
    %750 = vmatpush1.msra.mxu0 0.0
    %751 = vmatprep.subr.mxu0 0.0
    %752 = vmatpush1.msra.mxu0 0.0
    %753 = vmatprep.subr.mxu0 0.0
    %754 = vmatpush1.msra.mxu0 0.0
    %755 = vmatprep.subr.mxu0 0.0
    %756 = vmatpush1.msra.mxu0 0.0
    %757 = vmatprep.subr.mxu0 0.0
    %758 = vmatpush1.msra.mxu0 0.0
    %759 = vmatprep.subr.mxu0 0.0
    %760 = vmatpush1.msra.mxu0 0.0
    %761 = vmatprep.subr.mxu0 0.0
    %762 = vmatpush1.msra.mxu0 0.0
    %763 = vmatprep.subr.mxu0 0.0
    %764 = vmatpush1.msra.mxu0 0.0
    %765 = vmatprep.subr.mxu0 0.0
    %766 = vmatpush1.msra.mxu0 0.0
    %767 = vmatprep.subr.mxu0 0.0
    %768 = vmatpush1.msra.mxu0 0.0
    %769 = vmatprep.subr.mxu0 0.0
    %770 = vmatpush1.msra.mxu0 0.0
    %771 = vmatprep.subr.mxu0 0.0
    %772 = vmatpush1.msra.mxu0 %v658
    %773 = vmatprep.subr.mxu0 0.0
    %774 = vmatpush1.msra.mxu0 %v657
    %775 = vmatprep.subr.mxu0 0.0
    %776 = vmatpush2.msra.mxu0 0.0
    %777 = vmatprep.subr.mxu0 0.0
    %778 = vmatpush2.msra.mxu0 0.0
    %779 = vmatprep.subr.mxu0 0.0
    %780 = vmatpush2.msra.mxu0 0.0
    %781 = vmatprep.subr.mxu0 0.0
    %782 = vmatpush2.msra.mxu0 0.0
    %783 = vmatprep.subr.mxu0 0.0
    %784 = vmatpush2.msra.mxu0 0.0
    %785 = vmatprep.subr.mxu0 0.0
    %786 = vmatpush2.msra.mxu0 0.0
    %787 = vmatprep.subr.mxu0 0.0
    %788 = vmatpush2.msra.mxu0 0.0
    %789 = vmatprep.subr.mxu0 0.0
    %790 = vmatpush2.msra.mxu0 0.0
    %791 = vmatprep.subr.mxu0 0.0
    %792 = vmatpush2.msra.mxu0 0.0
    %793 = vmatprep.subr.mxu0 0.0
    %794 = vmatpush2.msra.mxu0 0.0
    %795 = vmatprep.subr.mxu0 0.0
    %796 = vmatpush2.msra.mxu0 0.0
    %797 = vmatprep.subr.mxu0 0.0
    %798 = vmatpush2.msra.mxu0 0.0
    %799 = vmatprep.subr.mxu0 0.0
    %800 = vmatpush2.msra.mxu0 0.0
    %801 = vmatprep.subr.mxu0 0.0
    %802 = vmatpush2.msra.mxu0 0.0
    %803 = vmatprep.subr.mxu0 0.0
    %804 = vmatpush2.msra.mxu0 0.0
    %805 = vmatprep.subr.mxu0 0.0
    %806 = vmatpush2.msra.mxu0 0.0
    %807 = vmatprep.mubr.f32.mxu0 0.0
    %808 = vmatmul.mubr.f32.gmra.mxu0 %v671
    %v809 = vpop.f32.mrf.mxu0
    %v810 = vadd.f32 0.0, %v809
    %v811 = vpop.f32.mrf.mxu0
    %812 = vdwg.mxu0
    %v814 = vlaneseq
    %v815 = vshrl.u32 %v814, 7
    %v816 = vsub.s32 0, %v815
    %v817 = vrot.slane %v659, %v816
    %819 = vmatprep.subr.mxu0 0.0
    %820 = vmatpush1.msra.mxu0 0.0
    %821 = vmatprep.subr.mxu0 0.0
    %822 = vmatpush1.msra.mxu0 0.0
    %823 = vmatprep.subr.mxu0 0.0
    %824 = vmatpush1.msra.mxu0 0.0
    %825 = vmatprep.subr.mxu0 0.0
    %826 = vmatpush1.msra.mxu0 0.0
    %827 = vmatprep.subr.mxu0 0.0
    %828 = vmatpush1.msra.mxu0 0.0
    %829 = vmatprep.subr.mxu0 0.0
    %830 = vmatpush1.msra.mxu0 0.0
    %831 = vmatprep.subr.mxu0 0.0
    %832 = vmatpush1.msra.mxu0 0.0
    %833 = vmatprep.subr.mxu0 0.0
    %834 = vmatpush1.msra.mxu0 0.0
    %835 = vmatprep.subr.mxu0 0.0
    %836 = vmatpush1.msra.mxu0 0.0
    %837 = vmatprep.subr.mxu0 0.0
    %838 = vmatpush1.msra.mxu0 0.0
    %839 = vmatprep.subr.mxu0 0.0
    %840 = vmatpush1.msra.mxu0 0.0
    %841 = vmatprep.subr.mxu0 0.0
    %842 = vmatpush1.msra.mxu0 0.0
    %843 = vmatprep.subr.mxu0 0.0
    %844 = vmatpush1.msra.mxu0 0.0
    %845 = vmatprep.subr.mxu0 0.0
    %846 = vmatpush1.msra.mxu0 0.0
    %847 = vmatprep.subr.mxu0 0.0
    %848 = vmatpush1.msra.mxu0 0.0
    %849 = vmatprep.subr.mxu0 0.0
    %850 = vmatpush1.msra.mxu0 %v810
    %851 = vmatprep.subr.mxu0 0.0
    %852 = vmatpush2.msra.mxu0 0.0
    %853 = vmatprep.subr.mxu0 0.0
    %854 = vmatpush2.msra.mxu0 0.0
    %855 = vmatprep.subr.mxu0 0.0
    %856 = vmatpush2.msra.mxu0 0.0
    %857 = vmatprep.subr.mxu0 0.0
    %858 = vmatpush2.msra.mxu0 0.0
    %859 = vmatprep.subr.mxu0 0.0
    %860 = vmatpush2.msra.mxu0 0.0
    %861 = vmatprep.subr.mxu0 0.0
    %862 = vmatpush2.msra.mxu0 0.0
    %863 = vmatprep.subr.mxu0 0.0
    %864 = vmatpush2.msra.mxu0 0.0
    %865 = vmatprep.subr.mxu0 0.0
    %866 = vmatpush2.msra.mxu0 0.0
    %867 = vmatprep.subr.mxu0 0.0
    %868 = vmatpush2.msra.mxu0 0.0
    %869 = vmatprep.subr.mxu0 0.0
    %870 = vmatpush2.msra.mxu0 0.0
    %871 = vmatprep.subr.mxu0 0.0
    %872 = vmatpush2.msra.mxu0 0.0
    %873 = vmatprep.subr.mxu0 0.0
    %874 = vmatpush2.msra.mxu0 0.0
    %875 = vmatprep.subr.mxu0 0.0
    %876 = vmatpush2.msra.mxu0 0.0
    %877 = vmatprep.subr.mxu0 0.0
    %878 = vmatpush2.msra.mxu0 0.0
    %879 = vmatprep.subr.mxu0 0.0
    %880 = vmatpush2.msra.mxu0 0.0
    %881 = vmatprep.subr.mxu0 0.0
    %882 = vmatpush2.msra.mxu0 0.0
    %883 = vmatprep.mubr.f32.mxu0 0.0
    %884 = vmatmul.mubr.f32.gmra.mxu0 %v578
    %v885 = vpop.f32.mrf.mxu0
    %v886 = vadd.f32 %v817, %v885
    %v887 = vpop.f32.mrf.mxu0
    %888 = vdwg.mxu0
    %vm889 = vcmp.gt.f32.partialorder %v886, 0.0
    %v890 = vmul.f32 %v886, 0.1
    %v891 = vsel %vm889, %v886, %v890
    %v892 = vadd.f32 %v891, %v740
    %vm893 = vcmp.gt.f32.partialorder %v892, 0.0
    %v894 = vmul.f32 %v892, 0.1
    %v895 = vsel %vm893, %v892, %v894
    %v896 = vmul.f32 %v895, %v895
    %vm897 = vcmask 261120
    %v898 = vsel %vm897, %v896, 0.0
    %899 = vadd.xlane.f32.xlu0 %v898
    %v900 = vpop.xlane.xlu0 %899
    %v901 = vrsqrt.pop %v900
    %v902 = vmul.f32 %v900, %v901
    %vm903 = vcmp.eq.f32.partialorder %v900, inf
    %v904 = vsel %vm903, %v900, %v902
    %vm905 = vcmp.eq.f32.partialorder %v900, 0.0
    %v906 = vand.u32 %v900, 2147483648
    %v907 = vsel %vm905, %v906, %v904
    %v908 = vmax.f32 %v907, 1e-12
    %v909 = vrcp.pop %v908
    %v910 = vmul.f32 %v895, %v909
    %v911 = vld [vmem:[%s21] sm:$0xff]
    %v912 = vld [vmem:[%s23] sm:$0xff]
    %v913 = vld [vmem:[%s25] sm:$0xff]
    %v914 = vld [vmem:[%s25 + $0x8] sm:$0xff]
    %v915 = vld [vmem:[%s27] sm:$0x1]
    %v916 = vld [vmem:[%s29] sm:$0xff]
    %v917 = vld [vmem:[%s29 + $0x8] sm:$0xff]
    %v918 = vld [vmem:[%s31] sm:$0x1]
    %v920 = vlaneseq
    %v921 = vshrl.u32 %v920, 7
    %v922 = vsub.s32 0, %v921
    %v923 = vrot.slane %v915, %v922
    %v926 = vsel %vm669, %v911, 0
    %928 = vmatprep.subr.mxu0 0.0
    %929 = vmatpush1.msra.mxu0 0.0
    %930 = vmatprep.subr.mxu0 0.0
    %931 = vmatpush1.msra.mxu0 0.0
    %932 = vmatprep.subr.mxu0 0.0
    %933 = vmatpush1.msra.mxu0 0.0
    %934 = vmatprep.subr.mxu0 0.0
    %935 = vmatpush1.msra.mxu0 0.0
    %936 = vmatprep.subr.mxu0 0.0
    %937 = vmatpush1.msra.mxu0 0.0
    %938 = vmatprep.subr.mxu0 0.0
    %939 = vmatpush1.msra.mxu0 0.0
    %940 = vmatprep.subr.mxu0 0.0
    %941 = vmatpush1.msra.mxu0 0.0
    %942 = vmatprep.subr.mxu0 0.0
    %943 = vmatpush1.msra.mxu0 0.0
    %944 = vmatprep.subr.mxu0 0.0
    %945 = vmatpush1.msra.mxu0 0.0
    %946 = vmatprep.subr.mxu0 0.0
    %947 = vmatpush1.msra.mxu0 0.0
    %948 = vmatprep.subr.mxu0 0.0
    %949 = vmatpush1.msra.mxu0 0.0
    %950 = vmatprep.subr.mxu0 0.0
    %951 = vmatpush1.msra.mxu0 0.0
    %952 = vmatprep.subr.mxu0 0.0
    %953 = vmatpush1.msra.mxu0 0.0
    %954 = vmatprep.subr.mxu0 0.0
    %955 = vmatpush1.msra.mxu0 0.0
    %956 = vmatprep.subr.mxu0 0.0
    %957 = vmatpush1.msra.mxu0 %v914
    %958 = vmatprep.subr.mxu0 0.0
    %959 = vmatpush1.msra.mxu0 %v913
    %960 = vmatprep.subr.mxu0 0.0
    %961 = vmatpush2.msra.mxu0 0.0
    %962 = vmatprep.subr.mxu0 0.0
    %963 = vmatpush2.msra.mxu0 0.0
    %964 = vmatprep.subr.mxu0 0.0
    %965 = vmatpush2.msra.mxu0 0.0
    %966 = vmatprep.subr.mxu0 0.0
    %967 = vmatpush2.msra.mxu0 0.0
    %968 = vmatprep.subr.mxu0 0.0
    %969 = vmatpush2.msra.mxu0 0.0
    %970 = vmatprep.subr.mxu0 0.0
    %971 = vmatpush2.msra.mxu0 0.0
    %972 = vmatprep.subr.mxu0 0.0
    %973 = vmatpush2.msra.mxu0 0.0
    %974 = vmatprep.subr.mxu0 0.0
    %975 = vmatpush2.msra.mxu0 0.0
    %976 = vmatprep.subr.mxu0 0.0
    %977 = vmatpush2.msra.mxu0 0.0
    %978 = vmatprep.subr.mxu0 0.0
    %979 = vmatpush2.msra.mxu0 0.0
    %980 = vmatprep.subr.mxu0 0.0
    %981 = vmatpush2.msra.mxu0 0.0
    %982 = vmatprep.subr.mxu0 0.0
    %983 = vmatpush2.msra.mxu0 0.0
    %984 = vmatprep.subr.mxu0 0.0
    %985 = vmatpush2.msra.mxu0 0.0
    %986 = vmatprep.subr.mxu0 0.0
    %987 = vmatpush2.msra.mxu0 0.0
    %988 = vmatprep.subr.mxu0 0.0
    %989 = vmatpush2.msra.mxu0 0.0
    %990 = vmatprep.subr.mxu0 0.0
    %991 = vmatpush2.msra.mxu0 0.0
    %992 = vmatprep.mubr.f32.mxu0 0.0
    %993 = vmatmul.mubr.f32.gmra.mxu0 %v926
    %v994 = vpop.f32.mrf.mxu0
    %v995 = vadd.f32 %v923, %v994
    %v996 = vpop.f32.mrf.mxu0
    %997 = vdwg.mxu0
    %v999 = vlaneseq
    %v1000 = vshrl.u32 %v999, 7
    %v1001 = vsub.s32 0, %v1000
    %v1002 = vrot.slane %v918, %v1001
    %v1005 = vsel %vm669, %v912, 0
    %1007 = vmatprep.subr.mxu0 0.0
    %1008 = vmatpush1.msra.mxu0 0.0
    %1009 = vmatprep.subr.mxu0 0.0
    %1010 = vmatpush1.msra.mxu0 0.0
    %1011 = vmatprep.subr.mxu0 0.0
    %1012 = vmatpush1.msra.mxu0 0.0
    %1013 = vmatprep.subr.mxu0 0.0
    %1014 = vmatpush1.msra.mxu0 0.0
    %1015 = vmatprep.subr.mxu0 0.0
    %1016 = vmatpush1.msra.mxu0 0.0
    %1017 = vmatprep.subr.mxu0 0.0
    %1018 = vmatpush1.msra.mxu0 0.0
    %1019 = vmatprep.subr.mxu0 0.0
    %1020 = vmatpush1.msra.mxu0 0.0
    %1021 = vmatprep.subr.mxu0 0.0
    %1022 = vmatpush1.msra.mxu0 0.0
    %1023 = vmatprep.subr.mxu0 0.0
    %1024 = vmatpush1.msra.mxu0 0.0
    %1025 = vmatprep.subr.mxu0 0.0
    %1026 = vmatpush1.msra.mxu0 0.0
    %1027 = vmatprep.subr.mxu0 0.0
    %1028 = vmatpush1.msra.mxu0 0.0
    %1029 = vmatprep.subr.mxu0 0.0
    %1030 = vmatpush1.msra.mxu0 0.0
    %1031 = vmatprep.subr.mxu0 0.0
    %1032 = vmatpush1.msra.mxu0 0.0
    %1033 = vmatprep.subr.mxu0 0.0
    %1034 = vmatpush1.msra.mxu0 0.0
    %1035 = vmatprep.subr.mxu0 0.0
    %1036 = vmatpush1.msra.mxu0 %v917
    %1037 = vmatprep.subr.mxu0 0.0
    %1038 = vmatpush1.msra.mxu0 %v916
    %1039 = vmatprep.subr.mxu0 0.0
    %1040 = vmatpush2.msra.mxu0 0.0
    %1041 = vmatprep.subr.mxu0 0.0
    %1042 = vmatpush2.msra.mxu0 0.0
    %1043 = vmatprep.subr.mxu0 0.0
    %1044 = vmatpush2.msra.mxu0 0.0
    %1045 = vmatprep.subr.mxu0 0.0
    %1046 = vmatpush2.msra.mxu0 0.0
    %1047 = vmatprep.subr.mxu0 0.0
    %1048 = vmatpush2.msra.mxu0 0.0
    %1049 = vmatprep.subr.mxu0 0.0
    %1050 = vmatpush2.msra.mxu0 0.0
    %1051 = vmatprep.subr.mxu0 0.0
    %1052 = vmatpush2.msra.mxu0 0.0
    %1053 = vmatprep.subr.mxu0 0.0
    %1054 = vmatpush2.msra.mxu0 0.0
    %1055 = vmatprep.subr.mxu0 0.0
    %1056 = vmatpush2.msra.mxu0 0.0
    %1057 = vmatprep.subr.mxu0 0.0
    %1058 = vmatpush2.msra.mxu0 0.0
    %1059 = vmatprep.subr.mxu0 0.0
    %1060 = vmatpush2.msra.mxu0 0.0
    %1061 = vmatprep.subr.mxu0 0.0
    %1062 = vmatpush2.msra.mxu0 0.0
    %1063 = vmatprep.subr.mxu0 0.0
    %1064 = vmatpush2.msra.mxu0 0.0
    %1065 = vmatprep.subr.mxu0 0.0
    %1066 = vmatpush2.msra.mxu0 0.0
    %1067 = vmatprep.subr.mxu0 0.0
    %1068 = vmatpush2.msra.mxu0 0.0
    %1069 = vmatprep.subr.mxu0 0.0
    %1070 = vmatpush2.msra.mxu0 0.0
    %1071 = vmatprep.mubr.f32.mxu0 0.0
    %1072 = vmatmul.mubr.f32.gmra.mxu0 %v1005
    %v1073 = vpop.f32.mrf.mxu0
    %v1074 = vadd.f32 %v1002, %v1073
    %v1075 = vpop.f32.mrf.mxu0
    %1076 = vdwg.mxu0
    %1078 = vrot.lane.b32.xlu0 %v1074, 16
    %v1079 = vpop.permute.xlu0 %1078
    %v1081 = vsel %vm669, %v995, %v1079
    %v1082 = vadd.f32 %v910, %v1081
    %v1083 = vld [vmem:[%s33] sm:$0xff]
    %v1084 = vld [vmem:[%s33 + $0x8] sm:$0x3]
    %v1085 = vld [vmem:[%s35] sm:$0xff]
    %v1086 = vld [vmem:[%s35 + $0x8] sm:$0x3]
    %v1087 = vld [vmem:[%s37] sm:$0x1]
    %1089 = vset.pattern.permute.xlu0 0
    %1090 = vperm.xlu0 %1089, %v1085
    %v1091 = vpop.permute.xlu0 %1090
    %1094 = vset.pattern.permute.xlu0 0
    %1095 = vperm.xlu0 %1094, %v1086
    %v1096 = vpop.permute.xlu0 %1095
    %v1099 = vlaneseq
    %v1100 = vshrl.u32 %v1099, 7
    %v1101 = vsub.s32 0, %v1100
    %v1102 = vrot.slane %v1087, %v1101
    %v1104 = vmul.f32 %v1091, %v1102
    %v1105 = vmul.f32 %v1096, %v1102
    %v1107 = vsel %vm576, %v1083, 0
    %v1110 = vsel %vm576, %v1084, 0
    %1112 = vmatprep.subr.mxu0 0.0
    %1113 = vmatpush1.msra.mxu0 0.0
    %1114 = vmatprep.subr.mxu0 0.0
    %1115 = vmatpush1.msra.mxu0 0.0
    %1116 = vmatprep.subr.mxu0 0.0
    %1117 = vmatpush1.msra.mxu0 0.0
    %1118 = vmatprep.subr.mxu0 0.0
    %1119 = vmatpush1.msra.mxu0 0.0
    %1120 = vmatprep.subr.mxu0 0.0
    %1121 = vmatpush1.msra.mxu0 0.0
    %1122 = vmatprep.subr.mxu0 0.0
    %1123 = vmatpush1.msra.mxu0 0.0
    %1124 = vmatprep.subr.mxu0 0.0
    %1125 = vmatpush1.msra.mxu0 0.0
    %1126 = vmatprep.subr.mxu0 0.0
    %1127 = vmatpush1.msra.mxu0 0.0
    %1128 = vmatprep.subr.mxu0 0.0
    %1129 = vmatpush1.msra.mxu0 0.0
    %1130 = vmatprep.subr.mxu0 0.0
    %1131 = vmatpush1.msra.mxu0 0.0
    %1132 = vmatprep.subr.mxu0 0.0
    %1133 = vmatpush1.msra.mxu0 0.0
    %1134 = vmatprep.subr.mxu0 0.0
    %1135 = vmatpush1.msra.mxu0 0.0
    %1136 = vmatprep.subr.mxu0 0.0
    %1137 = vmatpush1.msra.mxu0 0.0
    %1138 = vmatprep.subr.mxu0 0.0
    %1139 = vmatpush1.msra.mxu0 0.0
    %1140 = vmatprep.subr.mxu0 0.0
    %1141 = vmatpush1.msra.mxu0 0.0
    %1142 = vmatprep.subr.mxu0 0.0
    %1143 = vmatpush1.msra.mxu0 %v1082
    %1144 = vmatprep.subr.mxu0 0.0
    %1145 = vmatpush2.msra.mxu0 0.0
    %1146 = vmatprep.subr.mxu0 0.0
    %1147 = vmatpush2.msra.mxu0 0.0
    %1148 = vmatprep.subr.mxu0 0.0
    %1149 = vmatpush2.msra.mxu0 0.0
    %1150 = vmatprep.subr.mxu0 0.0
    %1151 = vmatpush2.msra.mxu0 0.0
    %1152 = vmatprep.subr.mxu0 0.0
    %1153 = vmatpush2.msra.mxu0 0.0
    %1154 = vmatprep.subr.mxu0 0.0
    %1155 = vmatpush2.msra.mxu0 0.0
    %1156 = vmatprep.subr.mxu0 0.0
    %1157 = vmatpush2.msra.mxu0 0.0
    %1158 = vmatprep.subr.mxu0 0.0
    %1159 = vmatpush2.msra.mxu0 0.0
    %1160 = vmatprep.subr.mxu0 0.0
    %1161 = vmatpush2.msra.mxu0 0.0
    %1162 = vmatprep.subr.mxu0 0.0
    %1163 = vmatpush2.msra.mxu0 0.0
    %1164 = vmatprep.subr.mxu0 0.0
    %1165 = vmatpush2.msra.mxu0 0.0
    %1166 = vmatprep.subr.mxu0 0.0
    %1167 = vmatpush2.msra.mxu0 0.0
    %1168 = vmatprep.subr.mxu0 0.0
    %1169 = vmatpush2.msra.mxu0 0.0
    %1170 = vmatprep.subr.mxu0 0.0
    %1171 = vmatpush2.msra.mxu0 0.0
    %1172 = vmatprep.subr.mxu0 0.0
    %1173 = vmatpush2.msra.mxu0 0.0
    %1174 = vmatprep.subr.mxu0 0.0
    %1175 = vmatpush2.msra.mxu0 0.0
    %1176 = vmatprep.mubr.f32.mxu0 0.0
    %1177 = vmatmul.mubr.f32.gmra.mxu0 %v1107
    %v1178 = vpop.f32.mrf.mxu0
    %v1179 = vadd.f32 %v1104, %v1178
    %v1180 = vpop.f32.mrf.mxu0
    %1181 = vmatprep.mubr.f32.mxu0 0.0
    %1182 = vmatmul.mubr.f32.gmra.mxu0 %v1110
    %v1183 = vpop.f32.mrf.mxu0
    %v1184 = vadd.f32 %v1105, %v1183
    %v1185 = vpop.f32.mrf.mxu0
    %1186 = vdwg.mxu0
    %v1187 = vld [vmem:[%s39] sm:$0xff]
    %v1188 = vld [vmem:[%s39 + $0x8] sm:$0x3]
    %v1189 = vld [vmem:[%s41] sm:$0xff]
    %v1190 = vld [vmem:[%s41 + $0x8] sm:$0xff]
    %v1191 = vld [vmem:[%s41 + $0x10] sm:$0xff]
    %v1192 = vld [vmem:[%s41 + $0x18] sm:$0xff]
    %v1193 = vld [vmem:[%s43] sm:$0x1]
    %v1194 = vld [vmem:[%s45] sm:$0xff]
    %v1195 = vld [vmem:[%s45 + $0x8] sm:$0xff]
    %v1196 = vld [vmem:[%s45 + $0x10] sm:$0xff]
    %v1197 = vld [vmem:[%s45 + $0x18] sm:$0xff]
    %v1198 = vld [vmem:[%s47] sm:$0x1]
    %v1199 = vld [vmem:[%s49] sm:$0x1]
    %v1200 = vld [vmem:[%s51] sm:$0x1]
    %v1201 = vld [vmem:[%s53] sm:$0xff]
    %v1202 = vld [vmem:[%s53 + $0x8] sm:$0xff]
    %v1203 = vld [vmem:[%s53 + $0x10] sm:$0xff]
    %v1204 = vld [vmem:[%s53 + $0x18] sm:$0xff]
    %v1205 = vld [vmem:[%s55] sm:$0x1]
    %v1206 = vld [vmem:[%s57] sm:$0xff]
    %v1207 = vld [vmem:[%s57 + $0x8] sm:$0xff]
    %v1208 = vld [vmem:[%s57 + $0x10] sm:$0xff]
    %v1209 = vld [vmem:[%s57 + $0x18] sm:$0xff]
    %v1210 = vld [vmem:[%s57 + $0x20] sm:$0xff]
    %v1211 = vld [vmem:[%s57 + $0x28] sm:$0xff]
    %v1212 = vld [vmem:[%s57 + $0x30] sm:$0xff]
    %v1213 = vld [vmem:[%s57 + $0x38] sm:$0xff]
    %v1214 = vld [vmem:[%s57 + $0x40] sm:$0xff]
    %v1215 = vld [vmem:[%s57 + $0x48] sm:$0xff]
    %v1216 = vld [vmem:[%s57 + $0x50] sm:$0xff]
    %v1217 = vld [vmem:[%s57 + $0x58] sm:$0xff]
    %v1218 = vld [vmem:[%s57 + $0x60] sm:$0xff]
    %v1219 = vld [vmem:[%s57 + $0x68] sm:$0xff]
    %v1220 = vld [vmem:[%s57 + $0x70] sm:$0xff]
    %v1221 = vld [vmem:[%s57 + $0x78] sm:$0xff]
    %v1222 = vld [vmem:[%s59] sm:$0x1]
    %v1223 = vld [vmem:[#allocation2] sm:$0x1]
    %v1224 = vld [vmem:[#allocation5] sm:$0x1]
    %v1226 = vlaneseq
    %v1227 = vshrl.u32 %v1226, 7
    %v1228 = vsub.s32 0, %v1227
    %v1229 = vrot.slane %v1193, %v1228
    %v1232 = vsel %vm897, %v1179, 0
    %v1235 = vsel %vm897, %v1184, 0
    %1237 = vmatprep.subr.mxu0 0.0
    %1238 = vmatpush1.msra.mxu0 0.0
    %1239 = vmatprep.subr.mxu0 0.0
    %1240 = vmatpush1.msra.mxu0 0.0
    %1241 = vmatprep.subr.mxu0 0.0
    %1242 = vmatpush1.msra.mxu0 0.0
    %1243 = vmatprep.subr.mxu0 0.0
    %1244 = vmatpush1.msra.mxu0 0.0
    %1245 = vmatprep.subr.mxu0 0.0
    %1246 = vmatpush1.msra.mxu0 0.0
    %1247 = vmatprep.subr.mxu0 0.0
    %1248 = vmatpush1.msra.mxu0 0.0
    %1249 = vmatprep.subr.mxu0 0.0
    %1250 = vmatpush1.msra.mxu0 0.0
    %1251 = vmatprep.subr.mxu0 0.0
    %1252 = vmatpush1.msra.mxu0 0.0
    %1253 = vmatprep.subr.mxu0 0.0
    %1254 = vmatpush1.msra.mxu0 0.0
    %1255 = vmatprep.subr.mxu0 0.0
    %1256 = vmatpush1.msra.mxu0 0.0
    %1257 = vmatprep.subr.mxu0 0.0
    %1258 = vmatpush1.msra.mxu0 0.0
    %1259 = vmatprep.subr.mxu0 0.0
    %1260 = vmatpush1.msra.mxu0 0.0
    %1261 = vmatprep.subr.mxu0 0.0
    %1262 = vmatpush1.msra.mxu0 %v1192
    %1263 = vmatprep.subr.mxu0 0.0
    %1264 = vmatpush1.msra.mxu0 %v1191
    %1265 = vmatprep.subr.mxu0 0.0
    %1266 = vmatpush1.msra.mxu0 %v1190
    %1267 = vmatprep.subr.mxu0 0.0
    %1268 = vmatpush1.msra.mxu0 %v1189
    %1269 = vmatprep.subr.mxu0 0.0
    %1270 = vmatpush2.msra.mxu0 0.0
    %1271 = vmatprep.subr.mxu0 0.0
    %1272 = vmatpush2.msra.mxu0 0.0
    %1273 = vmatprep.subr.mxu0 0.0
    %1274 = vmatpush2.msra.mxu0 0.0
    %1275 = vmatprep.subr.mxu0 0.0
    %1276 = vmatpush2.msra.mxu0 0.0
    %1277 = vmatprep.subr.mxu0 0.0
    %1278 = vmatpush2.msra.mxu0 0.0
    %1279 = vmatprep.subr.mxu0 0.0
    %1280 = vmatpush2.msra.mxu0 0.0
    %1281 = vmatprep.subr.mxu0 0.0
    %1282 = vmatpush2.msra.mxu0 0.0
    %1283 = vmatprep.subr.mxu0 0.0
    %1284 = vmatpush2.msra.mxu0 0.0
    %1285 = vmatprep.subr.mxu0 0.0
    %1286 = vmatpush2.msra.mxu0 0.0
    %1287 = vmatprep.subr.mxu0 0.0
    %1288 = vmatpush2.msra.mxu0 0.0
    %1289 = vmatprep.subr.mxu0 0.0
    %1290 = vmatpush2.msra.mxu0 0.0
    %1291 = vmatprep.subr.mxu0 0.0
    %1292 = vmatpush2.msra.mxu0 0.0
    %1293 = vmatprep.subr.mxu0 0.0
    %1294 = vmatpush2.msra.mxu0 0.0
    %1295 = vmatprep.subr.mxu0 0.0
    %1296 = vmatpush2.msra.mxu0 0.0
    %1297 = vmatprep.subr.mxu0 0.0
    %1298 = vmatpush2.msra.mxu0 0.0
    %1299 = vmatprep.subr.mxu0 0.0
    %1300 = vmatpush2.msra.mxu0 0.0
    %1301 = vmatprep.mubr.f32.mxu0 0.0
    %1302 = vmatmul.mubr.f32.gmra.mxu0 %v1232
    %v1303 = vpop.f32.mrf.mxu0
    %v1304 = vadd.f32 %v1229, %v1303
    %v1305 = vpop.f32.mrf.mxu0
    %1306 = vmatprep.mubr.f32.mxu0 0.0
    %1307 = vmatmul.mubr.f32.gmra.mxu0 %v1235
    %v1308 = vpop.f32.mrf.mxu0
    %v1309 = vadd.f32 %v1229, %v1308
    %v1310 = vpop.f32.mrf.mxu0
    %1311 = vdwg.mxu0
    %1314 = vrot.lane.b32.xlu0 %v1304, 96
    %v1315 = vpop.permute.xlu0 %1314
    %1316 = vrot.lane.b32.xlu0 %v1309, 96
    %v1317 = vpop.permute.xlu0 %1316
    %v1318 = vsel %vm576, %v1304, 0
    %v1320 = vsel %vm576, %v1309, 0
    %v1322 = vsel %vm576, %v1315, 0
    %v1324 = vsel %vm576, %v1317, 0
    %1326 = vmatprep.subr.mxu0 0.0
    %1327 = vmatpush1.xpose.msra.mxu0 0.0
    %1328 = vmatprep.subr.mxu0 0.0
    %1329 = vmatpush1.xpose.msra.mxu0 0.0
    %1330 = vmatprep.subr.mxu0 0.0
    %1331 = vmatpush1.xpose.msra.mxu0 0.0
    %1332 = vmatprep.subr.mxu0 0.0
    %1333 = vmatpush1.xpose.msra.mxu0 0.0
    %1334 = vmatprep.subr.mxu0 0.0
    %1335 = vmatpush1.xpose.msra.mxu0 0.0
    %1336 = vmatprep.subr.mxu0 0.0
    %1337 = vmatpush1.xpose.msra.mxu0 0.0
    %1338 = vmatprep.subr.mxu0 0.0
    %1339 = vmatpush1.xpose.msra.mxu0 0.0
    %1340 = vmatprep.subr.mxu0 0.0
    %1341 = vmatpush1.xpose.msra.mxu0 0.0
    %1342 = vmatprep.subr.mxu0 0.0
    %1343 = vmatpush1.xpose.msra.mxu0 0.0
    %1344 = vmatprep.subr.mxu0 0.0
    %1345 = vmatpush1.xpose.msra.mxu0 0.0
    %1346 = vmatprep.subr.mxu0 0.0
    %1347 = vmatpush1.xpose.msra.mxu0 0.0
    %1348 = vmatprep.subr.mxu0 0.0
    %1349 = vmatpush1.xpose.msra.mxu0 0.0
    %1350 = vmatprep.subr.mxu0 0.0
    %1351 = vmatpush1.xpose.msra.mxu0 0.0
    %1352 = vmatprep.subr.mxu0 0.0
    %1353 = vmatpush1.xpose.msra.mxu0 0.0
    %1354 = vmatprep.subr.mxu0 0.0
    %1355 = vmatpush1.xpose.msra.mxu0 %v1324
    %1356 = vmatprep.subr.mxu0 0.0
    %1357 = vmatpush1.xpose.msra.mxu0 %v1322
    %1358 = vmatprep.subr.mxu0 0.0
    %1359 = vmatpush2.xpose.msra.mxu0 0.0
    %1360 = vmatprep.subr.mxu0 0.0
    %1361 = vmatpush2.xpose.msra.mxu0 0.0
    %1362 = vmatprep.subr.mxu0 0.0
    %1363 = vmatpush2.xpose.msra.mxu0 0.0
    %1364 = vmatprep.subr.mxu0 0.0
    %1365 = vmatpush2.xpose.msra.mxu0 0.0
    %1366 = vmatprep.subr.mxu0 0.0
    %1367 = vmatpush2.xpose.msra.mxu0 0.0
    %1368 = vmatprep.subr.mxu0 0.0
    %1369 = vmatpush2.xpose.msra.mxu0 0.0
    %1370 = vmatprep.subr.mxu0 0.0
    %1371 = vmatpush2.xpose.msra.mxu0 0.0
    %1372 = vmatprep.subr.mxu0 0.0
    %1373 = vmatpush2.xpose.msra.mxu0 0.0
    %1374 = vmatprep.subr.mxu0 0.0
    %1375 = vmatpush2.xpose.msra.mxu0 0.0
    %1376 = vmatprep.subr.mxu0 0.0
    %1377 = vmatpush2.xpose.msra.mxu0 0.0
    %1378 = vmatprep.subr.mxu0 0.0
    %1379 = vmatpush2.xpose.msra.mxu0 0.0
    %1380 = vmatprep.subr.mxu0 0.0
    %1381 = vmatpush2.xpose.msra.mxu0 0.0
    %1382 = vmatprep.subr.mxu0 0.0
    %1383 = vmatpush2.xpose.msra.mxu0 0.0
    %1384 = vmatprep.subr.mxu0 0.0
    %1385 = vmatpush2.xpose.msra.mxu0 0.0
    %1386 = vmatprep.subr.mxu0 0.0
    %1387 = vmatpush2.xpose.msra.mxu0 0.0
    %1388 = vmatprep.subr.mxu0 0.0
    %1389 = vmatpush2.xpose.msra.mxu0 0.0
    %1390 = vmatprep.mubr.f32.mxu0 0.0
    %1391 = vmatmul.mubr.f32.gmra.mxu0 %v1318
    %v1392 = vpop.f32.mrf.mxu0
    %v1393 = vadd.f32 0.0, %v1392
    %v1394 = vpop.f32.mrf.mxu0
    %1395 = vmatprep.mubr.f32.mxu0 0.0
    %1396 = vmatmul.mubr.f32.gmra.mxu0 %v1320
    %v1397 = vpop.f32.mrf.mxu0
    %v1398 = vadd.f32 0.0, %v1397
    %v1399 = vpop.f32.mrf.mxu0
    %1400 = vdwg.mxu0
    %v1401 = vmul.f32 %v1393, 0.35355338
    %v1402 = vmul.f32 %v1398, 0.35355338
    %v1403 = vadd.f32 %v1401, %v1187
    %v1404 = vadd.f32 %v1402, %v1188
    %vm1405 = vcmask 80896
    %v1406 = vsel %vm1405, %v1403, -inf
    %1407 = vmax.xlane.f32.xlu0 %v1406
    %v1408 = vpop.xlane.xlu0 %1407
    %vm1409 = vcmask 74752
    %v1410 = vsel %vm1409, %v1404, -inf
    %1411 = vmax.xlane.f32.xlu0 %v1410
    %v1412 = vpop.xlane.xlu0 %1411
    %v1413 = vsub.f32 %v1403, %v1408
    %v1414 = vsub.f32 %v1404, %v1412
    %v1415 = vmul.f32 %v1413, 1.442695
    %v1416 = vpow.pop %v1415
    %v1417 = vmul.f32 %v1414, 1.442695
    %v1418 = vpow.pop %v1417
    %v1419 = vsel %vm1405, %v1416, 0.0
    %1420 = vadd.xlane.f32.xlu0 %v1419
    %v1421 = vpop.xlane.xlu0 %1420
    %v1422 = vsel %vm1409, %v1418, 0.0
    %1423 = vadd.xlane.f32.xlu0 %v1422
    %v1424 = vpop.xlane.xlu0 %1423
    %v1425 = vrcp.pop %v1421
    %v1426 = vmul.f32 %v1416, %v1425
    %v1427 = vrcp.pop %v1424
    %v1428 = vmul.f32 %v1418, %v1427
    %1429 = vrot.lane.b32.xlu0 %v1304, 64
    %v1430 = vpop.permute.xlu0 %1429
    %1431 = vrot.lane.b32.xlu0 %v1309, 64
    %v1432 = vpop.permute.xlu0 %1431
    %v1435 = vsel %vm1405, %v1426, 0
    %v1438 = vsel %vm1405, %v1428, 0
    %vm1440 = vcmask 1041408
    %v1441 = vsel %vm1440, %v1432, 0
    %1443 = vmatprep.subr.mxu0 0.0
    %1444 = vmatpush1.msra.mxu0 0.0
    %1445 = vmatprep.subr.mxu0 0.0
    %1446 = vmatpush1.msra.mxu0 0.0
    %1447 = vmatprep.subr.mxu0 0.0
    %1448 = vmatpush1.msra.mxu0 0.0
    %1449 = vmatprep.subr.mxu0 0.0
    %1450 = vmatpush1.msra.mxu0 0.0
    %1451 = vmatprep.subr.mxu0 0.0
    %1452 = vmatpush1.msra.mxu0 0.0
    %1453 = vmatprep.subr.mxu0 0.0
    %1454 = vmatpush1.msra.mxu0 0.0
    %1455 = vmatprep.subr.mxu0 0.0
    %1456 = vmatpush1.msra.mxu0 0.0
    %1457 = vmatprep.subr.mxu0 0.0
    %1458 = vmatpush1.msra.mxu0 0.0
    %1459 = vmatprep.subr.mxu0 0.0
    %1460 = vmatpush1.msra.mxu0 0.0
    %1461 = vmatprep.subr.mxu0 0.0
    %1462 = vmatpush1.msra.mxu0 0.0
    %1463 = vmatprep.subr.mxu0 0.0
    %1464 = vmatpush1.msra.mxu0 0.0
    %1465 = vmatprep.subr.mxu0 0.0
    %1466 = vmatpush1.msra.mxu0 0.0
    %1467 = vmatprep.subr.mxu0 0.0
    %1468 = vmatpush1.msra.mxu0 0.0
    %1469 = vmatprep.subr.mxu0 0.0
    %1470 = vmatpush1.msra.mxu0 0.0
    %1471 = vmatprep.subr.mxu0 0.0
    %1472 = vmatpush1.msra.mxu0 %v1441
    %1473 = vmatprep.subr.mxu0 0.0
    %1474 = vmatpush1.msra.mxu0 %v1430
    %1475 = vmatprep.subr.mxu0 0.0
    %1476 = vmatpush2.msra.mxu0 0.0
    %1477 = vmatprep.subr.mxu0 0.0
    %1478 = vmatpush2.msra.mxu0 0.0
    %1479 = vmatprep.subr.mxu0 0.0
    %1480 = vmatpush2.msra.mxu0 0.0
    %1481 = vmatprep.subr.mxu0 0.0
    %1482 = vmatpush2.msra.mxu0 0.0
    %1483 = vmatprep.subr.mxu0 0.0
    %1484 = vmatpush2.msra.mxu0 0.0
    %1485 = vmatprep.subr.mxu0 0.0
    %1486 = vmatpush2.msra.mxu0 0.0
    %1487 = vmatprep.subr.mxu0 0.0
    %1488 = vmatpush2.msra.mxu0 0.0
    %1489 = vmatprep.subr.mxu0 0.0
    %1490 = vmatpush2.msra.mxu0 0.0
    %1491 = vmatprep.subr.mxu0 0.0
    %1492 = vmatpush2.msra.mxu0 0.0
    %1493 = vmatprep.subr.mxu0 0.0
    %1494 = vmatpush2.msra.mxu0 0.0
    %1495 = vmatprep.subr.mxu0 0.0
    %1496 = vmatpush2.msra.mxu0 0.0
    %1497 = vmatprep.subr.mxu0 0.0
    %1498 = vmatpush2.msra.mxu0 0.0
    %1499 = vmatprep.subr.mxu0 0.0
    %1500 = vmatpush2.msra.mxu0 0.0
    %1501 = vmatprep.subr.mxu0 0.0
    %1502 = vmatpush2.msra.mxu0 0.0
    %1503 = vmatprep.subr.mxu0 0.0
    %1504 = vmatpush2.msra.mxu0 0.0
    %1505 = vmatprep.subr.mxu0 0.0
    %1506 = vmatpush2.msra.mxu0 0.0
    %1507 = vmatprep.mubr.f32.mxu0 0.0
    %1508 = vmatmul.mubr.f32.gmra.mxu0 %v1435
    %v1509 = vpop.f32.mrf.mxu0
    %v1510 = vadd.f32 0.0, %v1509
    %v1511 = vpop.f32.mrf.mxu0
    %1512 = vmatprep.mubr.f32.mxu0 0.0
    %1513 = vmatmul.mubr.f32.gmra.mxu0 %v1438
    %v1514 = vpop.f32.mrf.mxu0
    %v1515 = vadd.f32 0.0, %v1514
    %v1516 = vpop.f32.mrf.mxu0
    %1517 = vdwg.mxu0
    %1518 = vrot.lane.b32.xlu0 %v1304, 120
    %v1519 = vpop.permute.xlu0 %1518
    %1520 = vrot.lane.b32.xlu0 %v1309, 120
    %v1521 = vpop.permute.xlu0 %1520
    %1522 = vrot.lane.b32.xlu0 %v1304, 88
    %v1523 = vpop.permute.xlu0 %1522
    %1524 = vrot.lane.b32.xlu0 %v1309, 88
    %v1525 = vpop.permute.xlu0 %1524
    %v1526 = vsel %vm576, %v1519, 0
    %v1528 = vsel %vm576, %v1521, 0
    %v1530 = vsel %vm576, %v1523, 0
    %v1532 = vsel %vm576, %v1525, 0
    %1534 = vmatprep.subr.mxu0 0.0
    %1535 = vmatpush1.xpose.msra.mxu0 0.0
    %1536 = vmatprep.subr.mxu0 0.0
    %1537 = vmatpush1.xpose.msra.mxu0 0.0
    %1538 = vmatprep.subr.mxu0 0.0
    %1539 = vmatpush1.xpose.msra.mxu0 0.0
    %1540 = vmatprep.subr.mxu0 0.0
    %1541 = vmatpush1.xpose.msra.mxu0 0.0
    %1542 = vmatprep.subr.mxu0 0.0
    %1543 = vmatpush1.xpose.msra.mxu0 0.0
    %1544 = vmatprep.subr.mxu0 0.0
    %1545 = vmatpush1.xpose.msra.mxu0 0.0
    %1546 = vmatprep.subr.mxu0 0.0
    %1547 = vmatpush1.xpose.msra.mxu0 0.0
    %1548 = vmatprep.subr.mxu0 0.0
    %1549 = vmatpush1.xpose.msra.mxu0 0.0
    %1550 = vmatprep.subr.mxu0 0.0
    %1551 = vmatpush1.xpose.msra.mxu0 0.0
    %1552 = vmatprep.subr.mxu0 0.0
    %1553 = vmatpush1.xpose.msra.mxu0 0.0
    %1554 = vmatprep.subr.mxu0 0.0
    %1555 = vmatpush1.xpose.msra.mxu0 0.0
    %1556 = vmatprep.subr.mxu0 0.0
    %1557 = vmatpush1.xpose.msra.mxu0 0.0
    %1558 = vmatprep.subr.mxu0 0.0
    %1559 = vmatpush1.xpose.msra.mxu0 0.0
    %1560 = vmatprep.subr.mxu0 0.0
    %1561 = vmatpush1.xpose.msra.mxu0 0.0
    %1562 = vmatprep.subr.mxu0 0.0
    %1563 = vmatpush1.xpose.msra.mxu0 %v1532
    %1564 = vmatprep.subr.mxu0 0.0
    %1565 = vmatpush1.xpose.msra.mxu0 %v1530
    %1566 = vmatprep.subr.mxu0 0.0
    %1567 = vmatpush2.xpose.msra.mxu0 0.0
    %1568 = vmatprep.subr.mxu0 0.0
    %1569 = vmatpush2.xpose.msra.mxu0 0.0
    %1570 = vmatprep.subr.mxu0 0.0
    %1571 = vmatpush2.xpose.msra.mxu0 0.0
    %1572 = vmatprep.subr.mxu0 0.0
    %1573 = vmatpush2.xpose.msra.mxu0 0.0
    %1574 = vmatprep.subr.mxu0 0.0
    %1575 = vmatpush2.xpose.msra.mxu0 0.0
    %1576 = vmatprep.subr.mxu0 0.0
    %1577 = vmatpush2.xpose.msra.mxu0 0.0
    %1578 = vmatprep.subr.mxu0 0.0
    %1579 = vmatpush2.xpose.msra.mxu0 0.0
    %1580 = vmatprep.subr.mxu0 0.0
    %1581 = vmatpush2.xpose.msra.mxu0 0.0
    %1582 = vmatprep.subr.mxu0 0.0
    %1583 = vmatpush2.xpose.msra.mxu0 0.0
    %1584 = vmatprep.subr.mxu0 0.0
    %1585 = vmatpush2.xpose.msra.mxu0 0.0
    %1586 = vmatprep.subr.mxu0 0.0
    %1587 = vmatpush2.xpose.msra.mxu0 0.0
    %1588 = vmatprep.subr.mxu0 0.0
    %1589 = vmatpush2.xpose.msra.mxu0 0.0
    %1590 = vmatprep.subr.mxu0 0.0
    %1591 = vmatpush2.xpose.msra.mxu0 0.0
    %1592 = vmatprep.subr.mxu0 0.0
    %1593 = vmatpush2.xpose.msra.mxu0 0.0
    %1594 = vmatprep.subr.mxu0 0.0
    %1595 = vmatpush2.xpose.msra.mxu0 0.0
    %1596 = vmatprep.subr.mxu0 0.0
    %1597 = vmatpush2.xpose.msra.mxu0 0.0
    %1598 = vmatprep.mubr.f32.mxu0 0.0
    %1599 = vmatmul.mubr.f32.gmra.mxu0 %v1526
    %v1600 = vpop.f32.mrf.mxu0
    %v1601 = vadd.f32 0.0, %v1600
    %v1602 = vpop.f32.mrf.mxu0
    %1603 = vmatprep.mubr.f32.mxu0 0.0
    %1604 = vmatmul.mubr.f32.gmra.mxu0 %v1528
    %v1605 = vpop.f32.mrf.mxu0
    %v1606 = vadd.f32 0.0, %v1605
    %v1607 = vpop.f32.mrf.mxu0
    %1608 = vdwg.mxu0
    %v1609 = vmul.f32 %v1601, 0.35355338
    %v1610 = vmul.f32 %v1606, 0.35355338
    %v1611 = vadd.f32 %v1609, %v1187
    %v1612 = vadd.f32 %v1610, %v1188
    %v1613 = vsel %vm1405, %v1611, -inf
    %1614 = vmax.xlane.f32.xlu0 %v1613
    %v1615 = vpop.xlane.xlu0 %1614
    %v1616 = vsel %vm1409, %v1612, -inf
    %1617 = vmax.xlane.f32.xlu0 %v1616
    %v1618 = vpop.xlane.xlu0 %1617
    %v1619 = vsub.f32 %v1611, %v1615
    %v1620 = vsub.f32 %v1612, %v1618
    %v1621 = vmul.f32 %v1619, 1.442695
    %v1622 = vpow.pop %v1621
    %v1623 = vmul.f32 %v1620, 1.442695
    %v1624 = vpow.pop %v1623
    %v1625 = vsel %vm1405, %v1622, 0.0
    %1626 = vadd.xlane.f32.xlu0 %v1625
    %v1627 = vpop.xlane.xlu0 %1626
    %v1628 = vsel %vm1409, %v1624, 0.0
    %1629 = vadd.xlane.f32.xlu0 %v1628
    %v1630 = vpop.xlane.xlu0 %1629
    %v1631 = vrcp.pop %v1627
    %v1632 = vmul.f32 %v1622, %v1631
    %v1633 = vrcp.pop %v1630
    %v1634 = vmul.f32 %v1624, %v1633
    %1635 = vrot.lane.b32.xlu0 %v1304, 56
    %v1636 = vpop.permute.xlu0 %1635
    %1637 = vrot.lane.b32.xlu0 %v1309, 56
    %v1638 = vpop.permute.xlu0 %1637
    %v1641 = vsel %vm1405, %v1632, 0
    %v1644 = vsel %vm1405, %v1634, 0
    %v1646 = vsel %vm1440, %v1638, 0
    %1648 = vmatprep.subr.mxu0 0.0
    %1649 = vmatpush1.msra.mxu0 0.0
    %1650 = vmatprep.subr.mxu0 0.0
    %1651 = vmatpush1.msra.mxu0 0.0
    %1652 = vmatprep.subr.mxu0 0.0
    %1653 = vmatpush1.msra.mxu0 0.0
    %1654 = vmatprep.subr.mxu0 0.0
    %1655 = vmatpush1.msra.mxu0 0.0
    %1656 = vmatprep.subr.mxu0 0.0
    %1657 = vmatpush1.msra.mxu0 0.0
    %1658 = vmatprep.subr.mxu0 0.0
    %1659 = vmatpush1.msra.mxu0 0.0
    %1660 = vmatprep.subr.mxu0 0.0
    %1661 = vmatpush1.msra.mxu0 0.0
    %1662 = vmatprep.subr.mxu0 0.0
    %1663 = vmatpush1.msra.mxu0 0.0
    %1664 = vmatprep.subr.mxu0 0.0
    %1665 = vmatpush1.msra.mxu0 0.0
    %1666 = vmatprep.subr.mxu0 0.0
    %1667 = vmatpush1.msra.mxu0 0.0
    %1668 = vmatprep.subr.mxu0 0.0
    %1669 = vmatpush1.msra.mxu0 0.0
    %1670 = vmatprep.subr.mxu0 0.0
    %1671 = vmatpush1.msra.mxu0 0.0
    %1672 = vmatprep.subr.mxu0 0.0
    %1673 = vmatpush1.msra.mxu0 0.0
    %1674 = vmatprep.subr.mxu0 0.0
    %1675 = vmatpush1.msra.mxu0 0.0
    %1676 = vmatprep.subr.mxu0 0.0
    %1677 = vmatpush1.msra.mxu0 %v1646
    %1678 = vmatprep.subr.mxu0 0.0
    %1679 = vmatpush1.msra.mxu0 %v1636
    %1680 = vmatprep.subr.mxu0 0.0
    %1681 = vmatpush2.msra.mxu0 0.0
    %1682 = vmatprep.subr.mxu0 0.0
    %1683 = vmatpush2.msra.mxu0 0.0
    %1684 = vmatprep.subr.mxu0 0.0
    %1685 = vmatpush2.msra.mxu0 0.0
    %1686 = vmatprep.subr.mxu0 0.0
    %1687 = vmatpush2.msra.mxu0 0.0
    %1688 = vmatprep.subr.mxu0 0.0
    %1689 = vmatpush2.msra.mxu0 0.0
    %1690 = vmatprep.subr.mxu0 0.0
    %1691 = vmatpush2.msra.mxu0 0.0
    %1692 = vmatprep.subr.mxu0 0.0
    %1693 = vmatpush2.msra.mxu0 0.0
    %1694 = vmatprep.subr.mxu0 0.0
    %1695 = vmatpush2.msra.mxu0 0.0
    %1696 = vmatprep.subr.mxu0 0.0
    %1697 = vmatpush2.msra.mxu0 0.0
    %1698 = vmatprep.subr.mxu0 0.0
    %1699 = vmatpush2.msra.mxu0 0.0
    %1700 = vmatprep.subr.mxu0 0.0
    %1701 = vmatpush2.msra.mxu0 0.0
    %1702 = vmatprep.subr.mxu0 0.0
    %1703 = vmatpush2.msra.mxu0 0.0
    %1704 = vmatprep.subr.mxu0 0.0
    %1705 = vmatpush2.msra.mxu0 0.0
    %1706 = vmatprep.subr.mxu0 0.0
    %1707 = vmatpush2.msra.mxu0 0.0
    %1708 = vmatprep.subr.mxu0 0.0
    %1709 = vmatpush2.msra.mxu0 0.0
    %1710 = vmatprep.subr.mxu0 0.0
    %1711 = vmatpush2.msra.mxu0 0.0
    %1712 = vmatprep.mubr.f32.mxu0 0.0
    %1713 = vmatmul.mubr.f32.gmra.mxu0 %v1641
    %v1714 = vpop.f32.mrf.mxu0
    %v1715 = vadd.f32 0.0, %v1714
    %v1716 = vpop.f32.mrf.mxu0
    %1717 = vmatprep.mubr.f32.mxu0 0.0
    %1718 = vmatmul.mubr.f32.gmra.mxu0 %v1644
    %v1719 = vpop.f32.mrf.mxu0
    %v1720 = vadd.f32 0.0, %v1719
    %v1721 = vpop.f32.mrf.mxu0
    %1722 = vdwg.mxu0
    %1723 = vrot.lane.b32.xlu0 %v1304, 112
    %v1724 = vpop.permute.xlu0 %1723
    %1725 = vrot.lane.b32.xlu0 %v1309, 112
    %v1726 = vpop.permute.xlu0 %1725
    %1727 = vrot.lane.b32.xlu0 %v1304, 80
    %v1728 = vpop.permute.xlu0 %1727
    %1729 = vrot.lane.b32.xlu0 %v1309, 80
    %v1730 = vpop.permute.xlu0 %1729
    %v1731 = vsel %vm576, %v1724, 0
    %v1733 = vsel %vm576, %v1726, 0
    %v1735 = vsel %vm576, %v1728, 0
    %v1737 = vsel %vm576, %v1730, 0
    %1739 = vmatprep.subr.mxu0 0.0
    %1740 = vmatpush1.xpose.msra.mxu0 0.0
    %1741 = vmatprep.subr.mxu0 0.0
    %1742 = vmatpush1.xpose.msra.mxu0 0.0
    %1743 = vmatprep.subr.mxu0 0.0
    %1744 = vmatpush1.xpose.msra.mxu0 0.0
    %1745 = vmatprep.subr.mxu0 0.0
    %1746 = vmatpush1.xpose.msra.mxu0 0.0
    %1747 = vmatprep.subr.mxu0 0.0
    %1748 = vmatpush1.xpose.msra.mxu0 0.0
    %1749 = vmatprep.subr.mxu0 0.0
    %1750 = vmatpush1.xpose.msra.mxu0 0.0
    %1751 = vmatprep.subr.mxu0 0.0
    %1752 = vmatpush1.xpose.msra.mxu0 0.0
    %1753 = vmatprep.subr.mxu0 0.0
    %1754 = vmatpush1.xpose.msra.mxu0 0.0
    %1755 = vmatprep.subr.mxu0 0.0
    %1756 = vmatpush1.xpose.msra.mxu0 0.0
    %1757 = vmatprep.subr.mxu0 0.0
    %1758 = vmatpush1.xpose.msra.mxu0 0.0
    %1759 = vmatprep.subr.mxu0 0.0
    %1760 = vmatpush1.xpose.msra.mxu0 0.0
    %1761 = vmatprep.subr.mxu0 0.0
    %1762 = vmatpush1.xpose.msra.mxu0 0.0
    %1763 = vmatprep.subr.mxu0 0.0
    %1764 = vmatpush1.xpose.msra.mxu0 0.0
    %1765 = vmatprep.subr.mxu0 0.0
    %1766 = vmatpush1.xpose.msra.mxu0 0.0
    %1767 = vmatprep.subr.mxu0 0.0
    %1768 = vmatpush1.xpose.msra.mxu0 %v1737
    %1769 = vmatprep.subr.mxu0 0.0
    %1770 = vmatpush1.xpose.msra.mxu0 %v1735
    %1771 = vmatprep.subr.mxu0 0.0
    %1772 = vmatpush2.xpose.msra.mxu0 0.0
    %1773 = vmatprep.subr.mxu0 0.0
    %1774 = vmatpush2.xpose.msra.mxu0 0.0
    %1775 = vmatprep.subr.mxu0 0.0
    %1776 = vmatpush2.xpose.msra.mxu0 0.0
    %1777 = vmatprep.subr.mxu0 0.0
    %1778 = vmatpush2.xpose.msra.mxu0 0.0
    %1779 = vmatprep.subr.mxu0 0.0
    %1780 = vmatpush2.xpose.msra.mxu0 0.0
    %1781 = vmatprep.subr.mxu0 0.0
    %1782 = vmatpush2.xpose.msra.mxu0 0.0
    %1783 = vmatprep.subr.mxu0 0.0
    %1784 = vmatpush2.xpose.msra.mxu0 0.0
    %1785 = vmatprep.subr.mxu0 0.0
    %1786 = vmatpush2.xpose.msra.mxu0 0.0
    %1787 = vmatprep.subr.mxu0 0.0
    %1788 = vmatpush2.xpose.msra.mxu0 0.0
    %1789 = vmatprep.subr.mxu0 0.0
    %1790 = vmatpush2.xpose.msra.mxu0 0.0
    %1791 = vmatprep.subr.mxu0 0.0
    %1792 = vmatpush2.xpose.msra.mxu0 0.0
    %1793 = vmatprep.subr.mxu0 0.0
    %1794 = vmatpush2.xpose.msra.mxu0 0.0
    %1795 = vmatprep.subr.mxu0 0.0
    %1796 = vmatpush2.xpose.msra.mxu0 0.0
    %1797 = vmatprep.subr.mxu0 0.0
    %1798 = vmatpush2.xpose.msra.mxu0 0.0
    %1799 = vmatprep.subr.mxu0 0.0
    %1800 = vmatpush2.xpose.msra.mxu0 0.0
    %1801 = vmatprep.subr.mxu0 0.0
    %1802 = vmatpush2.xpose.msra.mxu0 0.0
    %1803 = vmatprep.mubr.f32.mxu0 0.0
    %1804 = vmatmul.mubr.f32.gmra.mxu0 %v1731
    %v1805 = vpop.f32.mrf.mxu0
    %v1806 = vadd.f32 0.0, %v1805
    %v1807 = vpop.f32.mrf.mxu0
    %1808 = vmatprep.mubr.f32.mxu0 0.0
    %1809 = vmatmul.mubr.f32.gmra.mxu0 %v1733
    %v1810 = vpop.f32.mrf.mxu0
    %v1811 = vadd.f32 0.0, %v1810
    %v1812 = vpop.f32.mrf.mxu0
    %1813 = vdwg.mxu0
    %v1814 = vmul.f32 %v1806, 0.35355338
    %v1815 = vmul.f32 %v1811, 0.35355338
    %v1816 = vadd.f32 %v1814, %v1187
    %v1817 = vadd.f32 %v1815, %v1188
    %v1818 = vsel %vm1405, %v1816, -inf
    %1819 = vmax.xlane.f32.xlu0 %v1818
    %v1820 = vpop.xlane.xlu0 %1819
    %v1821 = vsel %vm1409, %v1817, -inf
    %1822 = vmax.xlane.f32.xlu0 %v1821
    %v1823 = vpop.xlane.xlu0 %1822
    %v1824 = vsub.f32 %v1816, %v1820
    %v1825 = vsub.f32 %v1817, %v1823
    %v1826 = vmul.f32 %v1824, 1.442695
    %v1827 = vpow.pop %v1826
    %v1828 = vmul.f32 %v1825, 1.442695
    %v1829 = vpow.pop %v1828
    %v1830 = vsel %vm1405, %v1827, 0.0
    %1831 = vadd.xlane.f32.xlu0 %v1830
    %v1832 = vpop.xlane.xlu0 %1831
    %v1833 = vsel %vm1409, %v1829, 0.0
    %1834 = vadd.xlane.f32.xlu0 %v1833
    %v1835 = vpop.xlane.xlu0 %1834
    %v1836 = vrcp.pop %v1832
    %v1837 = vmul.f32 %v1827, %v1836
    %v1838 = vrcp.pop %v1835
    %v1839 = vmul.f32 %v1829, %v1838
    %1840 = vrot.lane.b32.xlu0 %v1304, 48
    %v1841 = vpop.permute.xlu0 %1840
    %1842 = vrot.lane.b32.xlu0 %v1309, 48
    %v1843 = vpop.permute.xlu0 %1842
    %v1846 = vsel %vm1405, %v1837, 0
    %v1849 = vsel %vm1405, %v1839, 0
    %v1851 = vsel %vm1440, %v1843, 0
    %1853 = vmatprep.subr.mxu0 0.0
    %1854 = vmatpush1.msra.mxu0 0.0
    %1855 = vmatprep.subr.mxu0 0.0
    %1856 = vmatpush1.msra.mxu0 0.0
    %1857 = vmatprep.subr.mxu0 0.0
    %1858 = vmatpush1.msra.mxu0 0.0
    %1859 = vmatprep.subr.mxu0 0.0
    %1860 = vmatpush1.msra.mxu0 0.0
    %1861 = vmatprep.subr.mxu0 0.0
    %1862 = vmatpush1.msra.mxu0 0.0
    %1863 = vmatprep.subr.mxu0 0.0
    %1864 = vmatpush1.msra.mxu0 0.0
    %1865 = vmatprep.subr.mxu0 0.0
    %1866 = vmatpush1.msra.mxu0 0.0
    %1867 = vmatprep.subr.mxu0 0.0
    %1868 = vmatpush1.msra.mxu0 0.0
    %1869 = vmatprep.subr.mxu0 0.0
    %1870 = vmatpush1.msra.mxu0 0.0
    %1871 = vmatprep.subr.mxu0 0.0
    %1872 = vmatpush1.msra.mxu0 0.0
    %1873 = vmatprep.subr.mxu0 0.0
    %1874 = vmatpush1.msra.mxu0 0.0
    %1875 = vmatprep.subr.mxu0 0.0
    %1876 = vmatpush1.msra.mxu0 0.0
    %1877 = vmatprep.subr.mxu0 0.0
    %1878 = vmatpush1.msra.mxu0 0.0
    %1879 = vmatprep.subr.mxu0 0.0
    %1880 = vmatpush1.msra.mxu0 0.0
    %1881 = vmatprep.subr.mxu0 0.0
    %1882 = vmatpush1.msra.mxu0 %v1851
    %1883 = vmatprep.subr.mxu0 0.0
    %1884 = vmatpush1.msra.mxu0 %v1841
    %1885 = vmatprep.subr.mxu0 0.0
    %1886 = vmatpush2.msra.mxu0 0.0
    %1887 = vmatprep.subr.mxu0 0.0
    %1888 = vmatpush2.msra.mxu0 0.0
    %1889 = vmatprep.subr.mxu0 0.0
    %1890 = vmatpush2.msra.mxu0 0.0
    %1891 = vmatprep.subr.mxu0 0.0
    %1892 = vmatpush2.msra.mxu0 0.0
    %1893 = vmatprep.subr.mxu0 0.0
    %1894 = vmatpush2.msra.mxu0 0.0
    %1895 = vmatprep.subr.mxu0 0.0
    %1896 = vmatpush2.msra.mxu0 0.0
    %1897 = vmatprep.subr.mxu0 0.0
    %1898 = vmatpush2.msra.mxu0 0.0
    %1899 = vmatprep.subr.mxu0 0.0
    %1900 = vmatpush2.msra.mxu0 0.0
    %1901 = vmatprep.subr.mxu0 0.0
    %1902 = vmatpush2.msra.mxu0 0.0
    %1903 = vmatprep.subr.mxu0 0.0
    %1904 = vmatpush2.msra.mxu0 0.0
    %1905 = vmatprep.subr.mxu0 0.0
    %1906 = vmatpush2.msra.mxu0 0.0
    %1907 = vmatprep.subr.mxu0 0.0
    %1908 = vmatpush2.msra.mxu0 0.0
    %1909 = vmatprep.subr.mxu0 0.0
    %1910 = vmatpush2.msra.mxu0 0.0
    %1911 = vmatprep.subr.mxu0 0.0
    %1912 = vmatpush2.msra.mxu0 0.0
    %1913 = vmatprep.subr.mxu0 0.0
    %1914 = vmatpush2.msra.mxu0 0.0
    %1915 = vmatprep.subr.mxu0 0.0
    %1916 = vmatpush2.msra.mxu0 0.0
    %1917 = vmatprep.mubr.f32.mxu0 0.0
    %1918 = vmatmul.mubr.f32.gmra.mxu0 %v1846
    %v1919 = vpop.f32.mrf.mxu0
    %v1920 = vadd.f32 0.0, %v1919
    %v1921 = vpop.f32.mrf.mxu0
    %1922 = vmatprep.mubr.f32.mxu0 0.0
    %1923 = vmatmul.mubr.f32.gmra.mxu0 %v1849
    %v1924 = vpop.f32.mrf.mxu0
    %v1925 = vadd.f32 0.0, %v1924
    %v1926 = vpop.f32.mrf.mxu0
    %1927 = vdwg.mxu0
    %1928 = vrot.lane.b32.xlu0 %v1304, 104
    %v1929 = vpop.permute.xlu0 %1928
    %1930 = vrot.lane.b32.xlu0 %v1309, 104
    %v1931 = vpop.permute.xlu0 %1930
    %1932 = vrot.lane.b32.xlu0 %v1304, 72
    %v1933 = vpop.permute.xlu0 %1932
    %1934 = vrot.lane.b32.xlu0 %v1309, 72
    %v1935 = vpop.permute.xlu0 %1934
    %v1936 = vsel %vm576, %v1929, 0
    %v1938 = vsel %vm576, %v1931, 0
    %v1940 = vsel %vm576, %v1933, 0
    %v1942 = vsel %vm576, %v1935, 0
    %1944 = vmatprep.subr.mxu0 0.0
    %1945 = vmatpush1.xpose.msra.mxu0 0.0
    %1946 = vmatprep.subr.mxu0 0.0
    %1947 = vmatpush1.xpose.msra.mxu0 0.0
    %1948 = vmatprep.subr.mxu0 0.0
    %1949 = vmatpush1.xpose.msra.mxu0 0.0
    %1950 = vmatprep.subr.mxu0 0.0
    %1951 = vmatpush1.xpose.msra.mxu0 0.0
    %1952 = vmatprep.subr.mxu0 0.0
    %1953 = vmatpush1.xpose.msra.mxu0 0.0
    %1954 = vmatprep.subr.mxu0 0.0
    %1955 = vmatpush1.xpose.msra.mxu0 0.0
    %1956 = vmatprep.subr.mxu0 0.0
    %1957 = vmatpush1.xpose.msra.mxu0 0.0
    %1958 = vmatprep.subr.mxu0 0.0
    %1959 = vmatpush1.xpose.msra.mxu0 0.0
    %1960 = vmatprep.subr.mxu0 0.0
    %1961 = vmatpush1.xpose.msra.mxu0 0.0
    %1962 = vmatprep.subr.mxu0 0.0
    %1963 = vmatpush1.xpose.msra.mxu0 0.0
    %1964 = vmatprep.subr.mxu0 0.0
    %1965 = vmatpush1.xpose.msra.mxu0 0.0
    %1966 = vmatprep.subr.mxu0 0.0
    %1967 = vmatpush1.xpose.msra.mxu0 0.0
    %1968 = vmatprep.subr.mxu0 0.0
    %1969 = vmatpush1.xpose.msra.mxu0 0.0
    %1970 = vmatprep.subr.mxu0 0.0
    %1971 = vmatpush1.xpose.msra.mxu0 0.0
    %1972 = vmatprep.subr.mxu0 0.0
    %1973 = vmatpush1.xpose.msra.mxu0 %v1942
    %1974 = vmatprep.subr.mxu0 0.0
    %1975 = vmatpush1.xpose.msra.mxu0 %v1940
    %1976 = vmatprep.subr.mxu0 0.0
    %1977 = vmatpush2.xpose.msra.mxu0 0.0
    %1978 = vmatprep.subr.mxu0 0.0
    %1979 = vmatpush2.xpose.msra.mxu0 0.0
    %1980 = vmatprep.subr.mxu0 0.0
    %1981 = vmatpush2.xpose.msra.mxu0 0.0
    %1982 = vmatprep.subr.mxu0 0.0
    %1983 = vmatpush2.xpose.msra.mxu0 0.0
    %1984 = vmatprep.subr.mxu0 0.0
    %1985 = vmatpush2.xpose.msra.mxu0 0.0
    %1986 = vmatprep.subr.mxu0 0.0
    %1987 = vmatpush2.xpose.msra.mxu0 0.0
    %1988 = vmatprep.subr.mxu0 0.0
    %1989 = vmatpush2.xpose.msra.mxu0 0.0
    %1990 = vmatprep.subr.mxu0 0.0
    %1991 = vmatpush2.xpose.msra.mxu0 0.0
    %1992 = vmatprep.subr.mxu0 0.0
    %1993 = vmatpush2.xpose.msra.mxu0 0.0
    %1994 = vmatprep.subr.mxu0 0.0
    %1995 = vmatpush2.xpose.msra.mxu0 0.0
    %1996 = vmatprep.subr.mxu0 0.0
    %1997 = vmatpush2.xpose.msra.mxu0 0.0
    %1998 = vmatprep.subr.mxu0 0.0
    %1999 = vmatpush2.xpose.msra.mxu0 0.0
    %2000 = vmatprep.subr.mxu0 0.0
    %2001 = vmatpush2.xpose.msra.mxu0 0.0
    %2002 = vmatprep.subr.mxu0 0.0
    %2003 = vmatpush2.xpose.msra.mxu0 0.0
    %2004 = vmatprep.subr.mxu0 0.0
    %2005 = vmatpush2.xpose.msra.mxu0 0.0
    %2006 = vmatprep.subr.mxu0 0.0
    %2007 = vmatpush2.xpose.msra.mxu0 0.0
    %2008 = vmatprep.mubr.f32.mxu0 0.0
    %2009 = vmatmul.mubr.f32.gmra.mxu0 %v1936
    %v2010 = vpop.f32.mrf.mxu0
    %v2011 = vadd.f32 0.0, %v2010
    %v2012 = vpop.f32.mrf.mxu0
    %2013 = vmatprep.mubr.f32.mxu0 0.0
    %2014 = vmatmul.mubr.f32.gmra.mxu0 %v1938
    %v2015 = vpop.f32.mrf.mxu0
    %v2016 = vadd.f32 0.0, %v2015
    %v2017 = vpop.f32.mrf.mxu0
    %2018 = vdwg.mxu0
    %v2019 = vmul.f32 %v2011, 0.35355338
    %v2020 = vmul.f32 %v2016, 0.35355338
    %v2021 = vadd.f32 %v2019, %v1187
    %v2022 = vadd.f32 %v2020, %v1188
    %v2023 = vsel %vm1405, %v2021, -inf
    %2024 = vmax.xlane.f32.xlu0 %v2023
    %v2025 = vpop.xlane.xlu0 %2024
    %v2026 = vsel %vm1409, %v2022, -inf
    %2027 = vmax.xlane.f32.xlu0 %v2026
    %v2028 = vpop.xlane.xlu0 %2027
    %v2029 = vsub.f32 %v2021, %v2025
    %v2030 = vsub.f32 %v2022, %v2028
    %v2031 = vmul.f32 %v2029, 1.442695
    %v2032 = vpow.pop %v2031
    %v2033 = vmul.f32 %v2030, 1.442695
    %v2034 = vpow.pop %v2033
    %v2035 = vsel %vm1405, %v2032, 0.0
    %2036 = vadd.xlane.f32.xlu0 %v2035
    %v2037 = vpop.xlane.xlu0 %2036
    %v2038 = vsel %vm1409, %v2034, 0.0
    %2039 = vadd.xlane.f32.xlu0 %v2038
    %v2040 = vpop.xlane.xlu0 %2039
    %v2041 = vrcp.pop %v2037
    %v2042 = vmul.f32 %v2032, %v2041
    %v2043 = vrcp.pop %v2040
    %v2044 = vmul.f32 %v2034, %v2043
    %2045 = vrot.lane.b32.xlu0 %v1304, 40
    %v2046 = vpop.permute.xlu0 %2045
    %2047 = vrot.lane.b32.xlu0 %v1309, 40
    %v2048 = vpop.permute.xlu0 %2047
    %v2051 = vsel %vm1405, %v2042, 0
    %v2054 = vsel %vm1405, %v2044, 0
    %v2056 = vsel %vm1440, %v2048, 0
    %2058 = vmatprep.subr.mxu0 0.0
    %2059 = vmatpush1.msra.mxu0 0.0
    %2060 = vmatprep.subr.mxu0 0.0
    %2061 = vmatpush1.msra.mxu0 0.0
    %2062 = vmatprep.subr.mxu0 0.0
    %2063 = vmatpush1.msra.mxu0 0.0
    %2064 = vmatprep.subr.mxu0 0.0
    %2065 = vmatpush1.msra.mxu0 0.0
    %2066 = vmatprep.subr.mxu0 0.0
    %2067 = vmatpush1.msra.mxu0 0.0
    %2068 = vmatprep.subr.mxu0 0.0
    %2069 = vmatpush1.msra.mxu0 0.0
    %2070 = vmatprep.subr.mxu0 0.0
    %2071 = vmatpush1.msra.mxu0 0.0
    %2072 = vmatprep.subr.mxu0 0.0
    %2073 = vmatpush1.msra.mxu0 0.0
    %2074 = vmatprep.subr.mxu0 0.0
    %2075 = vmatpush1.msra.mxu0 0.0
    %2076 = vmatprep.subr.mxu0 0.0
    %2077 = vmatpush1.msra.mxu0 0.0
    %2078 = vmatprep.subr.mxu0 0.0
    %2079 = vmatpush1.msra.mxu0 0.0
    %2080 = vmatprep.subr.mxu0 0.0
    %2081 = vmatpush1.msra.mxu0 0.0
    %2082 = vmatprep.subr.mxu0 0.0
    %2083 = vmatpush1.msra.mxu0 0.0
    %2084 = vmatprep.subr.mxu0 0.0
    %2085 = vmatpush1.msra.mxu0 0.0
    %2086 = vmatprep.subr.mxu0 0.0
    %2087 = vmatpush1.msra.mxu0 %v2056
    %2088 = vmatprep.subr.mxu0 0.0
    %2089 = vmatpush1.msra.mxu0 %v2046
    %2090 = vmatprep.subr.mxu0 0.0
    %2091 = vmatpush2.msra.mxu0 0.0
    %2092 = vmatprep.subr.mxu0 0.0
    %2093 = vmatpush2.msra.mxu0 0.0
    %2094 = vmatprep.subr.mxu0 0.0
    %2095 = vmatpush2.msra.mxu0 0.0
    %2096 = vmatprep.subr.mxu0 0.0
    %2097 = vmatpush2.msra.mxu0 0.0
    %2098 = vmatprep.subr.mxu0 0.0
    %2099 = vmatpush2.msra.mxu0 0.0
    %2100 = vmatprep.subr.mxu0 0.0
    %2101 = vmatpush2.msra.mxu0 0.0
    %2102 = vmatprep.subr.mxu0 0.0
    %2103 = vmatpush2.msra.mxu0 0.0
    %2104 = vmatprep.subr.mxu0 0.0
    %2105 = vmatpush2.msra.mxu0 0.0
    %2106 = vmatprep.subr.mxu0 0.0
    %2107 = vmatpush2.msra.mxu0 0.0
    %2108 = vmatprep.subr.mxu0 0.0
    %2109 = vmatpush2.msra.mxu0 0.0
    %2110 = vmatprep.subr.mxu0 0.0
    %2111 = vmatpush2.msra.mxu0 0.0
    %2112 = vmatprep.subr.mxu0 0.0
    %2113 = vmatpush2.msra.mxu0 0.0
    %2114 = vmatprep.subr.mxu0 0.0
    %2115 = vmatpush2.msra.mxu0 0.0
    %2116 = vmatprep.subr.mxu0 0.0
    %2117 = vmatpush2.msra.mxu0 0.0
    %2118 = vmatprep.subr.mxu0 0.0
    %2119 = vmatpush2.msra.mxu0 0.0
    %2120 = vmatprep.subr.mxu0 0.0
    %2121 = vmatpush2.msra.mxu0 0.0
    %2122 = vmatprep.mubr.f32.mxu0 0.0
    %2123 = vmatmul.mubr.f32.gmra.mxu0 %v2051
    %v2124 = vpop.f32.mrf.mxu0
    %v2125 = vadd.f32 0.0, %v2124
    %v2126 = vpop.f32.mrf.mxu0
    %2127 = vmatprep.mubr.f32.mxu0 0.0
    %2128 = vmatmul.mubr.f32.gmra.mxu0 %v2054
    %v2129 = vpop.f32.mrf.mxu0
    %v2130 = vadd.f32 0.0, %v2129
    %v2131 = vpop.f32.mrf.mxu0
    %2132 = vdwg.mxu0
    %2135 = vrot.lane.b32.xlu0 %v1715, 8
    %v2136 = vpop.permute.xlu0 %2135
    %2137 = vrot.lane.b32.xlu0 %v1720, 8
    %v2138 = vpop.permute.xlu0 %2137
    %2143 = vrot.lane.b32.xlu0 %v1920, 16
    %v2144 = vpop.permute.xlu0 %2143
    %2145 = vrot.lane.b32.xlu0 %v1925, 16
    %v2146 = vpop.permute.xlu0 %2145
    %2151 = vrot.lane.b32.xlu0 %v2125, 24
    %v2152 = vpop.permute.xlu0 %2151
    %2153 = vrot.lane.b32.xlu0 %v2130, 24
    %v2154 = vpop.permute.xlu0 %2153
    %v2157 = vsel %vm576, %v1510, %v2136
    %v2158 = vsel %vm576, %v1515, %v2138
    %v2159 = vsel %vm669, %v2157, %v2144
    %v2160 = vsel %vm669, %v2158, %v2146
    %vm2161 = vcmask 195584
    %v2162 = vsel %vm2161, %v2159, %v2152
    %v2163 = vsel %vm2161, %v2160, %v2154
    %v2165 = vlaneseq
    %v2166 = vshrl.u32 %v2165, 7
    %v2167 = vsub.s32 0, %v2166
    %v2168 = vrot.slane %v1198, %v2167
    %v2171 = vsel %vm897, %v2162, 0
    %v2174 = vsel %vm897, %v2163, 0
    %2176 = vmatprep.subr.mxu0 0.0
    %2177 = vmatpush1.msra.mxu0 0.0
    %2178 = vmatprep.subr.mxu0 0.0
    %2179 = vmatpush1.msra.mxu0 0.0
    %2180 = vmatprep.subr.mxu0 0.0
    %2181 = vmatpush1.msra.mxu0 0.0
    %2182 = vmatprep.subr.mxu0 0.0
    %2183 = vmatpush1.msra.mxu0 0.0
    %2184 = vmatprep.subr.mxu0 0.0
    %2185 = vmatpush1.msra.mxu0 0.0
    %2186 = vmatprep.subr.mxu0 0.0
    %2187 = vmatpush1.msra.mxu0 0.0
    %2188 = vmatprep.subr.mxu0 0.0
    %2189 = vmatpush1.msra.mxu0 0.0
    %2190 = vmatprep.subr.mxu0 0.0
    %2191 = vmatpush1.msra.mxu0 0.0
    %2192 = vmatprep.subr.mxu0 0.0
    %2193 = vmatpush1.msra.mxu0 0.0
    %2194 = vmatprep.subr.mxu0 0.0
    %2195 = vmatpush1.msra.mxu0 0.0
    %2196 = vmatprep.subr.mxu0 0.0
    %2197 = vmatpush1.msra.mxu0 0.0
    %2198 = vmatprep.subr.mxu0 0.0
    %2199 = vmatpush1.msra.mxu0 0.0
    %2200 = vmatprep.subr.mxu0 0.0
    %2201 = vmatpush1.msra.mxu0 %v1197
    %2202 = vmatprep.subr.mxu0 0.0
    %2203 = vmatpush1.msra.mxu0 %v1196
    %2204 = vmatprep.subr.mxu0 0.0
    %2205 = vmatpush1.msra.mxu0 %v1195
    %2206 = vmatprep.subr.mxu0 0.0
    %2207 = vmatpush1.msra.mxu0 %v1194
    %2208 = vmatprep.subr.mxu0 0.0
    %2209 = vmatpush2.msra.mxu0 0.0
    %2210 = vmatprep.subr.mxu0 0.0
    %2211 = vmatpush2.msra.mxu0 0.0
    %2212 = vmatprep.subr.mxu0 0.0
    %2213 = vmatpush2.msra.mxu0 0.0
    %2214 = vmatprep.subr.mxu0 0.0
    %2215 = vmatpush2.msra.mxu0 0.0
    %2216 = vmatprep.subr.mxu0 0.0
    %2217 = vmatpush2.msra.mxu0 0.0
    %2218 = vmatprep.subr.mxu0 0.0
    %2219 = vmatpush2.msra.mxu0 0.0
    %2220 = vmatprep.subr.mxu0 0.0
    %2221 = vmatpush2.msra.mxu0 0.0
    %2222 = vmatprep.subr.mxu0 0.0
    %2223 = vmatpush2.msra.mxu0 0.0
    %2224 = vmatprep.subr.mxu0 0.0
    %2225 = vmatpush2.msra.mxu0 0.0
    %2226 = vmatprep.subr.mxu0 0.0
    %2227 = vmatpush2.msra.mxu0 0.0
    %2228 = vmatprep.subr.mxu0 0.0
    %2229 = vmatpush2.msra.mxu0 0.0
    %2230 = vmatprep.subr.mxu0 0.0
    %2231 = vmatpush2.msra.mxu0 0.0
    %2232 = vmatprep.subr.mxu0 0.0
    %2233 = vmatpush2.msra.mxu0 0.0
    %2234 = vmatprep.subr.mxu0 0.0
    %2235 = vmatpush2.msra.mxu0 0.0
    %2236 = vmatprep.subr.mxu0 0.0
    %2237 = vmatpush2.msra.mxu0 0.0
    %2238 = vmatprep.subr.mxu0 0.0
    %2239 = vmatpush2.msra.mxu0 0.0
    %2240 = vmatprep.mubr.f32.mxu0 0.0
    %2241 = vmatmul.mubr.f32.gmra.mxu0 %v2171
    %v2242 = vpop.f32.mrf.mxu0
    %v2243 = vadd.f32 %v2168, %v2242
    %v2244 = vpop.f32.mrf.mxu0
    %2245 = vmatprep.mubr.f32.mxu0 0.0
    %2246 = vmatmul.mubr.f32.gmra.mxu0 %v2174
    %v2247 = vpop.f32.mrf.mxu0
    %v2248 = vadd.f32 %v2168, %v2247
    %v2249 = vpop.f32.mrf.mxu0
    %2250 = vdwg.mxu0
    %v2251 = vadd.f32 %v1179, %v2243
    %v2252 = vadd.f32 %v1184, %v2248
    %v2253 = vsel %vm897, %v2251, 0.0
    %2254 = vadd.xlane.f32.xlu0 %v2253
    %v2255 = vpop.xlane.xlu0 %2254
    %vm2256 = vcmask 254976
    %v2257 = vsel %vm2256, %v2252, 0.0
    %2258 = vadd.xlane.f32.xlu0 %v2257
    %v2259 = vpop.xlane.xlu0 %2258
    %v2260 = vrcp.pop 32.0
    %v2261 = vmul.f32 %v2255, %v2260
    %v2262 = vmul.f32 %v2259, %v2260
    %v2263 = vsub.f32 %v2251, %v2261
    %v2264 = vsub.f32 %v2252, %v2262
    %v2265 = vmul.f32 %v2263, %v2263
    %v2266 = vmul.f32 %v2264, %v2264
    %v2267 = vsel %vm897, %v2265, 0.0
    %2268 = vadd.xlane.f32.xlu0 %v2267
    %v2269 = vpop.xlane.xlu0 %2268
    %v2270 = vsel %vm2256, %v2266, 0.0
    %2271 = vadd.xlane.f32.xlu0 %v2270
    %v2272 = vpop.xlane.xlu0 %2271
    %v2273 = vmul.f32 %v2269, %v2260
    %v2274 = vmul.f32 %v2272, %v2260
    %v2275 = vadd.f32 %v2273, 1e-05
    %v2276 = vadd.f32 %v2274, 1e-05
    %v2277 = vrsqrt.pop %v2275
    %v2278 = vrsqrt.pop %v2276
    %v2279 = vmul.f32 %v2263, %v2277
    %v2280 = vmul.f32 %v2264, %v2278
    %v2282 = vlaneseq
    %v2283 = vshrl.u32 %v2282, 7
    %v2284 = vsub.s32 0, %v2283
    %v2285 = vrot.slane %v1199, %v2284
    %v2287 = vmul.f32 %v2279, %v2285
    %v2288 = vmul.f32 %v2280, %v2285
    %v2290 = vlaneseq
    %v2291 = vshrl.u32 %v2290, 7
    %v2292 = vsub.s32 0, %v2291
    %v2293 = vrot.slane %v1200, %v2292
    %v2295 = vadd.f32 %v2287, %v2293
    %v2296 = vadd.f32 %v2288, %v2293
    %v2298 = vlaneseq
    %v2299 = vshrl.u32 %v2298, 7
    %v2300 = vsub.s32 0, %v2299
    %v2301 = vrot.slane %v1205, %v2300
    %v2304 = vsel %vm897, %v2295, 0
    %v2307 = vsel %vm897, %v2296, 0
    %2309 = vmatprep.subr.mxu0 0.0
    %2310 = vmatpush1.msra.mxu0 0.0
    %2311 = vmatprep.subr.mxu0 0.0
    %2312 = vmatpush1.msra.mxu0 0.0
    %2313 = vmatprep.subr.mxu0 0.0
    %2314 = vmatpush1.msra.mxu0 0.0
    %2315 = vmatprep.subr.mxu0 0.0
    %2316 = vmatpush1.msra.mxu0 0.0
    %2317 = vmatprep.subr.mxu0 0.0
    %2318 = vmatpush1.msra.mxu0 0.0
    %2319 = vmatprep.subr.mxu0 0.0
    %2320 = vmatpush1.msra.mxu0 0.0
    %2321 = vmatprep.subr.mxu0 0.0
    %2322 = vmatpush1.msra.mxu0 0.0
    %2323 = vmatprep.subr.mxu0 0.0
    %2324 = vmatpush1.msra.mxu0 0.0
    %2325 = vmatprep.subr.mxu0 0.0
    %2326 = vmatpush1.msra.mxu0 0.0
    %2327 = vmatprep.subr.mxu0 0.0
    %2328 = vmatpush1.msra.mxu0 0.0
    %2329 = vmatprep.subr.mxu0 0.0
    %2330 = vmatpush1.msra.mxu0 0.0
    %2331 = vmatprep.subr.mxu0 0.0
    %2332 = vmatpush1.msra.mxu0 0.0
    %2333 = vmatprep.subr.mxu0 0.0
    %2334 = vmatpush1.msra.mxu0 %v1204
    %2335 = vmatprep.subr.mxu0 0.0
    %2336 = vmatpush1.msra.mxu0 %v1203
    %2337 = vmatprep.subr.mxu0 0.0
    %2338 = vmatpush1.msra.mxu0 %v1202
    %2339 = vmatprep.subr.mxu0 0.0
    %2340 = vmatpush1.msra.mxu0 %v1201
    %2341 = vmatprep.subr.mxu0 0.0
    %2342 = vmatpush2.msra.mxu0 0.0
    %2343 = vmatprep.subr.mxu0 0.0
    %2344 = vmatpush2.msra.mxu0 0.0
    %2345 = vmatprep.subr.mxu0 0.0
    %2346 = vmatpush2.msra.mxu0 0.0
    %2347 = vmatprep.subr.mxu0 0.0
    %2348 = vmatpush2.msra.mxu0 0.0
    %2349 = vmatprep.subr.mxu0 0.0
    %2350 = vmatpush2.msra.mxu0 0.0
    %2351 = vmatprep.subr.mxu0 0.0
    %2352 = vmatpush2.msra.mxu0 0.0
    %2353 = vmatprep.subr.mxu0 0.0
    %2354 = vmatpush2.msra.mxu0 0.0
    %2355 = vmatprep.subr.mxu0 0.0
    %2356 = vmatpush2.msra.mxu0 0.0
    %2357 = vmatprep.subr.mxu0 0.0
    %2358 = vmatpush2.msra.mxu0 0.0
    %2359 = vmatprep.subr.mxu0 0.0
    %2360 = vmatpush2.msra.mxu0 0.0
    %2361 = vmatprep.subr.mxu0 0.0
    %2362 = vmatpush2.msra.mxu0 0.0
    %2363 = vmatprep.subr.mxu0 0.0
    %2364 = vmatpush2.msra.mxu0 0.0
    %2365 = vmatprep.subr.mxu0 0.0
    %2366 = vmatpush2.msra.mxu0 0.0
    %2367 = vmatprep.subr.mxu0 0.0
    %2368 = vmatpush2.msra.mxu0 0.0
    %2369 = vmatprep.subr.mxu0 0.0
    %2370 = vmatpush2.msra.mxu0 0.0
    %2371 = vmatprep.subr.mxu0 0.0
    %2372 = vmatpush2.msra.mxu0 0.0
    %2373 = vmatprep.mubr.f32.mxu0 0.0
    %2374 = vmatmul.mubr.f32.gmra.mxu0 %v2304
    %v2375 = vpop.f32.mrf.mxu0
    %v2376 = vadd.f32 %v2301, %v2375
    %v2377 = vpop.f32.mrf.mxu0
    %2378 = vmatprep.mubr.f32.mxu0 0.0
    %2379 = vmatmul.mubr.f32.gmra.mxu0 %v2307
    %v2380 = vpop.f32.mrf.mxu0
    %v2381 = vadd.f32 %v2301, %v2380
    %v2382 = vpop.f32.mrf.mxu0
    %2383 = vdwg.mxu0
    %v2384 = vmul.f32 %v2376, 0.5
    %v2385 = vmul.f32 %v2381, 0.5
    %v2386 = vmul.f32 %v2376, 0.70710677
    %v2387 = vmul.f32 %v2381, 0.70710677
    %vm2388 = vcmp.ge.f32.partialorder %v2386, 0.0
    %vm2389 = vcmp.ge.f32.partialorder %v2387, 0.0
    %v2390 = vsel %vm2388, 1.0, -1.0
    %v2391 = vsel %vm2389, 1.0, -1.0
    %v2392 = vand.u32 2147483647, %v2386
    %v2393 = vand.u32 2147483647, %v2387
    %v2394 = vmul.f32 %v2392, 0.3275911
    %v2395 = vmul.f32 %v2393, 0.3275911
    %v2396 = vadd.f32 %v2394, 1.0
    %v2397 = vadd.f32 %v2395, 1.0
    %v2398 = vrcp.pop %v2396
    %v2399 = vmul.f32 1.0, %v2398
    %v2400 = vrcp.pop %v2397
    %v2401 = vmul.f32 1.0, %v2400
    %v2402 = vmul.f32 %v2399, 1.0614054
    %v2403 = vmul.f32 %v2401, 1.0614054
    %v2404 = vadd.f32 %v2402, -1.4531521
    %v2405 = vadd.f32 %v2403, -1.4531521
    %v2406 = vmul.f32 %v2404, %v2399
    %v2407 = vmul.f32 %v2405, %v2401
    %v2408 = vadd.f32 %v2406, 1.4214138
    %v2409 = vadd.f32 %v2407, 1.4214138
    %v2410 = vmul.f32 %v2408, %v2399
    %v2411 = vmul.f32 %v2409, %v2401
    %v2412 = vadd.f32 %v2410, -0.28449672
    %v2413 = vadd.f32 %v2411, -0.28449672
    %v2414 = vmul.f32 %v2412, %v2399
    %v2415 = vmul.f32 %v2413, %v2401
    %v2416 = vadd.f32 %v2414, 0.2548296
    %v2417 = vadd.f32 %v2415, 0.2548296
    %v2418 = vmul.f32 %v2416, %v2399
    %v2419 = vmul.f32 %v2417, %v2401
    %v2420 = vsub.f32 0.0, %v2392
    %v2421 = vsub.f32 0.0, %v2393
    %v2422 = vmul.f32 %v2420, %v2392
    %v2423 = vmul.f32 %v2421, %v2393
    %v2424 = vmul.f32 %v2422, 1.442695
    %v2425 = vpow.pop %v2424
    %v2426 = vmul.f32 %v2423, 1.442695
    %v2427 = vpow.pop %v2426
    %v2428 = vmul.f32 %v2418, %v2425
    %v2429 = vmul.f32 %v2419, %v2427
    %v2430 = vsub.f32 1.0, %v2428
    %v2431 = vsub.f32 1.0, %v2429
    %v2432 = vmul.f32 %v2390, %v2430
    %v2433 = vmul.f32 %v2391, %v2431
    %v2434 = vadd.f32 %v2432, 1.0
    %v2435 = vadd.f32 %v2433, 1.0
    %v2436 = vmul.f32 %v2384, %v2434
    %v2437 = vmul.f32 %v2385, %v2435
    %v2439 = vlaneseq
    %v2440 = vshrl.u32 %v2439, 7
    %v2441 = vsub.s32 0, %v2440
    %v2442 = vrot.slane %v1222, %v2441
    %2444 = vmatprep.subr.mxu0 0.0
    %2445 = vmatpush1.msra.mxu0 %v1221
    %2446 = vmatprep.subr.mxu0 0.0
    %2447 = vmatpush1.msra.mxu0 %v1220
    %2448 = vmatprep.subr.mxu0 0.0
    %2449 = vmatpush1.msra.mxu0 %v1219
    %2450 = vmatprep.subr.mxu0 0.0
    %2451 = vmatpush1.msra.mxu0 %v1218
    %2452 = vmatprep.subr.mxu0 0.0
    %2453 = vmatpush1.msra.mxu0 %v1217
    %2454 = vmatprep.subr.mxu0 0.0
    %2455 = vmatpush1.msra.mxu0 %v1216
    %2456 = vmatprep.subr.mxu0 0.0
    %2457 = vmatpush1.msra.mxu0 %v1215
    %2458 = vmatprep.subr.mxu0 0.0
    %2459 = vmatpush1.msra.mxu0 %v1214
    %2460 = vmatprep.subr.mxu0 0.0
    %2461 = vmatpush1.msra.mxu0 %v1213
    %2462 = vmatprep.subr.mxu0 0.0
    %2463 = vmatpush1.msra.mxu0 %v1212
    %2464 = vmatprep.subr.mxu0 0.0
    %2465 = vmatpush1.msra.mxu0 %v1211
    %2466 = vmatprep.subr.mxu0 0.0
    %2467 = vmatpush1.msra.mxu0 %v1210
    %2468 = vmatprep.subr.mxu0 0.0
    %2469 = vmatpush1.msra.mxu0 %v1209
    %2470 = vmatprep.subr.mxu0 0.0
    %2471 = vmatpush1.msra.mxu0 %v1208
    %2472 = vmatprep.subr.mxu0 0.0
    %2473 = vmatpush1.msra.mxu0 %v1207
    %2474 = vmatprep.subr.mxu0 0.0
    %2475 = vmatpush1.msra.mxu0 %v1206
    %2476 = vmatprep.subr.mxu0 0.0
    %2477 = vmatpush2.msra.mxu0 0.0
    %2478 = vmatprep.subr.mxu0 0.0
    %2479 = vmatpush2.msra.mxu0 0.0
    %2480 = vmatprep.subr.mxu0 0.0
    %2481 = vmatpush2.msra.mxu0 0.0
    %2482 = vmatprep.subr.mxu0 0.0
    %2483 = vmatpush2.msra.mxu0 0.0
    %2484 = vmatprep.subr.mxu0 0.0
    %2485 = vmatpush2.msra.mxu0 0.0
    %2486 = vmatprep.subr.mxu0 0.0
    %2487 = vmatpush2.msra.mxu0 0.0
    %2488 = vmatprep.subr.mxu0 0.0
    %2489 = vmatpush2.msra.mxu0 0.0
    %2490 = vmatprep.subr.mxu0 0.0
    %2491 = vmatpush2.msra.mxu0 0.0
    %2492 = vmatprep.subr.mxu0 0.0
    %2493 = vmatpush2.msra.mxu0 0.0
    %2494 = vmatprep.subr.mxu0 0.0
    %2495 = vmatpush2.msra.mxu0 0.0
    %2496 = vmatprep.subr.mxu0 0.0
    %2497 = vmatpush2.msra.mxu0 0.0
    %2498 = vmatprep.subr.mxu0 0.0
    %2499 = vmatpush2.msra.mxu0 0.0
    %2500 = vmatprep.subr.mxu0 0.0
    %2501 = vmatpush2.msra.mxu0 0.0
    %2502 = vmatprep.subr.mxu0 0.0
    %2503 = vmatpush2.msra.mxu0 0.0
    %2504 = vmatprep.subr.mxu0 0.0
    %2505 = vmatpush2.msra.mxu0 0.0
    %2506 = vmatprep.subr.mxu0 0.0
    %2507 = vmatpush2.msra.mxu0 0.0
    %2508 = vmatprep.mubr.f32.mxu0 0.0
    %2509 = vmatmul.mubr.f32.gmra.mxu0 %v2436
    %v2510 = vpop.f32.mrf.mxu0
    %v2511 = vadd.f32 %v2442, %v2510
    %v2512 = vpop.f32.mrf.mxu0
    %2513 = vmatprep.mubr.f32.mxu0 0.0
    %2514 = vmatmul.mubr.f32.gmra.mxu0 %v2437
    %v2515 = vpop.f32.mrf.mxu0
    %v2516 = vadd.f32 %v2442, %v2515
    %v2517 = vpop.f32.mrf.mxu0
    %2518 = vdwg.mxu0
    %v2519 = vadd.f32 %v2295, %v2511
    %v2520 = vadd.f32 %v2296, %v2516
    %v2521 = vsel %vm897, %v2519, 0.0
    %2522 = vadd.xlane.f32.xlu0 %v2521
    %v2523 = vpop.xlane.xlu0 %2522
    %v2524 = vsel %vm2256, %v2520, 0.0
    %2525 = vadd.xlane.f32.xlu0 %v2524
    %v2526 = vpop.xlane.xlu0 %2525
    %v2527 = vmul.f32 %v2523, %v2260
    %v2528 = vmul.f32 %v2526, %v2260
    %v2529 = vsub.f32 %v2519, %v2527
    %v2530 = vsub.f32 %v2520, %v2528
    %v2531 = vmul.f32 %v2529, %v2529
    %v2532 = vmul.f32 %v2530, %v2530
    %v2533 = vsel %vm897, %v2531, 0.0
    %2534 = vadd.xlane.f32.xlu0 %v2533
    %v2535 = vpop.xlane.xlu0 %2534
    %v2536 = vsel %vm2256, %v2532, 0.0
    %2537 = vadd.xlane.f32.xlu0 %v2536
    %v2538 = vpop.xlane.xlu0 %2537
    %v2539 = vmul.f32 %v2535, %v2260
    %v2540 = vmul.f32 %v2538, %v2260
    %v2541 = vadd.f32 %v2539, 1e-05
    %v2542 = vadd.f32 %v2540, 1e-05
    %v2543 = vrsqrt.pop %v2541
    %v2544 = vrsqrt.pop %v2542
    %v2545 = vmul.f32 %v2529, %v2543
    %v2546 = vmul.f32 %v2530, %v2544
    %v2548 = vlaneseq
    %v2549 = vshrl.u32 %v2548, 7
    %v2550 = vsub.s32 0, %v2549
    %v2551 = vrot.slane %v1223, %v2550
    %v2553 = vmul.f32 %v2545, %v2551
    %v2554 = vmul.f32 %v2546, %v2551
    %v2556 = vlaneseq
    %v2557 = vshrl.u32 %v2556, 7
    %v2558 = vsub.s32 0, %v2557
    %v2559 = vrot.slane %v1224, %v2558
    %v2561 = vadd.f32 %v2553, %v2559
    %v2562 = vadd.f32 %v2554, %v2559
    %v2563 = vld [vmem:[%s65] sm:$0xff]
    %v2564 = vld [vmem:[%s65 + $0x8] sm:$0xff]
    %v2565 = vld [vmem:[%s65 + $0x10] sm:$0xff]
    %v2566 = vld [vmem:[%s65 + $0x18] sm:$0xff]
    %v2567 = vld [vmem:[#allocation7] sm:$0x1]
    %v2568 = vld [vmem:[%s69] sm:$0xff]
    %v2569 = vld [vmem:[%s69 + $0x8] sm:$0xff]
    %v2570 = vld [vmem:[%s69 + $0x10] sm:$0xff]
    %v2571 = vld [vmem:[%s69 + $0x18] sm:$0xff]
    %v2572 = vld [vmem:[#allocation8] sm:$0x1]
    %v2573 = vld [vmem:[#allocation10] sm:$0x1]
    %v2574 = vld [vmem:[#allocation11] sm:$0x1]
    %v2575 = vld [vmem:[%s77] sm:$0xff]
    %v2576 = vld [vmem:[%s77 + $0x8] sm:$0xff]
    %v2577 = vld [vmem:[%s77 + $0x10] sm:$0xff]
    %v2578 = vld [vmem:[%s77 + $0x18] sm:$0xff]
    %v2579 = vld [vmem:[#allocation13] sm:$0x1]
    %v2580 = vld [vmem:[%s81] sm:$0xff]
    %v2581 = vld [vmem:[%s81 + $0x8] sm:$0xff]
    %v2582 = vld [vmem:[%s81 + $0x10] sm:$0xff]
    %v2583 = vld [vmem:[%s81 + $0x18] sm:$0xff]
    %v2584 = vld [vmem:[%s81 + $0x20] sm:$0xff]
    %v2585 = vld [vmem:[%s81 + $0x28] sm:$0xff]
    %v2586 = vld [vmem:[%s81 + $0x30] sm:$0xff]
    %v2587 = vld [vmem:[%s81 + $0x38] sm:$0xff]
    %v2588 = vld [vmem:[%s81 + $0x40] sm:$0xff]
    %v2589 = vld [vmem:[%s81 + $0x48] sm:$0xff]
    %v2590 = vld [vmem:[%s81 + $0x50] sm:$0xff]
    %v2591 = vld [vmem:[%s81 + $0x58] sm:$0xff]
    %v2592 = vld [vmem:[%s81 + $0x60] sm:$0xff]
    %v2593 = vld [vmem:[%s81 + $0x68] sm:$0xff]
    %v2594 = vld [vmem:[%s81 + $0x70] sm:$0xff]
    %v2595 = vld [vmem:[%s81 + $0x78] sm:$0xff]
    %v2596 = vld [vmem:[#allocation14] sm:$0x1]
    %v2597 = vld [vmem:[#allocation16] sm:$0x1]
    %v2598 = vld [vmem:[#allocation17] sm:$0x1]
    %v2600 = vlaneseq
    %v2601 = vshrl.u32 %v2600, 7
    %v2602 = vsub.s32 0, %v2601
    %v2603 = vrot.slane %v2567, %v2602
    %v2606 = vsel %vm897, %v2561, 0
    %v2609 = vsel %vm897, %v2562, 0
    %2611 = vmatprep.subr.mxu0 0.0
    %2612 = vmatpush1.msra.mxu0 0.0
    %2613 = vmatprep.subr.mxu0 0.0
    %2614 = vmatpush1.msra.mxu0 0.0
    %2615 = vmatprep.subr.mxu0 0.0
    %2616 = vmatpush1.msra.mxu0 0.0
    %2617 = vmatprep.subr.mxu0 0.0
    %2618 = vmatpush1.msra.mxu0 0.0
    %2619 = vmatprep.subr.mxu0 0.0
    %2620 = vmatpush1.msra.mxu0 0.0
    %2621 = vmatprep.subr.mxu0 0.0
    %2622 = vmatpush1.msra.mxu0 0.0
    %2623 = vmatprep.subr.mxu0 0.0
    %2624 = vmatpush1.msra.mxu0 0.0
    %2625 = vmatprep.subr.mxu0 0.0
    %2626 = vmatpush1.msra.mxu0 0.0
    %2627 = vmatprep.subr.mxu0 0.0
    %2628 = vmatpush1.msra.mxu0 0.0
    %2629 = vmatprep.subr.mxu0 0.0
    %2630 = vmatpush1.msra.mxu0 0.0
    %2631 = vmatprep.subr.mxu0 0.0
    %2632 = vmatpush1.msra.mxu0 0.0
    %2633 = vmatprep.subr.mxu0 0.0
    %2634 = vmatpush1.msra.mxu0 0.0
    %2635 = vmatprep.subr.mxu0 0.0
    %2636 = vmatpush1.msra.mxu0 %v2566
    %2637 = vmatprep.subr.mxu0 0.0
    %2638 = vmatpush1.msra.mxu0 %v2565
    %2639 = vmatprep.subr.mxu0 0.0
    %2640 = vmatpush1.msra.mxu0 %v2564
    %2641 = vmatprep.subr.mxu0 0.0
    %2642 = vmatpush1.msra.mxu0 %v2563
    %2643 = vmatprep.subr.mxu0 0.0
    %2644 = vmatpush2.msra.mxu0 0.0
    %2645 = vmatprep.subr.mxu0 0.0
    %2646 = vmatpush2.msra.mxu0 0.0
    %2647 = vmatprep.subr.mxu0 0.0
    %2648 = vmatpush2.msra.mxu0 0.0
    %2649 = vmatprep.subr.mxu0 0.0
    %2650 = vmatpush2.msra.mxu0 0.0
    %2651 = vmatprep.subr.mxu0 0.0
    %2652 = vmatpush2.msra.mxu0 0.0
    %2653 = vmatprep.subr.mxu0 0.0
    %2654 = vmatpush2.msra.mxu0 0.0
    %2655 = vmatprep.subr.mxu0 0.0
    %2656 = vmatpush2.msra.mxu0 0.0
    %2657 = vmatprep.subr.mxu0 0.0
    %2658 = vmatpush2.msra.mxu0 0.0
    %2659 = vmatprep.subr.mxu0 0.0
    %2660 = vmatpush2.msra.mxu0 0.0
    %2661 = vmatprep.subr.mxu0 0.0
    %2662 = vmatpush2.msra.mxu0 0.0
    %2663 = vmatprep.subr.mxu0 0.0
    %2664 = vmatpush2.msra.mxu0 0.0
    %2665 = vmatprep.subr.mxu0 0.0
    %2666 = vmatpush2.msra.mxu0 0.0
    %2667 = vmatprep.subr.mxu0 0.0
    %2668 = vmatpush2.msra.mxu0 0.0
    %2669 = vmatprep.subr.mxu0 0.0
    %2670 = vmatpush2.msra.mxu0 0.0
    %2671 = vmatprep.subr.mxu0 0.0
    %2672 = vmatpush2.msra.mxu0 0.0
    %2673 = vmatprep.subr.mxu0 0.0
    %2674 = vmatpush2.msra.mxu0 0.0
    %2675 = vmatprep.mubr.f32.mxu0 0.0
    %2676 = vmatmul.mubr.f32.gmra.mxu0 %v2606
    %v2677 = vpop.f32.mrf.mxu0
    %v2678 = vadd.f32 %v2603, %v2677
    %v2679 = vpop.f32.mrf.mxu0
    %2680 = vmatprep.mubr.f32.mxu0 0.0
    %2681 = vmatmul.mubr.f32.gmra.mxu0 %v2609
    %v2682 = vpop.f32.mrf.mxu0
    %v2683 = vadd.f32 %v2603, %v2682
    %v2684 = vpop.f32.mrf.mxu0
    %2685 = vdwg.mxu0
    %2688 = vrot.lane.b32.xlu0 %v2678, 96
    %v2689 = vpop.permute.xlu0 %2688
    %2690 = vrot.lane.b32.xlu0 %v2683, 96
    %v2691 = vpop.permute.xlu0 %2690
    %v2692 = vsel %vm576, %v2678, 0
    %v2694 = vsel %vm576, %v2683, 0
    %v2696 = vsel %vm576, %v2689, 0
    %v2698 = vsel %vm576, %v2691, 0
    %2700 = vmatprep.subr.mxu0 0.0
    %2701 = vmatpush1.xpose.msra.mxu0 0.0
    %2702 = vmatprep.subr.mxu0 0.0
    %2703 = vmatpush1.xpose.msra.mxu0 0.0
    %2704 = vmatprep.subr.mxu0 0.0
    %2705 = vmatpush1.xpose.msra.mxu0 0.0
    %2706 = vmatprep.subr.mxu0 0.0
    %2707 = vmatpush1.xpose.msra.mxu0 0.0
    %2708 = vmatprep.subr.mxu0 0.0
    %2709 = vmatpush1.xpose.msra.mxu0 0.0
    %2710 = vmatprep.subr.mxu0 0.0
    %2711 = vmatpush1.xpose.msra.mxu0 0.0
    %2712 = vmatprep.subr.mxu0 0.0
    %2713 = vmatpush1.xpose.msra.mxu0 0.0
    %2714 = vmatprep.subr.mxu0 0.0
    %2715 = vmatpush1.xpose.msra.mxu0 0.0
    %2716 = vmatprep.subr.mxu0 0.0
    %2717 = vmatpush1.xpose.msra.mxu0 0.0
    %2718 = vmatprep.subr.mxu0 0.0
    %2719 = vmatpush1.xpose.msra.mxu0 0.0
    %2720 = vmatprep.subr.mxu0 0.0
    %2721 = vmatpush1.xpose.msra.mxu0 0.0
    %2722 = vmatprep.subr.mxu0 0.0
    %2723 = vmatpush1.xpose.msra.mxu0 0.0
    %2724 = vmatprep.subr.mxu0 0.0
    %2725 = vmatpush1.xpose.msra.mxu0 0.0
    %2726 = vmatprep.subr.mxu0 0.0
    %2727 = vmatpush1.xpose.msra.mxu0 0.0
    %2728 = vmatprep.subr.mxu0 0.0
    %2729 = vmatpush1.xpose.msra.mxu0 %v2698
    %2730 = vmatprep.subr.mxu0 0.0
    %2731 = vmatpush1.xpose.msra.mxu0 %v2696
    %2732 = vmatprep.subr.mxu0 0.0
    %2733 = vmatpush2.xpose.msra.mxu0 0.0
    %2734 = vmatprep.subr.mxu0 0.0
    %2735 = vmatpush2.xpose.msra.mxu0 0.0
    %2736 = vmatprep.subr.mxu0 0.0
    %2737 = vmatpush2.xpose.msra.mxu0 0.0
    %2738 = vmatprep.subr.mxu0 0.0
    %2739 = vmatpush2.xpose.msra.mxu0 0.0
    %2740 = vmatprep.subr.mxu0 0.0
    %2741 = vmatpush2.xpose.msra.mxu0 0.0
    %2742 = vmatprep.subr.mxu0 0.0
    %2743 = vmatpush2.xpose.msra.mxu0 0.0
    %2744 = vmatprep.subr.mxu0 0.0
    %2745 = vmatpush2.xpose.msra.mxu0 0.0
    %2746 = vmatprep.subr.mxu0 0.0
    %2747 = vmatpush2.xpose.msra.mxu0 0.0
    %2748 = vmatprep.subr.mxu0 0.0
    %2749 = vmatpush2.xpose.msra.mxu0 0.0
    %2750 = vmatprep.subr.mxu0 0.0
    %2751 = vmatpush2.xpose.msra.mxu0 0.0
    %2752 = vmatprep.subr.mxu0 0.0
    %2753 = vmatpush2.xpose.msra.mxu0 0.0
    %2754 = vmatprep.subr.mxu0 0.0
    %2755 = vmatpush2.xpose.msra.mxu0 0.0
    %2756 = vmatprep.subr.mxu0 0.0
    %2757 = vmatpush2.xpose.msra.mxu0 0.0
    %2758 = vmatprep.subr.mxu0 0.0
    %2759 = vmatpush2.xpose.msra.mxu0 0.0
    %2760 = vmatprep.subr.mxu0 0.0
    %2761 = vmatpush2.xpose.msra.mxu0 0.0
    %2762 = vmatprep.subr.mxu0 0.0
    %2763 = vmatpush2.xpose.msra.mxu0 0.0
    %2764 = vmatprep.mubr.f32.mxu0 0.0
    %2765 = vmatmul.mubr.f32.gmra.mxu0 %v2692
    %v2766 = vpop.f32.mrf.mxu0
    %v2767 = vadd.f32 0.0, %v2766
    %v2768 = vpop.f32.mrf.mxu0
    %2769 = vmatprep.mubr.f32.mxu0 0.0
    %2770 = vmatmul.mubr.f32.gmra.mxu0 %v2694
    %v2771 = vpop.f32.mrf.mxu0
    %v2772 = vadd.f32 0.0, %v2771
    %v2773 = vpop.f32.mrf.mxu0
    %2774 = vdwg.mxu0
    %v2775 = vmul.f32 %v2767, 0.35355338
    %v2776 = vmul.f32 %v2772, 0.35355338
    %v2777 = vadd.f32 %v2775, %v1187
    %v2778 = vadd.f32 %v2776, %v1188
    %v2779 = vsel %vm1405, %v2777, -inf
    %2780 = vmax.xlane.f32.xlu0 %v2779
    %v2781 = vpop.xlane.xlu0 %2780
    %v2782 = vsel %vm1409, %v2778, -inf
    %2783 = vmax.xlane.f32.xlu0 %v2782
    %v2784 = vpop.xlane.xlu0 %2783
    %v2785 = vsub.f32 %v2777, %v2781
    %v2786 = vsub.f32 %v2778, %v2784
    %v2787 = vmul.f32 %v2785, 1.442695
    %v2788 = vpow.pop %v2787
    %v2789 = vmul.f32 %v2786, 1.442695
    %v2790 = vpow.pop %v2789
    %v2791 = vsel %vm1405, %v2788, 0.0
    %2792 = vadd.xlane.f32.xlu0 %v2791
    %v2793 = vpop.xlane.xlu0 %2792
    %v2794 = vsel %vm1409, %v2790, 0.0
    %2795 = vadd.xlane.f32.xlu0 %v2794
    %v2796 = vpop.xlane.xlu0 %2795
    %v2797 = vrcp.pop %v2793
    %v2798 = vmul.f32 %v2788, %v2797
    %v2799 = vrcp.pop %v2796
    %v2800 = vmul.f32 %v2790, %v2799
    %2801 = vrot.lane.b32.xlu0 %v2678, 64
    %v2802 = vpop.permute.xlu0 %2801
    %2803 = vrot.lane.b32.xlu0 %v2683, 64
    %v2804 = vpop.permute.xlu0 %2803
    %v2807 = vsel %vm1405, %v2798, 0
    %v2810 = vsel %vm1405, %v2800, 0
    %v2812 = vsel %vm1440, %v2804, 0
    %2814 = vmatprep.subr.mxu0 0.0
    %2815 = vmatpush1.msra.mxu0 0.0
    %2816 = vmatprep.subr.mxu0 0.0
    %2817 = vmatpush1.msra.mxu0 0.0
    %2818 = vmatprep.subr.mxu0 0.0
    %2819 = vmatpush1.msra.mxu0 0.0
    %2820 = vmatprep.subr.mxu0 0.0
    %2821 = vmatpush1.msra.mxu0 0.0
    %2822 = vmatprep.subr.mxu0 0.0
    %2823 = vmatpush1.msra.mxu0 0.0
    %2824 = vmatprep.subr.mxu0 0.0
    %2825 = vmatpush1.msra.mxu0 0.0
    %2826 = vmatprep.subr.mxu0 0.0
    %2827 = vmatpush1.msra.mxu0 0.0
    %2828 = vmatprep.subr.mxu0 0.0
    %2829 = vmatpush1.msra.mxu0 0.0
    %2830 = vmatprep.subr.mxu0 0.0
    %2831 = vmatpush1.msra.mxu0 0.0
    %2832 = vmatprep.subr.mxu0 0.0
    %2833 = vmatpush1.msra.mxu0 0.0
    %2834 = vmatprep.subr.mxu0 0.0
    %2835 = vmatpush1.msra.mxu0 0.0
    %2836 = vmatprep.subr.mxu0 0.0
    %2837 = vmatpush1.msra.mxu0 0.0
    %2838 = vmatprep.subr.mxu0 0.0
    %2839 = vmatpush1.msra.mxu0 0.0
    %2840 = vmatprep.subr.mxu0 0.0
    %2841 = vmatpush1.msra.mxu0 0.0
    %2842 = vmatprep.subr.mxu0 0.0
    %2843 = vmatpush1.msra.mxu0 %v2812
    %2844 = vmatprep.subr.mxu0 0.0
    %2845 = vmatpush1.msra.mxu0 %v2802
    %2846 = vmatprep.subr.mxu0 0.0
    %2847 = vmatpush2.msra.mxu0 0.0
    %2848 = vmatprep.subr.mxu0 0.0
    %2849 = vmatpush2.msra.mxu0 0.0
    %2850 = vmatprep.subr.mxu0 0.0
    %2851 = vmatpush2.msra.mxu0 0.0
    %2852 = vmatprep.subr.mxu0 0.0
    %2853 = vmatpush2.msra.mxu0 0.0
    %2854 = vmatprep.subr.mxu0 0.0
    %2855 = vmatpush2.msra.mxu0 0.0
    %2856 = vmatprep.subr.mxu0 0.0
    %2857 = vmatpush2.msra.mxu0 0.0
    %2858 = vmatprep.subr.mxu0 0.0
    %2859 = vmatpush2.msra.mxu0 0.0
    %2860 = vmatprep.subr.mxu0 0.0
    %2861 = vmatpush2.msra.mxu0 0.0
    %2862 = vmatprep.subr.mxu0 0.0
    %2863 = vmatpush2.msra.mxu0 0.0
    %2864 = vmatprep.subr.mxu0 0.0
    %2865 = vmatpush2.msra.mxu0 0.0
    %2866 = vmatprep.subr.mxu0 0.0
    %2867 = vmatpush2.msra.mxu0 0.0
    %2868 = vmatprep.subr.mxu0 0.0
    %2869 = vmatpush2.msra.mxu0 0.0
    %2870 = vmatprep.subr.mxu0 0.0
    %2871 = vmatpush2.msra.mxu0 0.0
    %2872 = vmatprep.subr.mxu0 0.0
    %2873 = vmatpush2.msra.mxu0 0.0
    %2874 = vmatprep.subr.mxu0 0.0
    %2875 = vmatpush2.msra.mxu0 0.0
    %2876 = vmatprep.subr.mxu0 0.0
    %2877 = vmatpush2.msra.mxu0 0.0
    %2878 = vmatprep.mubr.f32.mxu0 0.0
    %2879 = vmatmul.mubr.f32.gmra.mxu0 %v2807
    %v2880 = vpop.f32.mrf.mxu0
    %v2881 = vadd.f32 0.0, %v2880
    %v2882 = vpop.f32.mrf.mxu0
    %2883 = vmatprep.mubr.f32.mxu0 0.0
    %2884 = vmatmul.mubr.f32.gmra.mxu0 %v2810
    %v2885 = vpop.f32.mrf.mxu0
    %v2886 = vadd.f32 0.0, %v2885
    %v2887 = vpop.f32.mrf.mxu0
    %2888 = vdwg.mxu0
    %2889 = vrot.lane.b32.xlu0 %v2678, 120
    %v2890 = vpop.permute.xlu0 %2889
    %2891 = vrot.lane.b32.xlu0 %v2683, 120
    %v2892 = vpop.permute.xlu0 %2891
    %2893 = vrot.lane.b32.xlu0 %v2678, 88
    %v2894 = vpop.permute.xlu0 %2893
    %2895 = vrot.lane.b32.xlu0 %v2683, 88
    %v2896 = vpop.permute.xlu0 %2895
    %v2897 = vsel %vm576, %v2890, 0
    %v2899 = vsel %vm576, %v2892, 0
    %v2901 = vsel %vm576, %v2894, 0
    %v2903 = vsel %vm576, %v2896, 0
    %2905 = vmatprep.subr.mxu0 0.0
    %2906 = vmatpush1.xpose.msra.mxu0 0.0
    %2907 = vmatprep.subr.mxu0 0.0
    %2908 = vmatpush1.xpose.msra.mxu0 0.0
    %2909 = vmatprep.subr.mxu0 0.0
    %2910 = vmatpush1.xpose.msra.mxu0 0.0
    %2911 = vmatprep.subr.mxu0 0.0
    %2912 = vmatpush1.xpose.msra.mxu0 0.0
    %2913 = vmatprep.subr.mxu0 0.0
    %2914 = vmatpush1.xpose.msra.mxu0 0.0
    %2915 = vmatprep.subr.mxu0 0.0
    %2916 = vmatpush1.xpose.msra.mxu0 0.0
    %2917 = vmatprep.subr.mxu0 0.0
    %2918 = vmatpush1.xpose.msra.mxu0 0.0
    %2919 = vmatprep.subr.mxu0 0.0
    %2920 = vmatpush1.xpose.msra.mxu0 0.0
    %2921 = vmatprep.subr.mxu0 0.0
    %2922 = vmatpush1.xpose.msra.mxu0 0.0
    %2923 = vmatprep.subr.mxu0 0.0
    %2924 = vmatpush1.xpose.msra.mxu0 0.0
    %2925 = vmatprep.subr.mxu0 0.0
    %2926 = vmatpush1.xpose.msra.mxu0 0.0
    %2927 = vmatprep.subr.mxu0 0.0
    %2928 = vmatpush1.xpose.msra.mxu0 0.0
    %2929 = vmatprep.subr.mxu0 0.0
    %2930 = vmatpush1.xpose.msra.mxu0 0.0
    %2931 = vmatprep.subr.mxu0 0.0
    %2932 = vmatpush1.xpose.msra.mxu0 0.0
    %2933 = vmatprep.subr.mxu0 0.0
    %2934 = vmatpush1.xpose.msra.mxu0 %v2903
    %2935 = vmatprep.subr.mxu0 0.0
    %2936 = vmatpush1.xpose.msra.mxu0 %v2901
    %2937 = vmatprep.subr.mxu0 0.0
    %2938 = vmatpush2.xpose.msra.mxu0 0.0
    %2939 = vmatprep.subr.mxu0 0.0
    %2940 = vmatpush2.xpose.msra.mxu0 0.0
    %2941 = vmatprep.subr.mxu0 0.0
    %2942 = vmatpush2.xpose.msra.mxu0 0.0
    %2943 = vmatprep.subr.mxu0 0.0
    %2944 = vmatpush2.xpose.msra.mxu0 0.0
    %2945 = vmatprep.subr.mxu0 0.0
    %2946 = vmatpush2.xpose.msra.mxu0 0.0
    %2947 = vmatprep.subr.mxu0 0.0
    %2948 = vmatpush2.xpose.msra.mxu0 0.0
    %2949 = vmatprep.subr.mxu0 0.0
    %2950 = vmatpush2.xpose.msra.mxu0 0.0
    %2951 = vmatprep.subr.mxu0 0.0
    %2952 = vmatpush2.xpose.msra.mxu0 0.0
    %2953 = vmatprep.subr.mxu0 0.0
    %2954 = vmatpush2.xpose.msra.mxu0 0.0
    %2955 = vmatprep.subr.mxu0 0.0
    %2956 = vmatpush2.xpose.msra.mxu0 0.0
    %2957 = vmatprep.subr.mxu0 0.0
    %2958 = vmatpush2.xpose.msra.mxu0 0.0
    %2959 = vmatprep.subr.mxu0 0.0
    %2960 = vmatpush2.xpose.msra.mxu0 0.0
    %2961 = vmatprep.subr.mxu0 0.0
    %2962 = vmatpush2.xpose.msra.mxu0 0.0
    %2963 = vmatprep.subr.mxu0 0.0
    %2964 = vmatpush2.xpose.msra.mxu0 0.0
    %2965 = vmatprep.subr.mxu0 0.0
    %2966 = vmatpush2.xpose.msra.mxu0 0.0
    %2967 = vmatprep.subr.mxu0 0.0
    %2968 = vmatpush2.xpose.msra.mxu0 0.0
    %2969 = vmatprep.mubr.f32.mxu0 0.0
    %2970 = vmatmul.mubr.f32.gmra.mxu0 %v2897
    %v2971 = vpop.f32.mrf.mxu0
    %v2972 = vadd.f32 0.0, %v2971
    %v2973 = vpop.f32.mrf.mxu0
    %2974 = vmatprep.mubr.f32.mxu0 0.0
    %2975 = vmatmul.mubr.f32.gmra.mxu0 %v2899
    %v2976 = vpop.f32.mrf.mxu0
    %v2977 = vadd.f32 0.0, %v2976
    %v2978 = vpop.f32.mrf.mxu0
    %2979 = vdwg.mxu0
    %v2980 = vmul.f32 %v2972, 0.35355338
    %v2981 = vmul.f32 %v2977, 0.35355338
    %v2982 = vadd.f32 %v2980, %v1187
    %v2983 = vadd.f32 %v2981, %v1188
    %v2984 = vsel %vm1405, %v2982, -inf
    %2985 = vmax.xlane.f32.xlu0 %v2984
    %v2986 = vpop.xlane.xlu0 %2985
    %v2987 = vsel %vm1409, %v2983, -inf
    %2988 = vmax.xlane.f32.xlu0 %v2987
    %v2989 = vpop.xlane.xlu0 %2988
    %v2990 = vsub.f32 %v2982, %v2986
    %v2991 = vsub.f32 %v2983, %v2989
    %v2992 = vmul.f32 %v2990, 1.442695
    %v2993 = vpow.pop %v2992
    %v2994 = vmul.f32 %v2991, 1.442695
    %v2995 = vpow.pop %v2994
    %v2996 = vsel %vm1405, %v2993, 0.0
    %2997 = vadd.xlane.f32.xlu0 %v2996
    %v2998 = vpop.xlane.xlu0 %2997
    %v2999 = vsel %vm1409, %v2995, 0.0
    %3000 = vadd.xlane.f32.xlu0 %v2999
    %v3001 = vpop.xlane.xlu0 %3000
    %v3002 = vrcp.pop %v2998
    %v3003 = vmul.f32 %v2993, %v3002
    %v3004 = vrcp.pop %v3001
    %v3005 = vmul.f32 %v2995, %v3004
    %3006 = vrot.lane.b32.xlu0 %v2678, 56
    %v3007 = vpop.permute.xlu0 %3006
    %3008 = vrot.lane.b32.xlu0 %v2683, 56
    %v3009 = vpop.permute.xlu0 %3008
    %v3012 = vsel %vm1405, %v3003, 0
    %v3015 = vsel %vm1405, %v3005, 0
    %v3017 = vsel %vm1440, %v3009, 0
    %3019 = vmatprep.subr.mxu0 0.0
    %3020 = vmatpush1.msra.mxu0 0.0
    %3021 = vmatprep.subr.mxu0 0.0
    %3022 = vmatpush1.msra.mxu0 0.0
    %3023 = vmatprep.subr.mxu0 0.0
    %3024 = vmatpush1.msra.mxu0 0.0
    %3025 = vmatprep.subr.mxu0 0.0
    %3026 = vmatpush1.msra.mxu0 0.0
    %3027 = vmatprep.subr.mxu0 0.0
    %3028 = vmatpush1.msra.mxu0 0.0
    %3029 = vmatprep.subr.mxu0 0.0
    %3030 = vmatpush1.msra.mxu0 0.0
    %3031 = vmatprep.subr.mxu0 0.0
    %3032 = vmatpush1.msra.mxu0 0.0
    %3033 = vmatprep.subr.mxu0 0.0
    %3034 = vmatpush1.msra.mxu0 0.0
    %3035 = vmatprep.subr.mxu0 0.0
    %3036 = vmatpush1.msra.mxu0 0.0
    %3037 = vmatprep.subr.mxu0 0.0
    %3038 = vmatpush1.msra.mxu0 0.0
    %3039 = vmatprep.subr.mxu0 0.0
    %3040 = vmatpush1.msra.mxu0 0.0
    %3041 = vmatprep.subr.mxu0 0.0
    %3042 = vmatpush1.msra.mxu0 0.0
    %3043 = vmatprep.subr.mxu0 0.0
    %3044 = vmatpush1.msra.mxu0 0.0
    %3045 = vmatprep.subr.mxu0 0.0
    %3046 = vmatpush1.msra.mxu0 0.0
    %3047 = vmatprep.subr.mxu0 0.0
    %3048 = vmatpush1.msra.mxu0 %v3017
    %3049 = vmatprep.subr.mxu0 0.0
    %3050 = vmatpush1.msra.mxu0 %v3007
    %3051 = vmatprep.subr.mxu0 0.0
    %3052 = vmatpush2.msra.mxu0 0.0
    %3053 = vmatprep.subr.mxu0 0.0
    %3054 = vmatpush2.msra.mxu0 0.0
    %3055 = vmatprep.subr.mxu0 0.0
    %3056 = vmatpush2.msra.mxu0 0.0
    %3057 = vmatprep.subr.mxu0 0.0
    %3058 = vmatpush2.msra.mxu0 0.0
    %3059 = vmatprep.subr.mxu0 0.0
    %3060 = vmatpush2.msra.mxu0 0.0
    %3061 = vmatprep.subr.mxu0 0.0
    %3062 = vmatpush2.msra.mxu0 0.0
    %3063 = vmatprep.subr.mxu0 0.0
    %3064 = vmatpush2.msra.mxu0 0.0
    %3065 = vmatprep.subr.mxu0 0.0
    %3066 = vmatpush2.msra.mxu0 0.0
    %3067 = vmatprep.subr.mxu0 0.0
    %3068 = vmatpush2.msra.mxu0 0.0
    %3069 = vmatprep.subr.mxu0 0.0
    %3070 = vmatpush2.msra.mxu0 0.0
    %3071 = vmatprep.subr.mxu0 0.0
    %3072 = vmatpush2.msra.mxu0 0.0
    %3073 = vmatprep.subr.mxu0 0.0
    %3074 = vmatpush2.msra.mxu0 0.0
    %3075 = vmatprep.subr.mxu0 0.0
    %3076 = vmatpush2.msra.mxu0 0.0
    %3077 = vmatprep.subr.mxu0 0.0
    %3078 = vmatpush2.msra.mxu0 0.0
    %3079 = vmatprep.subr.mxu0 0.0
    %3080 = vmatpush2.msra.mxu0 0.0
    %3081 = vmatprep.subr.mxu0 0.0
    %3082 = vmatpush2.msra.mxu0 0.0
    %3083 = vmatprep.mubr.f32.mxu0 0.0
    %3084 = vmatmul.mubr.f32.gmra.mxu0 %v3012
    %v3085 = vpop.f32.mrf.mxu0
    %v3086 = vadd.f32 0.0, %v3085
    %v3087 = vpop.f32.mrf.mxu0
    %3088 = vmatprep.mubr.f32.mxu0 0.0
    %3089 = vmatmul.mubr.f32.gmra.mxu0 %v3015
    %v3090 = vpop.f32.mrf.mxu0
    %v3091 = vadd.f32 0.0, %v3090
    %v3092 = vpop.f32.mrf.mxu0
    %3093 = vdwg.mxu0
    %3094 = vrot.lane.b32.xlu0 %v2678, 112
    %v3095 = vpop.permute.xlu0 %3094
    %3096 = vrot.lane.b32.xlu0 %v2683, 112
    %v3097 = vpop.permute.xlu0 %3096
    %3098 = vrot.lane.b32.xlu0 %v2678, 80
    %v3099 = vpop.permute.xlu0 %3098
    %3100 = vrot.lane.b32.xlu0 %v2683, 80
    %v3101 = vpop.permute.xlu0 %3100
    %v3102 = vsel %vm576, %v3095, 0
    %v3104 = vsel %vm576, %v3097, 0
    %v3106 = vsel %vm576, %v3099, 0
    %v3108 = vsel %vm576, %v3101, 0
    %3110 = vmatprep.subr.mxu0 0.0
    %3111 = vmatpush1.xpose.msra.mxu0 0.0
    %3112 = vmatprep.subr.mxu0 0.0
    %3113 = vmatpush1.xpose.msra.mxu0 0.0
    %3114 = vmatprep.subr.mxu0 0.0
    %3115 = vmatpush1.xpose.msra.mxu0 0.0
    %3116 = vmatprep.subr.mxu0 0.0
    %3117 = vmatpush1.xpose.msra.mxu0 0.0
    %3118 = vmatprep.subr.mxu0 0.0
    %3119 = vmatpush1.xpose.msra.mxu0 0.0
    %3120 = vmatprep.subr.mxu0 0.0
    %3121 = vmatpush1.xpose.msra.mxu0 0.0
    %3122 = vmatprep.subr.mxu0 0.0
    %3123 = vmatpush1.xpose.msra.mxu0 0.0
    %3124 = vmatprep.subr.mxu0 0.0
    %3125 = vmatpush1.xpose.msra.mxu0 0.0
    %3126 = vmatprep.subr.mxu0 0.0
    %3127 = vmatpush1.xpose.msra.mxu0 0.0
    %3128 = vmatprep.subr.mxu0 0.0
    %3129 = vmatpush1.xpose.msra.mxu0 0.0
    %3130 = vmatprep.subr.mxu0 0.0
    %3131 = vmatpush1.xpose.msra.mxu0 0.0
    %3132 = vmatprep.subr.mxu0 0.0
    %3133 = vmatpush1.xpose.msra.mxu0 0.0
    %3134 = vmatprep.subr.mxu0 0.0
    %3135 = vmatpush1.xpose.msra.mxu0 0.0
    %3136 = vmatprep.subr.mxu0 0.0
    %3137 = vmatpush1.xpose.msra.mxu0 0.0
    %3138 = vmatprep.subr.mxu0 0.0
    %3139 = vmatpush1.xpose.msra.mxu0 %v3108
    %3140 = vmatprep.subr.mxu0 0.0
    %3141 = vmatpush1.xpose.msra.mxu0 %v3106
    %3142 = vmatprep.subr.mxu0 0.0
    %3143 = vmatpush2.xpose.msra.mxu0 0.0
    %3144 = vmatprep.subr.mxu0 0.0
    %3145 = vmatpush2.xpose.msra.mxu0 0.0
    %3146 = vmatprep.subr.mxu0 0.0
    %3147 = vmatpush2.xpose.msra.mxu0 0.0
    %3148 = vmatprep.subr.mxu0 0.0
    %3149 = vmatpush2.xpose.msra.mxu0 0.0
    %3150 = vmatprep.subr.mxu0 0.0
    %3151 = vmatpush2.xpose.msra.mxu0 0.0
    %3152 = vmatprep.subr.mxu0 0.0
    %3153 = vmatpush2.xpose.msra.mxu0 0.0
    %3154 = vmatprep.subr.mxu0 0.0
    %3155 = vmatpush2.xpose.msra.mxu0 0.0
    %3156 = vmatprep.subr.mxu0 0.0
    %3157 = vmatpush2.xpose.msra.mxu0 0.0
    %3158 = vmatprep.subr.mxu0 0.0
    %3159 = vmatpush2.xpose.msra.mxu0 0.0
    %3160 = vmatprep.subr.mxu0 0.0
    %3161 = vmatpush2.xpose.msra.mxu0 0.0
    %3162 = vmatprep.subr.mxu0 0.0
    %3163 = vmatpush2.xpose.msra.mxu0 0.0
    %3164 = vmatprep.subr.mxu0 0.0
    %3165 = vmatpush2.xpose.msra.mxu0 0.0
    %3166 = vmatprep.subr.mxu0 0.0
    %3167 = vmatpush2.xpose.msra.mxu0 0.0
    %3168 = vmatprep.subr.mxu0 0.0
    %3169 = vmatpush2.xpose.msra.mxu0 0.0
    %3170 = vmatprep.subr.mxu0 0.0
    %3171 = vmatpush2.xpose.msra.mxu0 0.0
    %3172 = vmatprep.subr.mxu0 0.0
    %3173 = vmatpush2.xpose.msra.mxu0 0.0
    %3174 = vmatprep.mubr.f32.mxu0 0.0
    %3175 = vmatmul.mubr.f32.gmra.mxu0 %v3102
    %v3176 = vpop.f32.mrf.mxu0
    %v3177 = vadd.f32 0.0, %v3176
    %v3178 = vpop.f32.mrf.mxu0
    %3179 = vmatprep.mubr.f32.mxu0 0.0
    %3180 = vmatmul.mubr.f32.gmra.mxu0 %v3104
    %v3181 = vpop.f32.mrf.mxu0
    %v3182 = vadd.f32 0.0, %v3181
    %v3183 = vpop.f32.mrf.mxu0
    %3184 = vdwg.mxu0
    %v3185 = vmul.f32 %v3177, 0.35355338
    %v3186 = vmul.f32 %v3182, 0.35355338
    %v3187 = vadd.f32 %v3185, %v1187
    %v3188 = vadd.f32 %v3186, %v1188
    %v3189 = vsel %vm1405, %v3187, -inf
    %3190 = vmax.xlane.f32.xlu0 %v3189
    %v3191 = vpop.xlane.xlu0 %3190
    %v3192 = vsel %vm1409, %v3188, -inf
    %3193 = vmax.xlane.f32.xlu0 %v3192
    %v3194 = vpop.xlane.xlu0 %3193
    %v3195 = vsub.f32 %v3187, %v3191
    %v3196 = vsub.f32 %v3188, %v3194
    %v3197 = vmul.f32 %v3195, 1.442695
    %v3198 = vpow.pop %v3197
    %v3199 = vmul.f32 %v3196, 1.442695
    %v3200 = vpow.pop %v3199
    %v3201 = vsel %vm1405, %v3198, 0.0
    %3202 = vadd.xlane.f32.xlu0 %v3201
    %v3203 = vpop.xlane.xlu0 %3202
    %v3204 = vsel %vm1409, %v3200, 0.0
    %3205 = vadd.xlane.f32.xlu0 %v3204
    %v3206 = vpop.xlane.xlu0 %3205
    %v3207 = vrcp.pop %v3203
    %v3208 = vmul.f32 %v3198, %v3207
    %v3209 = vrcp.pop %v3206
    %v3210 = vmul.f32 %v3200, %v3209
    %3211 = vrot.lane.b32.xlu0 %v2678, 48
    %v3212 = vpop.permute.xlu0 %3211
    %3213 = vrot.lane.b32.xlu0 %v2683, 48
    %v3214 = vpop.permute.xlu0 %3213
    %v3217 = vsel %vm1405, %v3208, 0
    %v3220 = vsel %vm1405, %v3210, 0
    %v3222 = vsel %vm1440, %v3214, 0
    %3224 = vmatprep.subr.mxu0 0.0
    %3225 = vmatpush1.msra.mxu0 0.0
    %3226 = vmatprep.subr.mxu0 0.0
    %3227 = vmatpush1.msra.mxu0 0.0
    %3228 = vmatprep.subr.mxu0 0.0
    %3229 = vmatpush1.msra.mxu0 0.0
    %3230 = vmatprep.subr.mxu0 0.0
    %3231 = vmatpush1.msra.mxu0 0.0
    %3232 = vmatprep.subr.mxu0 0.0
    %3233 = vmatpush1.msra.mxu0 0.0
    %3234 = vmatprep.subr.mxu0 0.0
    %3235 = vmatpush1.msra.mxu0 0.0
    %3236 = vmatprep.subr.mxu0 0.0
    %3237 = vmatpush1.msra.mxu0 0.0
    %3238 = vmatprep.subr.mxu0 0.0
    %3239 = vmatpush1.msra.mxu0 0.0
    %3240 = vmatprep.subr.mxu0 0.0
    %3241 = vmatpush1.msra.mxu0 0.0
    %3242 = vmatprep.subr.mxu0 0.0
    %3243 = vmatpush1.msra.mxu0 0.0
    %3244 = vmatprep.subr.mxu0 0.0
    %3245 = vmatpush1.msra.mxu0 0.0
    %3246 = vmatprep.subr.mxu0 0.0
    %3247 = vmatpush1.msra.mxu0 0.0
    %3248 = vmatprep.subr.mxu0 0.0
    %3249 = vmatpush1.msra.mxu0 0.0
    %3250 = vmatprep.subr.mxu0 0.0
    %3251 = vmatpush1.msra.mxu0 0.0
    %3252 = vmatprep.subr.mxu0 0.0
    %3253 = vmatpush1.msra.mxu0 %v3222
    %3254 = vmatprep.subr.mxu0 0.0
    %3255 = vmatpush1.msra.mxu0 %v3212
    %3256 = vmatprep.subr.mxu0 0.0
    %3257 = vmatpush2.msra.mxu0 0.0
    %3258 = vmatprep.subr.mxu0 0.0
    %3259 = vmatpush2.msra.mxu0 0.0
    %3260 = vmatprep.subr.mxu0 0.0
    %3261 = vmatpush2.msra.mxu0 0.0
    %3262 = vmatprep.subr.mxu0 0.0
    %3263 = vmatpush2.msra.mxu0 0.0
    %3264 = vmatprep.subr.mxu0 0.0
    %3265 = vmatpush2.msra.mxu0 0.0
    %3266 = vmatprep.subr.mxu0 0.0
    %3267 = vmatpush2.msra.mxu0 0.0
    %3268 = vmatprep.subr.mxu0 0.0
    %3269 = vmatpush2.msra.mxu0 0.0
    %3270 = vmatprep.subr.mxu0 0.0
    %3271 = vmatpush2.msra.mxu0 0.0
    %3272 = vmatprep.subr.mxu0 0.0
    %3273 = vmatpush2.msra.mxu0 0.0
    %3274 = vmatprep.subr.mxu0 0.0
    %3275 = vmatpush2.msra.mxu0 0.0
    %3276 = vmatprep.subr.mxu0 0.0
    %3277 = vmatpush2.msra.mxu0 0.0
    %3278 = vmatprep.subr.mxu0 0.0
    %3279 = vmatpush2.msra.mxu0 0.0
    %3280 = vmatprep.subr.mxu0 0.0
    %3281 = vmatpush2.msra.mxu0 0.0
    %3282 = vmatprep.subr.mxu0 0.0
    %3283 = vmatpush2.msra.mxu0 0.0
    %3284 = vmatprep.subr.mxu0 0.0
    %3285 = vmatpush2.msra.mxu0 0.0
    %3286 = vmatprep.subr.mxu0 0.0
    %3287 = vmatpush2.msra.mxu0 0.0
    %3288 = vmatprep.mubr.f32.mxu0 0.0
    %3289 = vmatmul.mubr.f32.gmra.mxu0 %v3217
    %v3290 = vpop.f32.mrf.mxu0
    %v3291 = vadd.f32 0.0, %v3290
    %v3292 = vpop.f32.mrf.mxu0
    %3293 = vmatprep.mubr.f32.mxu0 0.0
    %3294 = vmatmul.mubr.f32.gmra.mxu0 %v3220
    %v3295 = vpop.f32.mrf.mxu0
    %v3296 = vadd.f32 0.0, %v3295
    %v3297 = vpop.f32.mrf.mxu0
    %3298 = vdwg.mxu0
    %3299 = vrot.lane.b32.xlu0 %v2678, 104
    %v3300 = vpop.permute.xlu0 %3299
    %3301 = vrot.lane.b32.xlu0 %v2683, 104
    %v3302 = vpop.permute.xlu0 %3301
    %3303 = vrot.lane.b32.xlu0 %v2678, 72
    %v3304 = vpop.permute.xlu0 %3303
    %3305 = vrot.lane.b32.xlu0 %v2683, 72
    %v3306 = vpop.permute.xlu0 %3305
    %v3307 = vsel %vm576, %v3300, 0
    %v3309 = vsel %vm576, %v3302, 0
    %v3311 = vsel %vm576, %v3304, 0
    %v3313 = vsel %vm576, %v3306, 0
    %3315 = vmatprep.subr.mxu0 0.0
    %3316 = vmatpush1.xpose.msra.mxu0 0.0
    %3317 = vmatprep.subr.mxu0 0.0
    %3318 = vmatpush1.xpose.msra.mxu0 0.0
    %3319 = vmatprep.subr.mxu0 0.0
    %3320 = vmatpush1.xpose.msra.mxu0 0.0
    %3321 = vmatprep.subr.mxu0 0.0
    %3322 = vmatpush1.xpose.msra.mxu0 0.0
    %3323 = vmatprep.subr.mxu0 0.0
    %3324 = vmatpush1.xpose.msra.mxu0 0.0
    %3325 = vmatprep.subr.mxu0 0.0
    %3326 = vmatpush1.xpose.msra.mxu0 0.0
    %3327 = vmatprep.subr.mxu0 0.0
    %3328 = vmatpush1.xpose.msra.mxu0 0.0
    %3329 = vmatprep.subr.mxu0 0.0
    %3330 = vmatpush1.xpose.msra.mxu0 0.0
    %3331 = vmatprep.subr.mxu0 0.0
    %3332 = vmatpush1.xpose.msra.mxu0 0.0
    %3333 = vmatprep.subr.mxu0 0.0
    %3334 = vmatpush1.xpose.msra.mxu0 0.0
    %3335 = vmatprep.subr.mxu0 0.0
    %3336 = vmatpush1.xpose.msra.mxu0 0.0
    %3337 = vmatprep.subr.mxu0 0.0
    %3338 = vmatpush1.xpose.msra.mxu0 0.0
    %3339 = vmatprep.subr.mxu0 0.0
    %3340 = vmatpush1.xpose.msra.mxu0 0.0
    %3341 = vmatprep.subr.mxu0 0.0
    %3342 = vmatpush1.xpose.msra.mxu0 0.0
    %3343 = vmatprep.subr.mxu0 0.0
    %3344 = vmatpush1.xpose.msra.mxu0 %v3313
    %3345 = vmatprep.subr.mxu0 0.0
    %3346 = vmatpush1.xpose.msra.mxu0 %v3311
    %3347 = vmatprep.subr.mxu0 0.0
    %3348 = vmatpush2.xpose.msra.mxu0 0.0
    %3349 = vmatprep.subr.mxu0 0.0
    %3350 = vmatpush2.xpose.msra.mxu0 0.0
    %3351 = vmatprep.subr.mxu0 0.0
    %3352 = vmatpush2.xpose.msra.mxu0 0.0
    %3353 = vmatprep.subr.mxu0 0.0
    %3354 = vmatpush2.xpose.msra.mxu0 0.0
    %3355 = vmatprep.subr.mxu0 0.0
    %3356 = vmatpush2.xpose.msra.mxu0 0.0
    %3357 = vmatprep.subr.mxu0 0.0
    %3358 = vmatpush2.xpose.msra.mxu0 0.0
    %3359 = vmatprep.subr.mxu0 0.0
    %3360 = vmatpush2.xpose.msra.mxu0 0.0
    %3361 = vmatprep.subr.mxu0 0.0
    %3362 = vmatpush2.xpose.msra.mxu0 0.0
    %3363 = vmatprep.subr.mxu0 0.0
    %3364 = vmatpush2.xpose.msra.mxu0 0.0
    %3365 = vmatprep.subr.mxu0 0.0
    %3366 = vmatpush2.xpose.msra.mxu0 0.0
    %3367 = vmatprep.subr.mxu0 0.0
    %3368 = vmatpush2.xpose.msra.mxu0 0.0
    %3369 = vmatprep.subr.mxu0 0.0
    %3370 = vmatpush2.xpose.msra.mxu0 0.0
    %3371 = vmatprep.subr.mxu0 0.0
    %3372 = vmatpush2.xpose.msra.mxu0 0.0
    %3373 = vmatprep.subr.mxu0 0.0
    %3374 = vmatpush2.xpose.msra.mxu0 0.0
    %3375 = vmatprep.subr.mxu0 0.0
    %3376 = vmatpush2.xpose.msra.mxu0 0.0
    %3377 = vmatprep.subr.mxu0 0.0
    %3378 = vmatpush2.xpose.msra.mxu0 0.0
    %3379 = vmatprep.mubr.f32.mxu0 0.0
    %3380 = vmatmul.mubr.f32.gmra.mxu0 %v3307
    %v3381 = vpop.f32.mrf.mxu0
    %v3382 = vadd.f32 0.0, %v3381
    %v3383 = vpop.f32.mrf.mxu0
    %3384 = vmatprep.mubr.f32.mxu0 0.0
    %3385 = vmatmul.mubr.f32.gmra.mxu0 %v3309
    %v3386 = vpop.f32.mrf.mxu0
    %v3387 = vadd.f32 0.0, %v3386
    %v3388 = vpop.f32.mrf.mxu0
    %3389 = vdwg.mxu0
    %v3390 = vmul.f32 %v3382, 0.35355338
    %v3391 = vmul.f32 %v3387, 0.35355338
    %v3392 = vadd.f32 %v3390, %v1187
    %v3393 = vadd.f32 %v3391, %v1188
    %v3394 = vsel %vm1405, %v3392, -inf
    %3395 = vmax.xlane.f32.xlu0 %v3394
    %v3396 = vpop.xlane.xlu0 %3395
    %v3397 = vsel %vm1409, %v3393, -inf
    %3398 = vmax.xlane.f32.xlu0 %v3397
    %v3399 = vpop.xlane.xlu0 %3398
    %v3400 = vsub.f32 %v3392, %v3396
    %v3401 = vsub.f32 %v3393, %v3399
    %v3402 = vmul.f32 %v3400, 1.442695
    %v3403 = vpow.pop %v3402
    %v3404 = vmul.f32 %v3401, 1.442695
    %v3405 = vpow.pop %v3404
    %v3406 = vsel %vm1405, %v3403, 0.0
    %3407 = vadd.xlane.f32.xlu0 %v3406
    %v3408 = vpop.xlane.xlu0 %3407
    %v3409 = vsel %vm1409, %v3405, 0.0
    %3410 = vadd.xlane.f32.xlu0 %v3409
    %v3411 = vpop.xlane.xlu0 %3410
    %v3412 = vrcp.pop %v3408
    %v3413 = vmul.f32 %v3403, %v3412
    %v3414 = vrcp.pop %v3411
    %v3415 = vmul.f32 %v3405, %v3414
    %3416 = vrot.lane.b32.xlu0 %v2678, 40
    %v3417 = vpop.permute.xlu0 %3416
    %3418 = vrot.lane.b32.xlu0 %v2683, 40
    %v3419 = vpop.permute.xlu0 %3418
    %v3422 = vsel %vm1405, %v3413, 0
    %v3425 = vsel %vm1405, %v3415, 0
    %v3427 = vsel %vm1440, %v3419, 0
    %3429 = vmatprep.subr.mxu0 0.0
    %3430 = vmatpush1.msra.mxu0 0.0
    %3431 = vmatprep.subr.mxu0 0.0
    %3432 = vmatpush1.msra.mxu0 0.0
    %3433 = vmatprep.subr.mxu0 0.0
    %3434 = vmatpush1.msra.mxu0 0.0
    %3435 = vmatprep.subr.mxu0 0.0
    %3436 = vmatpush1.msra.mxu0 0.0
    %3437 = vmatprep.subr.mxu0 0.0
    %3438 = vmatpush1.msra.mxu0 0.0
    %3439 = vmatprep.subr.mxu0 0.0
    %3440 = vmatpush1.msra.mxu0 0.0
    %3441 = vmatprep.subr.mxu0 0.0
    %3442 = vmatpush1.msra.mxu0 0.0
    %3443 = vmatprep.subr.mxu0 0.0
    %3444 = vmatpush1.msra.mxu0 0.0
    %3445 = vmatprep.subr.mxu0 0.0
    %3446 = vmatpush1.msra.mxu0 0.0
    %3447 = vmatprep.subr.mxu0 0.0
    %3448 = vmatpush1.msra.mxu0 0.0
    %3449 = vmatprep.subr.mxu0 0.0
    %3450 = vmatpush1.msra.mxu0 0.0
    %3451 = vmatprep.subr.mxu0 0.0
    %3452 = vmatpush1.msra.mxu0 0.0
    %3453 = vmatprep.subr.mxu0 0.0
    %3454 = vmatpush1.msra.mxu0 0.0
    %3455 = vmatprep.subr.mxu0 0.0
    %3456 = vmatpush1.msra.mxu0 0.0
    %3457 = vmatprep.subr.mxu0 0.0
    %3458 = vmatpush1.msra.mxu0 %v3427
    %3459 = vmatprep.subr.mxu0 0.0
    %3460 = vmatpush1.msra.mxu0 %v3417
    %3461 = vmatprep.subr.mxu0 0.0
    %3462 = vmatpush2.msra.mxu0 0.0
    %3463 = vmatprep.subr.mxu0 0.0
    %3464 = vmatpush2.msra.mxu0 0.0
    %3465 = vmatprep.subr.mxu0 0.0
    %3466 = vmatpush2.msra.mxu0 0.0
    %3467 = vmatprep.subr.mxu0 0.0
    %3468 = vmatpush2.msra.mxu0 0.0
    %3469 = vmatprep.subr.mxu0 0.0
    %3470 = vmatpush2.msra.mxu0 0.0
    %3471 = vmatprep.subr.mxu0 0.0
    %3472 = vmatpush2.msra.mxu0 0.0
    %3473 = vmatprep.subr.mxu0 0.0
    %3474 = vmatpush2.msra.mxu0 0.0
    %3475 = vmatprep.subr.mxu0 0.0
    %3476 = vmatpush2.msra.mxu0 0.0
    %3477 = vmatprep.subr.mxu0 0.0
    %3478 = vmatpush2.msra.mxu0 0.0
    %3479 = vmatprep.subr.mxu0 0.0
    %3480 = vmatpush2.msra.mxu0 0.0
    %3481 = vmatprep.subr.mxu0 0.0
    %3482 = vmatpush2.msra.mxu0 0.0
    %3483 = vmatprep.subr.mxu0 0.0
    %3484 = vmatpush2.msra.mxu0 0.0
    %3485 = vmatprep.subr.mxu0 0.0
    %3486 = vmatpush2.msra.mxu0 0.0
    %3487 = vmatprep.subr.mxu0 0.0
    %3488 = vmatpush2.msra.mxu0 0.0
    %3489 = vmatprep.subr.mxu0 0.0
    %3490 = vmatpush2.msra.mxu0 0.0
    %3491 = vmatprep.subr.mxu0 0.0
    %3492 = vmatpush2.msra.mxu0 0.0
    %3493 = vmatprep.mubr.f32.mxu0 0.0
    %3494 = vmatmul.mubr.f32.gmra.mxu0 %v3422
    %v3495 = vpop.f32.mrf.mxu0
    %v3496 = vadd.f32 0.0, %v3495
    %v3497 = vpop.f32.mrf.mxu0
    %3498 = vmatprep.mubr.f32.mxu0 0.0
    %3499 = vmatmul.mubr.f32.gmra.mxu0 %v3425
    %v3500 = vpop.f32.mrf.mxu0
    %v3501 = vadd.f32 0.0, %v3500
    %v3502 = vpop.f32.mrf.mxu0
    %3503 = vdwg.mxu0
    %3506 = vrot.lane.b32.xlu0 %v3086, 8
    %v3507 = vpop.permute.xlu0 %3506
    %3508 = vrot.lane.b32.xlu0 %v3091, 8
    %v3509 = vpop.permute.xlu0 %3508
    %3514 = vrot.lane.b32.xlu0 %v3291, 16
    %v3515 = vpop.permute.xlu0 %3514
    %3516 = vrot.lane.b32.xlu0 %v3296, 16
    %v3517 = vpop.permute.xlu0 %3516
    %3522 = vrot.lane.b32.xlu0 %v3496, 24
    %v3523 = vpop.permute.xlu0 %3522
    %3524 = vrot.lane.b32.xlu0 %v3501, 24
    %v3525 = vpop.permute.xlu0 %3524
    %v3528 = vsel %vm576, %v2881, %v3507
    %v3529 = vsel %vm576, %v2886, %v3509
    %v3530 = vsel %vm669, %v3528, %v3515
    %v3531 = vsel %vm669, %v3529, %v3517
    %v3532 = vsel %vm2161, %v3530, %v3523
    %v3533 = vsel %vm2161, %v3531, %v3525
    %v3535 = vlaneseq
    %v3536 = vshrl.u32 %v3535, 7
    %v3537 = vsub.s32 0, %v3536
    %v3538 = vrot.slane %v2572, %v3537
    %v3541 = vsel %vm897, %v3532, 0
    %v3544 = vsel %vm897, %v3533, 0
    %3546 = vmatprep.subr.mxu0 0.0
    %3547 = vmatpush1.msra.mxu0 0.0
    %3548 = vmatprep.subr.mxu0 0.0
    %3549 = vmatpush1.msra.mxu0 0.0
    %3550 = vmatprep.subr.mxu0 0.0
    %3551 = vmatpush1.msra.mxu0 0.0
    %3552 = vmatprep.subr.mxu0 0.0
    %3553 = vmatpush1.msra.mxu0 0.0
    %3554 = vmatprep.subr.mxu0 0.0
    %3555 = vmatpush1.msra.mxu0 0.0
    %3556 = vmatprep.subr.mxu0 0.0
    %3557 = vmatpush1.msra.mxu0 0.0
    %3558 = vmatprep.subr.mxu0 0.0
    %3559 = vmatpush1.msra.mxu0 0.0
    %3560 = vmatprep.subr.mxu0 0.0
    %3561 = vmatpush1.msra.mxu0 0.0
    %3562 = vmatprep.subr.mxu0 0.0
    %3563 = vmatpush1.msra.mxu0 0.0
    %3564 = vmatprep.subr.mxu0 0.0
    %3565 = vmatpush1.msra.mxu0 0.0
    %3566 = vmatprep.subr.mxu0 0.0
    %3567 = vmatpush1.msra.mxu0 0.0
    %3568 = vmatprep.subr.mxu0 0.0
    %3569 = vmatpush1.msra.mxu0 0.0
    %3570 = vmatprep.subr.mxu0 0.0
    %3571 = vmatpush1.msra.mxu0 %v2571
    %3572 = vmatprep.subr.mxu0 0.0
    %3573 = vmatpush1.msra.mxu0 %v2570
    %3574 = vmatprep.subr.mxu0 0.0
    %3575 = vmatpush1.msra.mxu0 %v2569
    %3576 = vmatprep.subr.mxu0 0.0
    %3577 = vmatpush1.msra.mxu0 %v2568
    %3578 = vmatprep.subr.mxu0 0.0
    %3579 = vmatpush2.msra.mxu0 0.0
    %3580 = vmatprep.subr.mxu0 0.0
    %3581 = vmatpush2.msra.mxu0 0.0
    %3582 = vmatprep.subr.mxu0 0.0
    %3583 = vmatpush2.msra.mxu0 0.0
    %3584 = vmatprep.subr.mxu0 0.0
    %3585 = vmatpush2.msra.mxu0 0.0
    %3586 = vmatprep.subr.mxu0 0.0
    %3587 = vmatpush2.msra.mxu0 0.0
    %3588 = vmatprep.subr.mxu0 0.0
    %3589 = vmatpush2.msra.mxu0 0.0
    %3590 = vmatprep.subr.mxu0 0.0
    %3591 = vmatpush2.msra.mxu0 0.0
    %3592 = vmatprep.subr.mxu0 0.0
    %3593 = vmatpush2.msra.mxu0 0.0
    %3594 = vmatprep.subr.mxu0 0.0
    %3595 = vmatpush2.msra.mxu0 0.0
    %3596 = vmatprep.subr.mxu0 0.0
    %3597 = vmatpush2.msra.mxu0 0.0
    %3598 = vmatprep.subr.mxu0 0.0
    %3599 = vmatpush2.msra.mxu0 0.0
    %3600 = vmatprep.subr.mxu0 0.0
    %3601 = vmatpush2.msra.mxu0 0.0
    %3602 = vmatprep.subr.mxu0 0.0
    %3603 = vmatpush2.msra.mxu0 0.0
    %3604 = vmatprep.subr.mxu0 0.0
    %3605 = vmatpush2.msra.mxu0 0.0
    %3606 = vmatprep.subr.mxu0 0.0
    %3607 = vmatpush2.msra.mxu0 0.0
    %3608 = vmatprep.subr.mxu0 0.0
    %3609 = vmatpush2.msra.mxu0 0.0
    %3610 = vmatprep.mubr.f32.mxu0 0.0
    %3611 = vmatmul.mubr.f32.gmra.mxu0 %v3541
    %v3612 = vpop.f32.mrf.mxu0
    %v3613 = vadd.f32 %v3538, %v3612
    %v3614 = vpop.f32.mrf.mxu0
    %3615 = vmatprep.mubr.f32.mxu0 0.0
    %3616 = vmatmul.mubr.f32.gmra.mxu0 %v3544
    %v3617 = vpop.f32.mrf.mxu0
    %v3618 = vadd.f32 %v3538, %v3617
    %v3619 = vpop.f32.mrf.mxu0
    %3620 = vdwg.mxu0
    %v3621 = vadd.f32 %v2561, %v3613
    %v3622 = vadd.f32 %v2562, %v3618
    %v3623 = vsel %vm897, %v3621, 0.0
    %3624 = vadd.xlane.f32.xlu0 %v3623
    %v3625 = vpop.xlane.xlu0 %3624
    %v3626 = vsel %vm2256, %v3622, 0.0
    %3627 = vadd.xlane.f32.xlu0 %v3626
    %v3628 = vpop.xlane.xlu0 %3627
    %v3629 = vmul.f32 %v3625, %v2260
    %v3630 = vmul.f32 %v3628, %v2260
    %v3631 = vsub.f32 %v3621, %v3629
    %v3632 = vsub.f32 %v3622, %v3630
    %v3633 = vmul.f32 %v3631, %v3631
    %v3634 = vmul.f32 %v3632, %v3632
    %v3635 = vsel %vm897, %v3633, 0.0
    %3636 = vadd.xlane.f32.xlu0 %v3635
    %v3637 = vpop.xlane.xlu0 %3636
    %v3638 = vsel %vm2256, %v3634, 0.0
    %3639 = vadd.xlane.f32.xlu0 %v3638
    %v3640 = vpop.xlane.xlu0 %3639
    %v3641 = vmul.f32 %v3637, %v2260
    %v3642 = vmul.f32 %v3640, %v2260
    %v3643 = vadd.f32 %v3641, 1e-05
    %v3644 = vadd.f32 %v3642, 1e-05
    %v3645 = vrsqrt.pop %v3643
    %v3646 = vrsqrt.pop %v3644
    %v3647 = vmul.f32 %v3631, %v3645
    %v3648 = vmul.f32 %v3632, %v3646
    %v3650 = vlaneseq
    %v3651 = vshrl.u32 %v3650, 7
    %v3652 = vsub.s32 0, %v3651
    %v3653 = vrot.slane %v2573, %v3652
    %v3655 = vmul.f32 %v3647, %v3653
    %v3656 = vmul.f32 %v3648, %v3653
    %v3658 = vlaneseq
    %v3659 = vshrl.u32 %v3658, 7
    %v3660 = vsub.s32 0, %v3659
    %v3661 = vrot.slane %v2574, %v3660
    %v3663 = vadd.f32 %v3655, %v3661
    %v3664 = vadd.f32 %v3656, %v3661
    %v3666 = vlaneseq
    %v3667 = vshrl.u32 %v3666, 7
    %v3668 = vsub.s32 0, %v3667
    %v3669 = vrot.slane %v2579, %v3668
    %v3672 = vsel %vm897, %v3663, 0
    %v3675 = vsel %vm897, %v3664, 0
    %3677 = vmatprep.subr.mxu0 0.0
    %3678 = vmatpush1.msra.mxu0 0.0
    %3679 = vmatprep.subr.mxu0 0.0
    %3680 = vmatpush1.msra.mxu0 0.0
    %3681 = vmatprep.subr.mxu0 0.0
    %3682 = vmatpush1.msra.mxu0 0.0
    %3683 = vmatprep.subr.mxu0 0.0
    %3684 = vmatpush1.msra.mxu0 0.0
    %3685 = vmatprep.subr.mxu0 0.0
    %3686 = vmatpush1.msra.mxu0 0.0
    %3687 = vmatprep.subr.mxu0 0.0
    %3688 = vmatpush1.msra.mxu0 0.0
    %3689 = vmatprep.subr.mxu0 0.0
    %3690 = vmatpush1.msra.mxu0 0.0
    %3691 = vmatprep.subr.mxu0 0.0
    %3692 = vmatpush1.msra.mxu0 0.0
    %3693 = vmatprep.subr.mxu0 0.0
    %3694 = vmatpush1.msra.mxu0 0.0
    %3695 = vmatprep.subr.mxu0 0.0
    %3696 = vmatpush1.msra.mxu0 0.0
    %3697 = vmatprep.subr.mxu0 0.0
    %3698 = vmatpush1.msra.mxu0 0.0
    %3699 = vmatprep.subr.mxu0 0.0
    %3700 = vmatpush1.msra.mxu0 0.0
    %3701 = vmatprep.subr.mxu0 0.0
    %3702 = vmatpush1.msra.mxu0 %v2578
    %3703 = vmatprep.subr.mxu0 0.0
    %3704 = vmatpush1.msra.mxu0 %v2577
    %3705 = vmatprep.subr.mxu0 0.0
    %3706 = vmatpush1.msra.mxu0 %v2576
    %3707 = vmatprep.subr.mxu0 0.0
    %3708 = vmatpush1.msra.mxu0 %v2575
    %3709 = vmatprep.subr.mxu0 0.0
    %3710 = vmatpush2.msra.mxu0 0.0
    %3711 = vmatprep.subr.mxu0 0.0
    %3712 = vmatpush2.msra.mxu0 0.0
    %3713 = vmatprep.subr.mxu0 0.0
    %3714 = vmatpush2.msra.mxu0 0.0
    %3715 = vmatprep.subr.mxu0 0.0
    %3716 = vmatpush2.msra.mxu0 0.0
    %3717 = vmatprep.subr.mxu0 0.0
    %3718 = vmatpush2.msra.mxu0 0.0
    %3719 = vmatprep.subr.mxu0 0.0
    %3720 = vmatpush2.msra.mxu0 0.0
    %3721 = vmatprep.subr.mxu0 0.0
    %3722 = vmatpush2.msra.mxu0 0.0
    %3723 = vmatprep.subr.mxu0 0.0
    %3724 = vmatpush2.msra.mxu0 0.0
    %3725 = vmatprep.subr.mxu0 0.0
    %3726 = vmatpush2.msra.mxu0 0.0
    %3727 = vmatprep.subr.mxu0 0.0
    %3728 = vmatpush2.msra.mxu0 0.0
    %3729 = vmatprep.subr.mxu0 0.0
    %3730 = vmatpush2.msra.mxu0 0.0
    %3731 = vmatprep.subr.mxu0 0.0
    %3732 = vmatpush2.msra.mxu0 0.0
    %3733 = vmatprep.subr.mxu0 0.0
    %3734 = vmatpush2.msra.mxu0 0.0
    %3735 = vmatprep.subr.mxu0 0.0
    %3736 = vmatpush2.msra.mxu0 0.0
    %3737 = vmatprep.subr.mxu0 0.0
    %3738 = vmatpush2.msra.mxu0 0.0
    %3739 = vmatprep.subr.mxu0 0.0
    %3740 = vmatpush2.msra.mxu0 0.0
    %3741 = vmatprep.mubr.f32.mxu0 0.0
    %3742 = vmatmul.mubr.f32.gmra.mxu0 %v3672
    %v3743 = vpop.f32.mrf.mxu0
    %v3744 = vadd.f32 %v3669, %v3743
    %v3745 = vpop.f32.mrf.mxu0
    %3746 = vmatprep.mubr.f32.mxu0 0.0
    %3747 = vmatmul.mubr.f32.gmra.mxu0 %v3675
    %v3748 = vpop.f32.mrf.mxu0
    %v3749 = vadd.f32 %v3669, %v3748
    %v3750 = vpop.f32.mrf.mxu0
    %3751 = vdwg.mxu0
    %v3752 = vmul.f32 %v3744, 0.5
    %v3753 = vmul.f32 %v3749, 0.5
    %v3754 = vmul.f32 %v3744, 0.70710677
    %v3755 = vmul.f32 %v3749, 0.70710677
    %vm3756 = vcmp.ge.f32.partialorder %v3754, 0.0
    %vm3757 = vcmp.ge.f32.partialorder %v3755, 0.0
    %v3758 = vsel %vm3756, 1.0, -1.0
    %v3759 = vsel %vm3757, 1.0, -1.0
    %v3760 = vand.u32 2147483647, %v3754
    %v3761 = vand.u32 2147483647, %v3755
    %v3762 = vmul.f32 %v3760, 0.3275911
    %v3763 = vmul.f32 %v3761, 0.3275911
    %v3764 = vadd.f32 %v3762, 1.0
    %v3765 = vadd.f32 %v3763, 1.0
    %v3766 = vrcp.pop %v3764
    %v3767 = vmul.f32 1.0, %v3766
    %v3768 = vrcp.pop %v3765
    %v3769 = vmul.f32 1.0, %v3768
    %v3770 = vmul.f32 %v3767, 1.0614054
    %v3771 = vmul.f32 %v3769, 1.0614054
    %v3772 = vadd.f32 %v3770, -1.4531521
    %v3773 = vadd.f32 %v3771, -1.4531521
    %v3774 = vmul.f32 %v3772, %v3767
    %v3775 = vmul.f32 %v3773, %v3769
    %v3776 = vadd.f32 %v3774, 1.4214138
    %v3777 = vadd.f32 %v3775, 1.4214138
    %v3778 = vmul.f32 %v3776, %v3767
    %v3779 = vmul.f32 %v3777, %v3769
    %v3780 = vadd.f32 %v3778, -0.28449672
    %v3781 = vadd.f32 %v3779, -0.28449672
    %v3782 = vmul.f32 %v3780, %v3767
    %v3783 = vmul.f32 %v3781, %v3769
    %v3784 = vadd.f32 %v3782, 0.2548296
    %v3785 = vadd.f32 %v3783, 0.2548296
    %v3786 = vmul.f32 %v3784, %v3767
    %v3787 = vmul.f32 %v3785, %v3769
    %v3788 = vsub.f32 0.0, %v3760
    %v3789 = vsub.f32 0.0, %v3761
    %v3790 = vmul.f32 %v3788, %v3760
    %v3791 = vmul.f32 %v3789, %v3761
    %v3792 = vmul.f32 %v3790, 1.442695
    %v3793 = vpow.pop %v3792
    %v3794 = vmul.f32 %v3791, 1.442695
    %v3795 = vpow.pop %v3794
    %v3796 = vmul.f32 %v3786, %v3793
    %v3797 = vmul.f32 %v3787, %v3795
    %v3798 = vsub.f32 1.0, %v3796
    %v3799 = vsub.f32 1.0, %v3797
    %v3800 = vmul.f32 %v3758, %v3798
    %v3801 = vmul.f32 %v3759, %v3799
    %v3802 = vadd.f32 %v3800, 1.0
    %v3803 = vadd.f32 %v3801, 1.0
    %v3804 = vmul.f32 %v3752, %v3802
    %v3805 = vmul.f32 %v3753, %v3803
    %v3807 = vlaneseq
    %v3808 = vshrl.u32 %v3807, 7
    %v3809 = vsub.s32 0, %v3808
    %v3810 = vrot.slane %v2596, %v3809
    %3812 = vmatprep.subr.mxu0 0.0
    %3813 = vmatpush1.msra.mxu0 %v2595
    %3814 = vmatprep.subr.mxu0 0.0
    %3815 = vmatpush1.msra.mxu0 %v2594
    %3816 = vmatprep.subr.mxu0 0.0
    %3817 = vmatpush1.msra.mxu0 %v2593
    %3818 = vmatprep.subr.mxu0 0.0
    %3819 = vmatpush1.msra.mxu0 %v2592
    %3820 = vmatprep.subr.mxu0 0.0
    %3821 = vmatpush1.msra.mxu0 %v2591
    %3822 = vmatprep.subr.mxu0 0.0
    %3823 = vmatpush1.msra.mxu0 %v2590
    %3824 = vmatprep.subr.mxu0 0.0
    %3825 = vmatpush1.msra.mxu0 %v2589
    %3826 = vmatprep.subr.mxu0 0.0
    %3827 = vmatpush1.msra.mxu0 %v2588
    %3828 = vmatprep.subr.mxu0 0.0
    %3829 = vmatpush1.msra.mxu0 %v2587
    %3830 = vmatprep.subr.mxu0 0.0
    %3831 = vmatpush1.msra.mxu0 %v2586
    %3832 = vmatprep.subr.mxu0 0.0
    %3833 = vmatpush1.msra.mxu0 %v2585
    %3834 = vmatprep.subr.mxu0 0.0
    %3835 = vmatpush1.msra.mxu0 %v2584
    %3836 = vmatprep.subr.mxu0 0.0
    %3837 = vmatpush1.msra.mxu0 %v2583
    %3838 = vmatprep.subr.mxu0 0.0
    %3839 = vmatpush1.msra.mxu0 %v2582
    %3840 = vmatprep.subr.mxu0 0.0
    %3841 = vmatpush1.msra.mxu0 %v2581
    %3842 = vmatprep.subr.mxu0 0.0
    %3843 = vmatpush1.msra.mxu0 %v2580
    %3844 = vmatprep.subr.mxu0 0.0
    %3845 = vmatpush2.msra.mxu0 0.0
    %3846 = vmatprep.subr.mxu0 0.0
    %3847 = vmatpush2.msra.mxu0 0.0
    %3848 = vmatprep.subr.mxu0 0.0
    %3849 = vmatpush2.msra.mxu0 0.0
    %3850 = vmatprep.subr.mxu0 0.0
    %3851 = vmatpush2.msra.mxu0 0.0
    %3852 = vmatprep.subr.mxu0 0.0
    %3853 = vmatpush2.msra.mxu0 0.0
    %3854 = vmatprep.subr.mxu0 0.0
    %3855 = vmatpush2.msra.mxu0 0.0
    %3856 = vmatprep.subr.mxu0 0.0
    %3857 = vmatpush2.msra.mxu0 0.0
    %3858 = vmatprep.subr.mxu0 0.0
    %3859 = vmatpush2.msra.mxu0 0.0
    %3860 = vmatprep.subr.mxu0 0.0
    %3861 = vmatpush2.msra.mxu0 0.0
    %3862 = vmatprep.subr.mxu0 0.0
    %3863 = vmatpush2.msra.mxu0 0.0
    %3864 = vmatprep.subr.mxu0 0.0
    %3865 = vmatpush2.msra.mxu0 0.0
    %3866 = vmatprep.subr.mxu0 0.0
    %3867 = vmatpush2.msra.mxu0 0.0
    %3868 = vmatprep.subr.mxu0 0.0
    %3869 = vmatpush2.msra.mxu0 0.0
    %3870 = vmatprep.subr.mxu0 0.0
    %3871 = vmatpush2.msra.mxu0 0.0
    %3872 = vmatprep.subr.mxu0 0.0
    %3873 = vmatpush2.msra.mxu0 0.0
    %3874 = vmatprep.subr.mxu0 0.0
    %3875 = vmatpush2.msra.mxu0 0.0
    %3876 = vmatprep.mubr.f32.mxu0 0.0
    %3877 = vmatmul.mubr.f32.gmra.mxu0 %v3804
    %v3878 = vpop.f32.mrf.mxu0
    %v3879 = vadd.f32 %v3810, %v3878
    %v3880 = vpop.f32.mrf.mxu0
    %3881 = vmatprep.mubr.f32.mxu0 0.0
    %3882 = vmatmul.mubr.f32.gmra.mxu0 %v3805
    %v3883 = vpop.f32.mrf.mxu0
    %v3884 = vadd.f32 %v3810, %v3883
    %v3885 = vpop.f32.mrf.mxu0
    %3886 = vdwg.mxu0
    %v3887 = vadd.f32 %v3663, %v3879
    %v3888 = vadd.f32 %v3664, %v3884
    %v3889 = vsel %vm897, %v3887, 0.0
    %3890 = vadd.xlane.f32.xlu0 %v3889
    %v3891 = vpop.xlane.xlu0 %3890
    %v3892 = vsel %vm2256, %v3888, 0.0
    %3893 = vadd.xlane.f32.xlu0 %v3892
    %v3894 = vpop.xlane.xlu0 %3893
    %v3895 = vmul.f32 %v3891, %v2260
    %v3896 = vmul.f32 %v3894, %v2260
    %v3897 = vsub.f32 %v3887, %v3895
    %v3898 = vsub.f32 %v3888, %v3896
    %v3899 = vmul.f32 %v3897, %v3897
    %v3900 = vmul.f32 %v3898, %v3898
    %v3901 = vsel %vm897, %v3899, 0.0
    %3902 = vadd.xlane.f32.xlu0 %v3901
    %v3903 = vpop.xlane.xlu0 %3902
    %v3904 = vsel %vm2256, %v3900, 0.0
    %3905 = vadd.xlane.f32.xlu0 %v3904
    %v3906 = vpop.xlane.xlu0 %3905
    %v3907 = vmul.f32 %v3903, %v2260
    %v3908 = vmul.f32 %v3906, %v2260
    %v3909 = vadd.f32 %v3907, 1e-05
    %v3910 = vadd.f32 %v3908, 1e-05
    %v3911 = vrsqrt.pop %v3909
    %v3912 = vrsqrt.pop %v3910
    %v3913 = vmul.f32 %v3897, %v3911
    %v3914 = vmul.f32 %v3898, %v3912
    %v3916 = vlaneseq
    %v3917 = vshrl.u32 %v3916, 7
    %v3918 = vsub.s32 0, %v3917
    %v3919 = vrot.slane %v2597, %v3918
    %v3921 = vmul.f32 %v3913, %v3919
    %v3922 = vmul.f32 %v3914, %v3919
    %v3924 = vlaneseq
    %v3925 = vshrl.u32 %v3924, 7
    %v3926 = vsub.s32 0, %v3925
    %v3927 = vrot.slane %v2598, %v3926
    %v3929 = vadd.f32 %v3921, %v3927
    %v3930 = vadd.f32 %v3922, %v3927
    %v3931 = vld [vmem:[%s89] sm:$0xff]
    %v3932 = vld [vmem:[%s91] sm:$0x3]
    %v3933 = vld [vmem:[%s93] sm:$0xff]
    %v3934 = vld [vmem:[%s93 + $0x8] sm:$0xff]
    %v3935 = vld [vmem:[%s93 + $0x10] sm:$0xff]
    %v3936 = vld [vmem:[%s93 + $0x18] sm:$0xff]
    %v3937 = vld [vmem:[#allocation19] sm:$0x1]
    %v3938 = vld [vmem:[%s97] sm:$0xff]
    %v3939 = vld [vmem:[%s97 + $0x8] sm:$0xff]
    %v3940 = vld [vmem:[%s97 + $0x10] sm:$0xff]
    %v3941 = vld [vmem:[%s97 + $0x18] sm:$0xff]
    %v3942 = vld [vmem:[#allocation20] sm:$0x1]
    %v3943 = vld [vmem:[%s101] sm:$0xff]
    %v3944 = vld [vmem:[%s101 + $0x8] sm:$0xff]
    %v3945 = vld [vmem:[%s101 + $0x10] sm:$0xff]
    %v3946 = vld [vmem:[%s101 + $0x18] sm:$0xff]
    %v3947 = vld [vmem:[#allocation22] sm:$0x1]
    %v3948 = vld [vmem:[%s105] sm:$0xff]
    %v3949 = vld [vmem:[%s105 + $0x8] sm:$0xff]
    %v3950 = vld [vmem:[#allocation23] sm:$0x1]
    %v3951 = vld [vmem:[%s109] sm:$0xff]
    %v3952 = vld [vmem:[%s109 + $0x8] sm:$0xff]
    %v3953 = vld [vmem:[%s109 + $0x10] sm:$0xff]
    %v3954 = vld [vmem:[%s109 + $0x18] sm:$0xff]
    %v3955 = vld [vmem:[#allocation25] sm:$0x1]
    %v3957 = vsel %vm1405, %v3931, 0
    %v3960 = vsel %vm1440, %v3930, 0
    %3962 = vmatprep.subr.mxu0 0.0
    %3963 = vmatpush1.msra.mxu0 0.0
    %3964 = vmatprep.subr.mxu0 0.0
    %3965 = vmatpush1.msra.mxu0 0.0
    %3966 = vmatprep.subr.mxu0 0.0
    %3967 = vmatpush1.msra.mxu0 0.0
    %3968 = vmatprep.subr.mxu0 0.0
    %3969 = vmatpush1.msra.mxu0 0.0
    %3970 = vmatprep.subr.mxu0 0.0
    %3971 = vmatpush1.msra.mxu0 0.0
    %3972 = vmatprep.subr.mxu0 0.0
    %3973 = vmatpush1.msra.mxu0 0.0
    %3974 = vmatprep.subr.mxu0 0.0
    %3975 = vmatpush1.msra.mxu0 0.0
    %3976 = vmatprep.subr.mxu0 0.0
    %3977 = vmatpush1.msra.mxu0 0.0
    %3978 = vmatprep.subr.mxu0 0.0
    %3979 = vmatpush1.msra.mxu0 0.0
    %3980 = vmatprep.subr.mxu0 0.0
    %3981 = vmatpush1.msra.mxu0 0.0
    %3982 = vmatprep.subr.mxu0 0.0
    %3983 = vmatpush1.msra.mxu0 0.0
    %3984 = vmatprep.subr.mxu0 0.0
    %3985 = vmatpush1.msra.mxu0 0.0
    %3986 = vmatprep.subr.mxu0 0.0
    %3987 = vmatpush1.msra.mxu0 0.0
    %3988 = vmatprep.subr.mxu0 0.0
    %3989 = vmatpush1.msra.mxu0 0.0
    %3990 = vmatprep.subr.mxu0 0.0
    %3991 = vmatpush1.msra.mxu0 %v3960
    %3992 = vmatprep.subr.mxu0 0.0
    %3993 = vmatpush1.msra.mxu0 %v3929
    %3994 = vmatprep.subr.mxu0 0.0
    %3995 = vmatpush2.msra.mxu0 0.0
    %3996 = vmatprep.subr.mxu0 0.0
    %3997 = vmatpush2.msra.mxu0 0.0
    %3998 = vmatprep.subr.mxu0 0.0
    %3999 = vmatpush2.msra.mxu0 0.0
    %4000 = vmatprep.subr.mxu0 0.0
    %4001 = vmatpush2.msra.mxu0 0.0
    %4002 = vmatprep.subr.mxu0 0.0
    %4003 = vmatpush2.msra.mxu0 0.0
    %4004 = vmatprep.subr.mxu0 0.0
    %4005 = vmatpush2.msra.mxu0 0.0
    %4006 = vmatprep.subr.mxu0 0.0
    %4007 = vmatpush2.msra.mxu0 0.0
    %4008 = vmatprep.subr.mxu0 0.0
    %4009 = vmatpush2.msra.mxu0 0.0
    %4010 = vmatprep.subr.mxu0 0.0
    %4011 = vmatpush2.msra.mxu0 0.0
    %4012 = vmatprep.subr.mxu0 0.0
    %4013 = vmatpush2.msra.mxu0 0.0
    %4014 = vmatprep.subr.mxu0 0.0
    %4015 = vmatpush2.msra.mxu0 0.0
    %4016 = vmatprep.subr.mxu0 0.0
    %4017 = vmatpush2.msra.mxu0 0.0
    %4018 = vmatprep.subr.mxu0 0.0
    %4019 = vmatpush2.msra.mxu0 0.0
    %4020 = vmatprep.subr.mxu0 0.0
    %4021 = vmatpush2.msra.mxu0 0.0
    %4022 = vmatprep.subr.mxu0 0.0
    %4023 = vmatpush2.msra.mxu0 0.0
    %4024 = vmatprep.subr.mxu0 0.0
    %4025 = vmatpush2.msra.mxu0 0.0
    %4026 = vmatprep.mubr.f32.mxu0 0.0
    %4027 = vmatmul.mubr.f32.gmra.mxu0 %v3957
    %v4028 = vpop.f32.mrf.mxu0
    %v4029 = vadd.f32 0.0, %v4028
    %v4030 = vpop.f32.mrf.mxu0
    %4031 = vdwg.mxu0
    %v4033 = vlaneseq
    %v4034 = vshrl.u32 %v4033, 7
    %v4035 = vsub.s32 0, %v4034
    %v4036 = vrot.slane %v3937, %v4035
    %v4039 = vsel %vm897, %v4029, 0
    %4041 = vmatprep.subr.mxu0 0.0
    %4042 = vmatpush1.msra.mxu0 0.0
    %4043 = vmatprep.subr.mxu0 0.0
    %4044 = vmatpush1.msra.mxu0 0.0
    %4045 = vmatprep.subr.mxu0 0.0
    %4046 = vmatpush1.msra.mxu0 0.0
    %4047 = vmatprep.subr.mxu0 0.0
    %4048 = vmatpush1.msra.mxu0 0.0
    %4049 = vmatprep.subr.mxu0 0.0
    %4050 = vmatpush1.msra.mxu0 0.0
    %4051 = vmatprep.subr.mxu0 0.0
    %4052 = vmatpush1.msra.mxu0 0.0
    %4053 = vmatprep.subr.mxu0 0.0
    %4054 = vmatpush1.msra.mxu0 0.0
    %4055 = vmatprep.subr.mxu0 0.0
    %4056 = vmatpush1.msra.mxu0 0.0
    %4057 = vmatprep.subr.mxu0 0.0
    %4058 = vmatpush1.msra.mxu0 0.0
    %4059 = vmatprep.subr.mxu0 0.0
    %4060 = vmatpush1.msra.mxu0 0.0
    %4061 = vmatprep.subr.mxu0 0.0
    %4062 = vmatpush1.msra.mxu0 0.0
    %4063 = vmatprep.subr.mxu0 0.0
    %4064 = vmatpush1.msra.mxu0 0.0
    %4065 = vmatprep.subr.mxu0 0.0
    %4066 = vmatpush1.msra.mxu0 %v3936
    %4067 = vmatprep.subr.mxu0 0.0
    %4068 = vmatpush1.msra.mxu0 %v3935
    %4069 = vmatprep.subr.mxu0 0.0
    %4070 = vmatpush1.msra.mxu0 %v3934
    %4071 = vmatprep.subr.mxu0 0.0
    %4072 = vmatpush1.msra.mxu0 %v3933
    %4073 = vmatprep.subr.mxu0 0.0
    %4074 = vmatpush2.msra.mxu0 0.0
    %4075 = vmatprep.subr.mxu0 0.0
    %4076 = vmatpush2.msra.mxu0 0.0
    %4077 = vmatprep.subr.mxu0 0.0
    %4078 = vmatpush2.msra.mxu0 0.0
    %4079 = vmatprep.subr.mxu0 0.0
    %4080 = vmatpush2.msra.mxu0 0.0
    %4081 = vmatprep.subr.mxu0 0.0
    %4082 = vmatpush2.msra.mxu0 0.0
    %4083 = vmatprep.subr.mxu0 0.0
    %4084 = vmatpush2.msra.mxu0 0.0
    %4085 = vmatprep.subr.mxu0 0.0
    %4086 = vmatpush2.msra.mxu0 0.0
    %4087 = vmatprep.subr.mxu0 0.0
    %4088 = vmatpush2.msra.mxu0 0.0
    %4089 = vmatprep.subr.mxu0 0.0
    %4090 = vmatpush2.msra.mxu0 0.0
    %4091 = vmatprep.subr.mxu0 0.0
    %4092 = vmatpush2.msra.mxu0 0.0
    %4093 = vmatprep.subr.mxu0 0.0
    %4094 = vmatpush2.msra.mxu0 0.0
    %4095 = vmatprep.subr.mxu0 0.0
    %4096 = vmatpush2.msra.mxu0 0.0
    %4097 = vmatprep.subr.mxu0 0.0
    %4098 = vmatpush2.msra.mxu0 0.0
    %4099 = vmatprep.subr.mxu0 0.0
    %4100 = vmatpush2.msra.mxu0 0.0
    %4101 = vmatprep.subr.mxu0 0.0
    %4102 = vmatpush2.msra.mxu0 0.0
    %4103 = vmatprep.subr.mxu0 0.0
    %4104 = vmatpush2.msra.mxu0 0.0
    %4105 = vmatprep.mubr.f32.mxu0 0.0
    %4106 = vmatmul.mubr.f32.gmra.mxu0 %v4039
    %v4107 = vpop.f32.mrf.mxu0
    %v4108 = vadd.f32 %v4036, %v4107
    %v4109 = vpop.f32.mrf.mxu0
    %4110 = vdwg.mxu0
    %v4111 = vmax.f32 %v4108, 0.0
    %v4113 = vlaneseq
    %v4114 = vshrl.u32 %v4113, 7
    %v4115 = vsub.s32 0, %v4114
    %v4116 = vrot.slane %v3942, %v4115
    %v4119 = vsel %vm897, %v4111, 0
    %4121 = vmatprep.subr.mxu0 0.0
    %4122 = vmatpush1.msra.mxu0 0.0
    %4123 = vmatprep.subr.mxu0 0.0
    %4124 = vmatpush1.msra.mxu0 0.0
    %4125 = vmatprep.subr.mxu0 0.0
    %4126 = vmatpush1.msra.mxu0 0.0
    %4127 = vmatprep.subr.mxu0 0.0
    %4128 = vmatpush1.msra.mxu0 0.0
    %4129 = vmatprep.subr.mxu0 0.0
    %4130 = vmatpush1.msra.mxu0 0.0
    %4131 = vmatprep.subr.mxu0 0.0
    %4132 = vmatpush1.msra.mxu0 0.0
    %4133 = vmatprep.subr.mxu0 0.0
    %4134 = vmatpush1.msra.mxu0 0.0
    %4135 = vmatprep.subr.mxu0 0.0
    %4136 = vmatpush1.msra.mxu0 0.0
    %4137 = vmatprep.subr.mxu0 0.0
    %4138 = vmatpush1.msra.mxu0 0.0
    %4139 = vmatprep.subr.mxu0 0.0
    %4140 = vmatpush1.msra.mxu0 0.0
    %4141 = vmatprep.subr.mxu0 0.0
    %4142 = vmatpush1.msra.mxu0 0.0
    %4143 = vmatprep.subr.mxu0 0.0
    %4144 = vmatpush1.msra.mxu0 0.0
    %4145 = vmatprep.subr.mxu0 0.0
    %4146 = vmatpush1.msra.mxu0 %v3941
    %4147 = vmatprep.subr.mxu0 0.0
    %4148 = vmatpush1.msra.mxu0 %v3940
    %4149 = vmatprep.subr.mxu0 0.0
    %4150 = vmatpush1.msra.mxu0 %v3939
    %4151 = vmatprep.subr.mxu0 0.0
    %4152 = vmatpush1.msra.mxu0 %v3938
    %4153 = vmatprep.subr.mxu0 0.0
    %4154 = vmatpush2.msra.mxu0 0.0
    %4155 = vmatprep.subr.mxu0 0.0
    %4156 = vmatpush2.msra.mxu0 0.0
    %4157 = vmatprep.subr.mxu0 0.0
    %4158 = vmatpush2.msra.mxu0 0.0
    %4159 = vmatprep.subr.mxu0 0.0
    %4160 = vmatpush2.msra.mxu0 0.0
    %4161 = vmatprep.subr.mxu0 0.0
    %4162 = vmatpush2.msra.mxu0 0.0
    %4163 = vmatprep.subr.mxu0 0.0
    %4164 = vmatpush2.msra.mxu0 0.0
    %4165 = vmatprep.subr.mxu0 0.0
    %4166 = vmatpush2.msra.mxu0 0.0
    %4167 = vmatprep.subr.mxu0 0.0
    %4168 = vmatpush2.msra.mxu0 0.0
    %4169 = vmatprep.subr.mxu0 0.0
    %4170 = vmatpush2.msra.mxu0 0.0
    %4171 = vmatprep.subr.mxu0 0.0
    %4172 = vmatpush2.msra.mxu0 0.0
    %4173 = vmatprep.subr.mxu0 0.0
    %4174 = vmatpush2.msra.mxu0 0.0
    %4175 = vmatprep.subr.mxu0 0.0
    %4176 = vmatpush2.msra.mxu0 0.0
    %4177 = vmatprep.subr.mxu0 0.0
    %4178 = vmatpush2.msra.mxu0 0.0
    %4179 = vmatprep.subr.mxu0 0.0
    %4180 = vmatpush2.msra.mxu0 0.0
    %4181 = vmatprep.subr.mxu0 0.0
    %4182 = vmatpush2.msra.mxu0 0.0
    %4183 = vmatprep.subr.mxu0 0.0
    %4184 = vmatpush2.msra.mxu0 0.0
    %4185 = vmatprep.mubr.f32.mxu0 0.0
    %4186 = vmatmul.mubr.f32.gmra.mxu0 %v4119
    %v4187 = vpop.f32.mrf.mxu0
    %v4188 = vadd.f32 %v4116, %v4187
    %v4189 = vpop.f32.mrf.mxu0
    %4190 = vdwg.mxu0
    %v4192 = vlaneseq
    %v4193 = vshrl.u32 %v4192, 7
    %v4194 = vsub.s32 0, %v4193
    %v4195 = vrot.slane %v3947, %v4194
    %v4198 = vsel %vm897, %v4188, 0
    %4200 = vmatprep.subr.mxu0 0.0
    %4201 = vmatpush1.msra.mxu0 0.0
    %4202 = vmatprep.subr.mxu0 0.0
    %4203 = vmatpush1.msra.mxu0 0.0
    %4204 = vmatprep.subr.mxu0 0.0
    %4205 = vmatpush1.msra.mxu0 0.0
    %4206 = vmatprep.subr.mxu0 0.0
    %4207 = vmatpush1.msra.mxu0 0.0
    %4208 = vmatprep.subr.mxu0 0.0
    %4209 = vmatpush1.msra.mxu0 0.0
    %4210 = vmatprep.subr.mxu0 0.0
    %4211 = vmatpush1.msra.mxu0 0.0
    %4212 = vmatprep.subr.mxu0 0.0
    %4213 = vmatpush1.msra.mxu0 0.0
    %4214 = vmatprep.subr.mxu0 0.0
    %4215 = vmatpush1.msra.mxu0 0.0
    %4216 = vmatprep.subr.mxu0 0.0
    %4217 = vmatpush1.msra.mxu0 0.0
    %4218 = vmatprep.subr.mxu0 0.0
    %4219 = vmatpush1.msra.mxu0 0.0
    %4220 = vmatprep.subr.mxu0 0.0
    %4221 = vmatpush1.msra.mxu0 0.0
    %4222 = vmatprep.subr.mxu0 0.0
    %4223 = vmatpush1.msra.mxu0 0.0
    %4224 = vmatprep.subr.mxu0 0.0
    %4225 = vmatpush1.msra.mxu0 %v3946
    %4226 = vmatprep.subr.mxu0 0.0
    %4227 = vmatpush1.msra.mxu0 %v3945
    %4228 = vmatprep.subr.mxu0 0.0
    %4229 = vmatpush1.msra.mxu0 %v3944
    %4230 = vmatprep.subr.mxu0 0.0
    %4231 = vmatpush1.msra.mxu0 %v3943
    %4232 = vmatprep.subr.mxu0 0.0
    %4233 = vmatpush2.msra.mxu0 0.0
    %4234 = vmatprep.subr.mxu0 0.0
    %4235 = vmatpush2.msra.mxu0 0.0
    %4236 = vmatprep.subr.mxu0 0.0
    %4237 = vmatpush2.msra.mxu0 0.0
    %4238 = vmatprep.subr.mxu0 0.0
    %4239 = vmatpush2.msra.mxu0 0.0
    %4240 = vmatprep.subr.mxu0 0.0
    %4241 = vmatpush2.msra.mxu0 0.0
    %4242 = vmatprep.subr.mxu0 0.0
    %4243 = vmatpush2.msra.mxu0 0.0
    %4244 = vmatprep.subr.mxu0 0.0
    %4245 = vmatpush2.msra.mxu0 0.0
    %4246 = vmatprep.subr.mxu0 0.0
    %4247 = vmatpush2.msra.mxu0 0.0
    %4248 = vmatprep.subr.mxu0 0.0
    %4249 = vmatpush2.msra.mxu0 0.0
    %4250 = vmatprep.subr.mxu0 0.0
    %4251 = vmatpush2.msra.mxu0 0.0
    %4252 = vmatprep.subr.mxu0 0.0
    %4253 = vmatpush2.msra.mxu0 0.0
    %4254 = vmatprep.subr.mxu0 0.0
    %4255 = vmatpush2.msra.mxu0 0.0
    %4256 = vmatprep.subr.mxu0 0.0
    %4257 = vmatpush2.msra.mxu0 0.0
    %4258 = vmatprep.subr.mxu0 0.0
    %4259 = vmatpush2.msra.mxu0 0.0
    %4260 = vmatprep.subr.mxu0 0.0
    %4261 = vmatpush2.msra.mxu0 0.0
    %4262 = vmatprep.subr.mxu0 0.0
    %4263 = vmatpush2.msra.mxu0 0.0
    %4264 = vmatprep.mubr.f32.mxu0 0.0
    %4265 = vmatmul.mubr.f32.gmra.mxu0 %v4198
    %v4266 = vpop.f32.mrf.mxu0
    %v4267 = vadd.f32 %v4195, %v4266
    %v4268 = vpop.f32.mrf.mxu0
    %4269 = vdwg.mxu0
    %vm4270 = vcmp.gt.f32.partialorder %v4267, 0.0
    %v4271 = vmul.f32 %v4267, 0.1
    %v4272 = vsel %vm4270, %v4267, %v4271
    %v4274 = vlaneseq
    %v4275 = vshrl.u32 %v4274, 7
    %v4276 = vsub.s32 0, %v4275
    %v4277 = vrot.slane %v3950, %v4276
    %v4280 = vsel %vm669, %v4272, 0
    %4282 = vmatprep.subr.mxu0 0.0
    %4283 = vmatpush1.msra.mxu0 0.0
    %4284 = vmatprep.subr.mxu0 0.0
    %4285 = vmatpush1.msra.mxu0 0.0
    %4286 = vmatprep.subr.mxu0 0.0
    %4287 = vmatpush1.msra.mxu0 0.0
    %4288 = vmatprep.subr.mxu0 0.0
    %4289 = vmatpush1.msra.mxu0 0.0
    %4290 = vmatprep.subr.mxu0 0.0
    %4291 = vmatpush1.msra.mxu0 0.0
    %4292 = vmatprep.subr.mxu0 0.0
    %4293 = vmatpush1.msra.mxu0 0.0
    %4294 = vmatprep.subr.mxu0 0.0
    %4295 = vmatpush1.msra.mxu0 0.0
    %4296 = vmatprep.subr.mxu0 0.0
    %4297 = vmatpush1.msra.mxu0 0.0
    %4298 = vmatprep.subr.mxu0 0.0
    %4299 = vmatpush1.msra.mxu0 0.0
    %4300 = vmatprep.subr.mxu0 0.0
    %4301 = vmatpush1.msra.mxu0 0.0
    %4302 = vmatprep.subr.mxu0 0.0
    %4303 = vmatpush1.msra.mxu0 0.0
    %4304 = vmatprep.subr.mxu0 0.0
    %4305 = vmatpush1.msra.mxu0 0.0
    %4306 = vmatprep.subr.mxu0 0.0
    %4307 = vmatpush1.msra.mxu0 0.0
    %4308 = vmatprep.subr.mxu0 0.0
    %4309 = vmatpush1.msra.mxu0 0.0
    %4310 = vmatprep.subr.mxu0 0.0
    %4311 = vmatpush1.msra.mxu0 %v3949
    %4312 = vmatprep.subr.mxu0 0.0
    %4313 = vmatpush1.msra.mxu0 %v3948
    %4314 = vmatprep.subr.mxu0 0.0
    %4315 = vmatpush2.msra.mxu0 0.0
    %4316 = vmatprep.subr.mxu0 0.0
    %4317 = vmatpush2.msra.mxu0 0.0
    %4318 = vmatprep.subr.mxu0 0.0
    %4319 = vmatpush2.msra.mxu0 0.0
    %4320 = vmatprep.subr.mxu0 0.0
    %4321 = vmatpush2.msra.mxu0 0.0
    %4322 = vmatprep.subr.mxu0 0.0
    %4323 = vmatpush2.msra.mxu0 0.0
    %4324 = vmatprep.subr.mxu0 0.0
    %4325 = vmatpush2.msra.mxu0 0.0
    %4326 = vmatprep.subr.mxu0 0.0
    %4327 = vmatpush2.msra.mxu0 0.0
    %4328 = vmatprep.subr.mxu0 0.0
    %4329 = vmatpush2.msra.mxu0 0.0
    %4330 = vmatprep.subr.mxu0 0.0
    %4331 = vmatpush2.msra.mxu0 0.0
    %4332 = vmatprep.subr.mxu0 0.0
    %4333 = vmatpush2.msra.mxu0 0.0
    %4334 = vmatprep.subr.mxu0 0.0
    %4335 = vmatpush2.msra.mxu0 0.0
    %4336 = vmatprep.subr.mxu0 0.0
    %4337 = vmatpush2.msra.mxu0 0.0
    %4338 = vmatprep.subr.mxu0 0.0
    %4339 = vmatpush2.msra.mxu0 0.0
    %4340 = vmatprep.subr.mxu0 0.0
    %4341 = vmatpush2.msra.mxu0 0.0
    %4342 = vmatprep.subr.mxu0 0.0
    %4343 = vmatpush2.msra.mxu0 0.0
    %4344 = vmatprep.subr.mxu0 0.0
    %4345 = vmatpush2.msra.mxu0 0.0
    %4346 = vmatprep.mubr.f32.mxu0 0.0
    %4347 = vmatmul.mubr.f32.gmra.mxu0 %v4280
    %v4348 = vpop.f32.mrf.mxu0
    %v4349 = vadd.f32 %v4277, %v4348
    %v4350 = vpop.f32.mrf.mxu0
    %4351 = vdwg.mxu0
    %4352 = vst.msk [vmem:[%s113] sm:$0xff] %vm419, %v4349
    %v4354 = vsel %vm576, %v3932, 0
    %4356 = vmatprep.subr.mxu0 0.0
    %4357 = vmatpush1.msra.mxu0 0.0
    %4358 = vmatprep.subr.mxu0 0.0
    %4359 = vmatpush1.msra.mxu0 0.0
    %4360 = vmatprep.subr.mxu0 0.0
    %4361 = vmatpush1.msra.mxu0 0.0
    %4362 = vmatprep.subr.mxu0 0.0
    %4363 = vmatpush1.msra.mxu0 0.0
    %4364 = vmatprep.subr.mxu0 0.0
    %4365 = vmatpush1.msra.mxu0 0.0
    %4366 = vmatprep.subr.mxu0 0.0
    %4367 = vmatpush1.msra.mxu0 0.0
    %4368 = vmatprep.subr.mxu0 0.0
    %4369 = vmatpush1.msra.mxu0 0.0
    %4370 = vmatprep.subr.mxu0 0.0
    %4371 = vmatpush1.msra.mxu0 0.0
    %4372 = vmatprep.subr.mxu0 0.0
    %4373 = vmatpush1.msra.mxu0 0.0
    %4374 = vmatprep.subr.mxu0 0.0
    %4375 = vmatpush1.msra.mxu0 0.0
    %4376 = vmatprep.subr.mxu0 0.0
    %4377 = vmatpush1.msra.mxu0 0.0
    %4378 = vmatprep.subr.mxu0 0.0
    %4379 = vmatpush1.msra.mxu0 0.0
    %4380 = vmatprep.subr.mxu0 0.0
    %4381 = vmatpush1.msra.mxu0 0.0
    %4382 = vmatprep.subr.mxu0 0.0
    %4383 = vmatpush1.msra.mxu0 0.0
    %4384 = vmatprep.subr.mxu0 0.0
    %4385 = vmatpush1.msra.mxu0 0.0
    %4386 = vmatprep.subr.mxu0 0.0
    %4387 = vmatpush1.msra.mxu0 %v4188
    %4388 = vmatprep.subr.mxu0 0.0
    %4389 = vmatpush2.msra.mxu0 0.0
    %4390 = vmatprep.subr.mxu0 0.0
    %4391 = vmatpush2.msra.mxu0 0.0
    %4392 = vmatprep.subr.mxu0 0.0
    %4393 = vmatpush2.msra.mxu0 0.0
    %4394 = vmatprep.subr.mxu0 0.0
    %4395 = vmatpush2.msra.mxu0 0.0
    %4396 = vmatprep.subr.mxu0 0.0
    %4397 = vmatpush2.msra.mxu0 0.0
    %4398 = vmatprep.subr.mxu0 0.0
    %4399 = vmatpush2.msra.mxu0 0.0
    %4400 = vmatprep.subr.mxu0 0.0
    %4401 = vmatpush2.msra.mxu0 0.0
    %4402 = vmatprep.subr.mxu0 0.0
    %4403 = vmatpush2.msra.mxu0 0.0
    %4404 = vmatprep.subr.mxu0 0.0
    %4405 = vmatpush2.msra.mxu0 0.0
    %4406 = vmatprep.subr.mxu0 0.0
    %4407 = vmatpush2.msra.mxu0 0.0
    %4408 = vmatprep.subr.mxu0 0.0
    %4409 = vmatpush2.msra.mxu0 0.0
    %4410 = vmatprep.subr.mxu0 0.0
    %4411 = vmatpush2.msra.mxu0 0.0
    %4412 = vmatprep.subr.mxu0 0.0
    %4413 = vmatpush2.msra.mxu0 0.0
    %4414 = vmatprep.subr.mxu0 0.0
    %4415 = vmatpush2.msra.mxu0 0.0
    %4416 = vmatprep.subr.mxu0 0.0
    %4417 = vmatpush2.msra.mxu0 0.0
    %4418 = vmatprep.subr.mxu0 0.0
    %4419 = vmatpush2.msra.mxu0 0.0
    %4420 = vmatprep.mubr.f32.mxu0 0.0
    %4421 = vmatmul.mubr.f32.gmra.mxu0 %v4354
    %v4422 = vpop.f32.mrf.mxu0
    %v4423 = vadd.f32 0.0, %v4422
    %v4424 = vpop.f32.mrf.mxu0
    %4425 = vdwg.mxu0
    %v4427 = vlaneseq
    %v4428 = vshrl.u32 %v4427, 7
    %v4429 = vsub.s32 0, %v4428
    %v4430 = vrot.slane %v3955, %v4429
    %v4433 = vsel %vm897, %v4423, 0
    %4435 = vmatprep.subr.mxu0 0.0
    %4436 = vmatpush1.msra.mxu0 0.0
    %4437 = vmatprep.subr.mxu0 0.0
    %4438 = vmatpush1.msra.mxu0 0.0
    %4439 = vmatprep.subr.mxu0 0.0
    %4440 = vmatpush1.msra.mxu0 0.0
    %4441 = vmatprep.subr.mxu0 0.0
    %4442 = vmatpush1.msra.mxu0 0.0
    %4443 = vmatprep.subr.mxu0 0.0
    %4444 = vmatpush1.msra.mxu0 0.0
    %4445 = vmatprep.subr.mxu0 0.0
    %4446 = vmatpush1.msra.mxu0 0.0
    %4447 = vmatprep.subr.mxu0 0.0
    %4448 = vmatpush1.msra.mxu0 0.0
    %4449 = vmatprep.subr.mxu0 0.0
    %4450 = vmatpush1.msra.mxu0 0.0
    %4451 = vmatprep.subr.mxu0 0.0
    %4452 = vmatpush1.msra.mxu0 0.0
    %4453 = vmatprep.subr.mxu0 0.0
    %4454 = vmatpush1.msra.mxu0 0.0
    %4455 = vmatprep.subr.mxu0 0.0
    %4456 = vmatpush1.msra.mxu0 0.0
    %4457 = vmatprep.subr.mxu0 0.0
    %4458 = vmatpush1.msra.mxu0 0.0
    %4459 = vmatprep.subr.mxu0 0.0
    %4460 = vmatpush1.msra.mxu0 %v3954
    %4461 = vmatprep.subr.mxu0 0.0
    %4462 = vmatpush1.msra.mxu0 %v3953
    %4463 = vmatprep.subr.mxu0 0.0
    %4464 = vmatpush1.msra.mxu0 %v3952
    %4465 = vmatprep.subr.mxu0 0.0
    %4466 = vmatpush1.msra.mxu0 %v3951
    %4467 = vmatprep.subr.mxu0 0.0
    %4468 = vmatpush2.msra.mxu0 0.0
    %4469 = vmatprep.subr.mxu0 0.0
    %4470 = vmatpush2.msra.mxu0 0.0
    %4471 = vmatprep.subr.mxu0 0.0
    %4472 = vmatpush2.msra.mxu0 0.0
    %4473 = vmatprep.subr.mxu0 0.0
    %4474 = vmatpush2.msra.mxu0 0.0
    %4475 = vmatprep.subr.mxu0 0.0
    %4476 = vmatpush2.msra.mxu0 0.0
    %4477 = vmatprep.subr.mxu0 0.0
    %4478 = vmatpush2.msra.mxu0 0.0
    %4479 = vmatprep.subr.mxu0 0.0
    %4480 = vmatpush2.msra.mxu0 0.0
    %4481 = vmatprep.subr.mxu0 0.0
    %4482 = vmatpush2.msra.mxu0 0.0
    %4483 = vmatprep.subr.mxu0 0.0
    %4484 = vmatpush2.msra.mxu0 0.0
    %4485 = vmatprep.subr.mxu0 0.0
    %4486 = vmatpush2.msra.mxu0 0.0
    %4487 = vmatprep.subr.mxu0 0.0
    %4488 = vmatpush2.msra.mxu0 0.0
    %4489 = vmatprep.subr.mxu0 0.0
    %4490 = vmatpush2.msra.mxu0 0.0
    %4491 = vmatprep.subr.mxu0 0.0
    %4492 = vmatpush2.msra.mxu0 0.0
    %4493 = vmatprep.subr.mxu0 0.0
    %4494 = vmatpush2.msra.mxu0 0.0
    %4495 = vmatprep.subr.mxu0 0.0
    %4496 = vmatpush2.msra.mxu0 0.0
    %4497 = vmatprep.subr.mxu0 0.0
    %4498 = vmatpush2.msra.mxu0 0.0
    %4499 = vmatprep.mubr.f32.mxu0 0.0
    %4500 = vmatmul.mubr.f32.gmra.mxu0 %v4433
    %v4501 = vpop.f32.mrf.mxu0
    %v4502 = vadd.f32 %v4430, %v4501
    %v4503 = vpop.f32.mrf.mxu0
    %4504 = vdwg.mxu0
    %vm4505 = vcmask 33792
    %4506 = vst.msk [vmem:[#allocation26] sm:$0x3] %vm4505, %v4502
    // Predicated region
    $region286: #{forward_device.1} parent=1 // pred_check
      _
    $region287: #{forward_device.1} parent=1 // pred_check_branch
      %4508 = sbr.rel (0) target = $region289
    $region288: #{forward_device.1} parent=1 // pred_region
      _
    $region289: #{forward_device.1} parent=1 // pred_fallthru
      _
    // Predicated region
    $region290: #{forward_device.1} parent=1 // pred_check
      _
    $region291: #{forward_device.1} parent=1 // pred_check_branch
      %4510 = sbr.rel (0) target = $region293
    $region292: #{forward_device.1} parent=1 // pred_region
      %s4512 = ssub.s32 32, 32
      %4513 = vsyncadd [#allocation4], %s4512
      %s4515 = sshll.u32 [#allocation26], 4
      %s4516 = int_to_ptr.vmem [resolvable:$true] %s4515
      %4518 = dma.vmem_to_hbm [thread:$0]  %s4516, 32, %s115, [#allocation4]
    $region293: #{forward_device.1} parent=1 // pred_fallthru
      _
    // Predicated region
    $region294: #{forward_device.1} parent=1 // pred_check
      _
    $region295: #{forward_device.1} parent=1 // pred_check_branch
      %4520 = sbr.rel (0) target = $region297
    $region296: #{forward_device.1} parent=1 // pred_region
      _
    $region297: #{forward_device.1} parent=1 // pred_fallthru
      _
    // Predicated region
    $region298: #{forward_device.1} parent=1 // pred_check
      _
    $region299: #{forward_device.1} parent=1 // pred_check_branch
      %4522 = sbr.rel (0) target = $region301
    $region300: #{forward_device.1} parent=1 // pred_region
      %4523 = dma.done [#allocation4], 32
    $region301: #{forward_device.1} parent=1 // pred_fallthru
      _
    %4524 = vsyncpa [#allocation3], 1
    %4525 = vsyncpa [#allocation6], 1
    %4526 = vsyncpa [#allocation9], 1
    %4527 = vsyncpa [#allocation12], 1
    %4528 = vsyncpa [#allocation15], 1
    %4529 = vsyncpa [#allocation18], 1
    %4530 = vsyncpa [#allocation21], 1
    %4531 = vsyncpa [#allocation24], 1
    %4532 = vsyncpa [#allocation4], 1

</llo_original>
